<compile_context>
chip_gen: v6e
topology: v6e:2x2x1
jax: 0.10.0
libtpu: 0.0.40
codegen_flags: <defaults>
</compile_context>

<pallas_src>
import functools
import math

import jax
import jax.numpy as jnp
from jax import lax
from jax.experimental import pallas as pl
from jax.experimental.pallas import tpu as pltpu  # noqa: F401  (TPU backend assumed)

# ----------------------------- small test config ------------------------------
B = 2                 # batch
S = 8                 # number of spans
D = 64                # args.bert_feature_dim
NUM_HEADS = 4
DH = D // NUM_HEADS
D_FF = 4 * D          # BERT intermediate size
NUM_CLASSES = 3       # len(validity2id) - 2 (assumed 3)
IMP_CLASSES = 2
BLOCK_NUM = 2
N_DEC_LAYERS = max(1, BLOCK_NUM - 1)
LN_EPS = 1e-12
NEG_INF = -1.0e9
AUX_W = 16            # packed auxiliary input width (key mask + row-select flags)

f32 = jnp.float32
bf16 = jnp.bfloat16


# ------------------------------ in-kernel helpers -----------------------------

def _layernorm(x, gamma, beta):
    mean = jnp.mean(x, axis=-1, keepdims=True)
    var = jnp.mean((x - mean) ** 2, axis=-1, keepdims=True)
    return (x - mean) * lax.rsqrt(var + LN_EPS) * gamma + beta


def _gelu_tanh(x):
    # TODO(synk): erf-based BERT GELU approximated with tanh (EUP friendly).
    c = math.sqrt(2.0 / math.pi)
    return 0.5 * x * (1.0 + jnp.tanh(c * (x + 0.044715 * x * x * x)))


# -------------------------------- fused kernel --------------------------------

def fused_step1_kernel(n_layers,
                       x_ref, aux_ref,
                       wqkvo_ref, wmlp_ref, wimp_ref, wffn1_ref, wffn2_ref,
                       wsent_ref, bias_ref,
                       logits_ref, se_ref, misc_ref):
    x = x_ref[...]                       # (B*S, D) spans_embedding, b-major
    aux = aux_ref[...]                   # (B*S, AUX_W)
    key_mask = aux[:, 0:S]               # additive key mask, per query row (same per batch)
    is_first = aux[:, S:S + 1]           # 1.0 on span index 0 of each batch
    is_last = aux[:, S + 1:S + 2]        # 1.0 on last valid span of each batch

    boff = [0]

    def takeb(n):                        # static lane-slice carving of the bias slab
        v = bias_ref[:, boff[0]:boff[0] + n]
        boff[0] += n
        return v

    bq, bk, bv, bo = takeb(D), takeb(D), takeb(D), takeb(D)
    b_mlp = takeb(2 * D)                 # [b_imp_asp_mlp | b_imp_opi_mlp]
    b_imp = takeb(2 * D)                 # imp classifier biases (block layout)

    # --------- atten_imp: 4-head self-attention over spans + mean(span) ---------
    wqkvo = wqkvo_ref[...]               # (D, 4D) bf16: [Wq|Wk|Wv|Wo]
    xb = x.astype(bf16)
    qkv = jnp.dot(xb, wqkvo[:, 0:3 * D], preferred_element_type=f32)   # (B*S, 3D)
    q = qkv[:, 0:D] + bq
    k = qkv[:, D:2 * D] + bk
    v = qkv[:, 2 * D:3 * D] + bv

    inv_sqrt_dh = 1.0 / math.sqrt(DH)
    ctx_batches = []
    for bi in range(B):                                  # static unroll (B=2)
        qb = q[bi * S:(bi + 1) * S, :]
        kb = k[bi * S:(bi + 1) * S, :]
        vb = v[bi * S:(bi + 1) * S, :]
        mb = key_mask[bi * S:(bi + 1) * S, :]            # (S, S) additive over KEYS
        heads = []
        for h in range(NUM_HEADS):                       # static unroll (4)
            lo, hi = h * DH, (h + 1) * DH
            s = lax.dot_general(qb[:, lo:hi], kb[:, lo:hi],
                                (((1,), (1,)), ((), ())),
                                preferred_element_type=f32) * inv_sqrt_dh + mb
            # scores are small; masked entries (-1e9) underflow in exp -> skip max-sub
            p = jnp.exp(s)
            p = p * pl.reciprocal(jnp.sum(p, axis=-1, keepdims=True), approx=True)
            heads.append(jnp.dot(p, vb[:, lo:hi], preferred_element_type=f32))
        ctx_batches.append(jnp.concatenate(heads, axis=1))          # (S, D), register concat
    ctx = jnp.concatenate(ctx_batches, axis=0)                      # (B*S, D)
    attn_out = jnp.dot(ctx.astype(bf16), wqkvo[:, 3 * D:4 * D],
                       preferred_element_type=f32) + bo             # (B*S, D)

    # embedding = mean over spans, per batch -> (B, D)
    emb = jnp.concatenate(
        [jnp.mean(attn_out[bi * S:(bi + 1) * S, :], axis=0, keepdims=True)
         for bi in range(B)], axis=0)

    # imp_asp_mlp / imp_opi_mlp fused: (B, D) @ (D, 2D)
    emb12 = jnp.dot(emb.astype(bf16), wmlp_ref[...],
                    preferred_element_type=f32) + b_mlp             # (B, 2D)
    emb1 = emb12[:, 0:D]
    emb2 = emb12[:, D:2 * D]

    # implicit-existence classifiers: block-diagonal (2D, 2D), one matmul
    imp_logits = jnp.dot(emb12.astype(bf16), wimp_ref[...],
                         preferred_element_type=f32) + b_imp        # (B, 2D)

    # ----- scatter: embedding_1 -> span 0, embedding_2 -> last valid span -----
    emb1_full = jnp.concatenate(
        [jnp.broadcast_to(emb1[bi:bi + 1, :], (S, D)) for bi in range(B)], axis=0)
    emb2_full = jnp.concatenate(
        [jnp.broadcast_to(emb2[bi:bi + 1, :], (S, D)) for bi in range(B)], axis=0)

    def blend(base, repl, m):            # m in {0,1}, pure VPU math (no bool bcast)
        return base + m * (repl - base)

    # later write wins in the reference: se1 writes (0, then last); se2 (last, then 0)
    se1 = blend(blend(x, emb1_full, is_first), emb2_full, is_last)
    se2 = blend(blend(x, emb2_full, is_last), emb1_full, is_first)

    # ----- decoder stacks: forward_1_decoders on se1, reverse_1_decoders on se2 -----
    wffn1 = wffn1_ref[...]               # (D, 2*n_layers*D_FF) bf16
    wffn2 = wffn2_ref[...]               # (D_FF, 2*n_layers*D) bf16
    hs = [se1, se2]
    for s_idx in range(2):
        h = hs[s_idx]
        for l in range(n_layers):
            col = s_idx * n_layers + l
            w1 = wffn1[:, col * D_FF:(col + 1) * D_FF]
            w2 = wffn2[:, col * D:(col + 1) * D]
            b1, b2, gamma, beta = takeb(D_FF), takeb(D), takeb(D), takeb(D)
            inter = _gelu_tanh(
                jnp.dot(h.astype(bf16), w1, preferred_element_type=f32) + b1)
            y = jnp.dot(inter.astype(bf16), w2, preferred_element_type=f32) + b2
            h = _layernorm(y + h, gamma, beta)
        hs[s_idx] = h
    se1_out, se2_out = hs

    # ----- sentiment classifiers, lane-dense packed logits (B*S, 2D) -----
    b_sent = takeb(2 * D)
    wsent = wsent_ref[...]               # (D, 2D) bf16: [W_aspect_pad | W_opinion_pad]
    log_a = jnp.dot(se1_out.astype(bf16), wsent[:, 0:D], preferred_element_type=f32)
    log_o = jnp.dot(se2_out.astype(bf16), wsent[:, D:2 * D], preferred_element_type=f32)

    logits_ref[...] = jnp.concatenate([log_a, log_o], axis=1) + b_sent   # (B*S, 2D)
    se_ref[...] = jnp.concatenate([se1_out, se2_out], axis=1)            # (B*S, 2D)
    misc_ref[...] = jnp.concatenate([emb12, imp_logits], axis=1)         # (B, 4D)


# ----------------------------- host-side packing -------------------------------

def pack_params(p):
    """Pack all weights into 6 bf16 slabs + 1 f32 bias slab (few big DMAs)."""
    w_qkvo = jnp.concatenate(
        [p["attn"]["wq"], p["attn"]["wk"], p["attn"]["wv"], p["attn"]["wo"]],
        axis=1).astype(bf16)                                           # (D, 4D)
    w_mlp = jnp.concatenate(
        [p["imp_asp_mlp_w"], p["imp_opi_mlp_w"]], axis=1).astype(bf16)  # (D, 2D)

    wa = jnp.zeros((D, D), f32).at[:, :IMP_CLASSES].set(p["imp_asp_cls_w"])
    wo = jnp.zeros((D, D), f32).at[:, :IMP_CLASSES].set(p["imp_opi_cls_w"])
    w_imp = (jnp.zeros((2 * D, 2 * D), f32)
             .at[0:D, 0:D].set(wa)
             .at[D:2 * D, D:2 * D].set(wo)).astype(bf16)               # (2D, 2D)

    w_ffn1 = jnp.concatenate(
        [l["w1"] for l in p["fwd_layers"]] + [l["w1"] for l in p["rev_layers"]],
        axis=1).astype(bf16)                                           # (D, 2*L*D_FF)
    w_ffn2 = jnp.concatenate(
        [l["w2"] for l in p["fwd_layers"]] + [l["w2"] for l in p["rev_layers"]],
        axis=1).astype(bf16)                                           # (D_FF, 2*L*D)

    wsa = jnp.zeros((D, D), f32).at[:, :NUM_CLASSES].set(p["sent_asp_w"])
    wso = jnp.zeros((D, D), f32).at[:, :NUM_CLASSES].set(p["sent_opi_w"])
    w_sent = jnp.concatenate([wsa, wso], axis=1).astype(bf16)          # (D, 2D)

    chunks = [p["attn"]["bq"], p["attn"]["bk"], p["attn"]["bv"], p["attn"]["bo"],
              p["imp_asp_mlp_b"], p["imp_opi_mlp_b"]]
    b_imp = (jnp.zeros((1, 2 * D), f32)
             .at[:, 0:IMP_CLASSES].set(p["imp_asp_cls_b"])
             .at[:, D:D + IMP_CLASSES].set(p["imp_opi_cls_b"]))
    chunks.append(b_imp)
    for stack in ("fwd_layers", "rev_layers"):
        for l in p[stack]:
            chunks += [l["b1"], l["b2"], l["gamma"], l["beta"]]
    b_sent = (jnp.zeros((1, 2 * D), f32)
              .at[:, 0:NUM_CLASSES].set(p["sent_asp_b"])
              .at[:, D:D + NUM_CLASSES].set(p["sent_opi_b"]))
    chunks.append(b_sent)
    biases = jnp.concatenate(chunks, axis=1)                           # (1, total)

    return (w_qkvo, w_mlp, w_imp, w_ffn1, w_ffn2, w_sent, biases)


def step_1_forward(spans_embedding, span_mask, packed):
    """JAX wrapper matching Step_1.forward output structure (span_generator skipped)."""
    x2d = spans_embedding.reshape(B * S, D).astype(f32)

    # additive KEY-axis mask, replicated per query row of the same batch
    key_add = (1.0 - span_mask.astype(f32)) * NEG_INF                  # (B, S)
    key_rows = jnp.repeat(key_add, S, axis=0)                          # (B*S, S)

    pos = jnp.arange(B * S) % S
    is_first = (pos == 0).astype(f32)[:, None]
    last_idx = jnp.sum(span_mask.astype(jnp.int32), axis=1) - 1        # (B,)
    is_last = (pos == jnp.repeat(last_idx, S)).astype(f32)[:, None]
    aux = jnp.concatenate(
        [key_rows, is_first, is_last, jnp.zeros((B * S, AUX_W - S - 2), f32)], axis=1)

    out_shapes = (
        jax.ShapeDtypeStruct((B * S, 2 * D), f32),   # [aspect logits pad | opinion logits pad]
        jax.ShapeDtypeStruct((B * S, 2 * D), f32),   # [span_embedding_1 | span_embedding_2]
        jax.ShapeDtypeStruct((B, 4 * D), f32),       # [emb1 | emb2 | imp logits (block)]
    )
    logits_pack, se_pack, misc_pack = pl.pallas_call(
        functools.partial(fused_step1_kernel, N_DEC_LAYERS),
        out_shape=out_shapes,
    )(x2d, aux, *packed)

    class_logits_aspect = logits_pack[:, :NUM_CLASSES].reshape(B, S, NUM_CLASSES)
    class_logits_opinion = logits_pack[:, D:D + NUM_CLASSES].reshape(B, S, NUM_CLASSES)
    span_embedding_1 = se_pack[:, :D].reshape(B, S, D)
    span_embedding_2 = se_pack[:, D:].reshape(B, S, D)
    embedding_1 = misc_pack[:, 0:D]
    embedding_2 = misc_pack[:, D:2 * D]
    imp_aspect_exist = misc_pack[:, 2 * D:2 * D + IMP_CLASSES]
    imp_opinion_exist = misc_pack[:, 3 * D:3 * D + IMP_CLASSES]
    features_mask_tensor = None   # Average/Max span_generation modes return None

    return (class_logits_aspect, class_logits_opinion, spans_embedding,
            span_embedding_1, span_embedding_2, features_mask_tensor,
            imp_aspect_exist, imp_opinion_exist, embedding_1, embedding_2)


# ------------------------------- parameter init --------------------------------

def init_params(key):
    ks = iter(jax.random.split(key, 64))

    def nrm(shape, scale=0.05):
        return jax.random.normal(next(ks), shape, dtype=f32) * scale

    attn = dict(wq=nrm((D, D)), wk=nrm((D, D)), wv=nrm((D, D)), wo=nrm((D, D)),
                bq=nrm((1, D)), bk=nrm((1, D)), bv=nrm((1, D)), bo=nrm((1, D)))

    def ffn_layer():
        return dict(w1=nrm((D, D_FF)), b1=nrm((1, D_FF)),
                    w2=nrm((D_FF, D)), b2=nrm((1, D)),
                    gamma=jnp.ones((1, D), f32), beta=jnp.zeros((1, D), f32))

    return dict(
        attn=attn,
        imp_asp_mlp_w=nrm((D, D)), imp_asp_mlp_b=nrm((1, D)),
        imp_opi_mlp_w=nrm((D, D)), imp_opi_mlp_b=nrm((1, D)),
        imp_asp_cls_w=nrm((D, IMP_CLASSES)), imp_asp_cls_b=nrm((1, IMP_CLASSES)),
        imp_opi_cls_w=nrm((D, IMP_CLASSES)), imp_opi_cls_b=nrm((1, IMP_CLASSES)),
        fwd_layers=[ffn_layer() for _ in range(N_DEC_LAYERS)],
        rev_layers=[ffn_layer() for _ in range(N_DEC_LAYERS)],
        sent_asp_w=nrm((D, NUM_CLASSES)), sent_asp_b=nrm((1, NUM_CLASSES)),
        sent_opi_w=nrm((D, NUM_CLASSES)), sent_opi_b=nrm((1, NUM_CLASSES)),
    )


# ------------------------------------ main --------------------------------------

if __name__ == "__main__":
    root = jax.random.PRNGKey(0)
    kp, kx = jax.random.split(root, 2)

    params = init_params(kp)
    packed = pack_params(params)

    spans_embedding = jax.random.normal(kx, (B, S, D), dtype=f32)
    # span mask: 1 = valid span, 0 = padded (last two spans of batch 1 padded)
    col = jnp.arange(S)[None, :]
    span_mask = jnp.where((jnp.arange(B)[:, None] == 1) & (col >= S - 2),
                          0, 1).astype(jnp.int32)

    fwd = jax.jit(functools.partial(step_1_forward, packed=packed))
    outs = fwd(spans_embedding, span_mask)
    outs = jax.block_until_ready(outs)

    (cla, clo, se0, se1, se2, fmt, imp_a, imp_o, e1, e2) = outs
    assert cla.shape == (B, S, NUM_CLASSES), cla.shape
    assert clo.shape == (B, S, NUM_CLASSES), clo.shape
    assert se1.shape == (B, S, D) and se2.shape == (B, S, D)
    assert imp_a.shape == (B, IMP_CLASSES) and imp_o.shape == (B, IMP_CLASSES)
    assert e1.shape == (B, D) and e2.shape == (B, D)
    for t in (cla, clo, se1, se2, imp_a, imp_o, e1, e2):
        assert bool(jnp.all(jnp.isfinite(t)))
    print("KERNEL_OK")
</pallas_src>

<mosaic_0001>
module attributes {stable_mosaic.version = 11 : i64} {
  func.func @fused_step1_kernel(%arg0: memref<16x64xf32, #tpu.memory_space<vmem>>, %arg1: memref<16x16xf32, #tpu.memory_space<vmem>>, %arg2: memref<64x256xbf16, #tpu.memory_space<vmem>>, %arg3: memref<64x128xbf16, #tpu.memory_space<vmem>>, %arg4: memref<128x128xbf16, #tpu.memory_space<vmem>>, %arg5: memref<64x512xbf16, #tpu.memory_space<vmem>>, %arg6: memref<256x128xbf16, #tpu.memory_space<vmem>>, %arg7: memref<64x128xbf16, #tpu.memory_space<vmem>>, %arg8: memref<1x1536xf32, #tpu.memory_space<vmem>>, %arg9: memref<16x128xf32, #tpu.memory_space<vmem>>, %arg10: memref<16x128xf32, #tpu.memory_space<vmem>>, %arg11: memref<2x256xf32, #tpu.memory_space<vmem>>) attributes {dimension_semantics = [], scalar_prefetch = 0 : i64, scratch_operands = 0 : i64, tpu.core_type = #tpu.core_type<tc>} {
    %c0 = arith.constant 0 : index
    %c0_0 = arith.constant 0 : index
    %0 = vector.load %arg0[%c0, %c0_0] : memref<16x64xf32, #tpu.memory_space<vmem>>, vector<16x64xf32>
    %c0_1 = arith.constant 0 : index
    %c0_2 = arith.constant 0 : index
    %1 = vector.load %arg1[%c0_1, %c0_2] : memref<16x16xf32, #tpu.memory_space<vmem>>, vector<16x16xf32>
    %2 = vector.extract_strided_slice %1 {offsets = [0, 0], sizes = [16, 8], strides = [1, 1]} : vector<16x16xf32> to vector<16x8xf32>
    %3 = vector.extract_strided_slice %1 {offsets = [0, 8], sizes = [16, 1], strides = [1, 1]} : vector<16x16xf32> to vector<16x1xf32>
    %4 = vector.extract_strided_slice %1 {offsets = [0, 9], sizes = [16, 1], strides = [1, 1]} : vector<16x16xf32> to vector<16x1xf32>
    %c0_3 = arith.constant 0 : index
    %c0_4 = arith.constant 0 : index
    %5 = vector.load %arg8[%c0_3, %c0_4] : memref<1x1536xf32, #tpu.memory_space<vmem>>, vector<1x64xf32>
    %c0_5 = arith.constant 0 : index
    %c64 = arith.constant 64 : index
    %6 = vector.load %arg8[%c0_5, %c64] : memref<1x1536xf32, #tpu.memory_space<vmem>>, vector<1x64xf32>
    %c0_6 = arith.constant 0 : index
    %c128 = arith.constant 128 : index
    %7 = vector.load %arg8[%c0_6, %c128] : memref<1x1536xf32, #tpu.memory_space<vmem>>, vector<1x64xf32>
    %c0_7 = arith.constant 0 : index
    %c192 = arith.constant 192 : index
    %8 = vector.load %arg8[%c0_7, %c192] : memref<1x1536xf32, #tpu.memory_space<vmem>>, vector<1x64xf32>
    %c0_8 = arith.constant 0 : index
    %c256 = arith.constant 256 : index
    %9 = vector.load %arg8[%c0_8, %c256] : memref<1x1536xf32, #tpu.memory_space<vmem>>, vector<1x128xf32>
    %c0_9 = arith.constant 0 : index
    %c384 = arith.constant 384 : index
    %10 = vector.load %arg8[%c0_9, %c384] : memref<1x1536xf32, #tpu.memory_space<vmem>>, vector<1x128xf32>
    %c0_10 = arith.constant 0 : index
    %c0_11 = arith.constant 0 : index
    %11 = vector.load %arg2[%c0_10, %c0_11] : memref<64x256xbf16, #tpu.memory_space<vmem>>, vector<64x256xbf16>
    %12 = arith.truncf %0 : vector<16x64xf32> to vector<16x64xbf16>
    %13 = vector.extract_strided_slice %11 {offsets = [0, 0], sizes = [64, 192], strides = [1, 1]} : vector<64x256xbf16> to vector<64x192xbf16>
    %cst = arith.constant dense<0.000000e+00> : vector<16x192xf32>
    %14 = tpu.matmul %12, %13, %cst {dimension_numbers = #tpu.dot_dimension_numbers<[1], [0], [0], [1], [0, 0, 1, 1], [], []>} : vector<16x64xbf16>, vector<64x192xbf16>, vector<16x192xf32> -> vector<16x192xf32>
    %15 = vector.extract_strided_slice %14 {offsets = [0, 0], sizes = [16, 64], strides = [1, 1]} : vector<16x192xf32> to vector<16x64xf32>
    %16 = vector.broadcast %5 : vector<1x64xf32> to vector<16x64xf32>
    %17 = arith.addf %15, %16 : vector<16x64xf32>
    %18 = vector.extract_strided_slice %14 {offsets = [0, 64], sizes = [16, 64], strides = [1, 1]} : vector<16x192xf32> to vector<16x64xf32>
    %19 = vector.broadcast %6 : vector<1x64xf32> to vector<16x64xf32>
    %20 = arith.addf %18, %19 : vector<16x64xf32>
    %21 = vector.extract_strided_slice %14 {offsets = [0, 128], sizes = [16, 64], strides = [1, 1]} : vector<16x192xf32> to vector<16x64xf32>
    %22 = vector.broadcast %7 : vector<1x64xf32> to vector<16x64xf32>
    %23 = arith.addf %21, %22 : vector<16x64xf32>
    %24 = vector.extract_strided_slice %17 {offsets = [0, 0], sizes = [8, 64], strides = [1, 1]} : vector<16x64xf32> to vector<8x64xf32>
    %25 = vector.extract_strided_slice %20 {offsets = [0, 0], sizes = [8, 64], strides = [1, 1]} : vector<16x64xf32> to vector<8x64xf32>
    %26 = vector.extract_strided_slice %23 {offsets = [0, 0], sizes = [8, 64], strides = [1, 1]} : vector<16x64xf32> to vector<8x64xf32>
    %27 = vector.extract_strided_slice %2 {offsets = [0, 0], sizes = [8, 8], strides = [1, 1]} : vector<16x8xf32> to vector<8x8xf32>
    %28 = vector.extract_strided_slice %24 {offsets = [0, 0], sizes = [8, 16], strides = [1, 1]} : vector<8x64xf32> to vector<8x16xf32>
    %29 = vector.extract_strided_slice %25 {offsets = [0, 0], sizes = [8, 16], strides = [1, 1]} : vector<8x64xf32> to vector<8x16xf32>
    %cst_12 = arith.constant dense<0.000000e+00> : vector<8x8xf32>
    %30 = tpu.matmul %28, %29, %cst_12 {dimension_numbers = #tpu.dot_dimension_numbers<[1], [1], [0], [0], [0, 0, 1, 0], [], []>} : vector<8x16xf32>, vector<8x16xf32>, vector<8x8xf32> -> vector<8x8xf32>
    %cst_13 = arith.constant 2.500000e-01 : f32
    %31 = vector.broadcast %cst_13 : f32 to vector<8x8xf32>
    %32 = arith.mulf %30, %31 : vector<8x8xf32>
    %33 = arith.addf %32, %27 : vector<8x8xf32>
    %34 = math.exp %33 : vector<8x8xf32>
    %cst_14 = arith.constant dense<0.000000e+00> : vector<8xf32>
    %35 = vector.multi_reduction <add>, %34, %cst_14 [1] : vector<8x8xf32> to vector<8xf32>
    %36 = vector.shape_cast %35 : vector<8xf32> to vector<8x1xf32>
    %37 = tpu.reciprocal %36 {approx = true} : vector<8x1xf32> -> vector<8x1xf32>
    %38 = vector.broadcast %37 : vector<8x1xf32> to vector<8x8xf32>
    %39 = arith.mulf %34, %38 : vector<8x8xf32>
    %40 = vector.extract_strided_slice %26 {offsets = [0, 0], sizes = [8, 16], strides = [1, 1]} : vector<8x64xf32> to vector<8x16xf32>
    %cst_15 = arith.constant dense<0.000000e+00> : vector<8x16xf32>
    %41 = tpu.matmul %39, %40, %cst_15 {dimension_numbers = #tpu.dot_dimension_numbers<[1], [0], [0], [1], [0, 0, 1, 1], [], []>} : vector<8x8xf32>, vector<8x16xf32>, vector<8x16xf32> -> vector<8x16xf32>
    %42 = vector.extract_strided_slice %24 {offsets = [0, 16], sizes = [8, 16], strides = [1, 1]} : vector<8x64xf32> to vector<8x16xf32>
    %43 = vector.extract_strided_slice %25 {offsets = [0, 16], sizes = [8, 16], strides = [1, 1]} : vector<8x64xf32> to vector<8x16xf32>
    %cst_16 = arith.constant dense<0.000000e+00> : vector<8x8xf32>
    %44 = tpu.matmul %42, %43, %cst_16 {dimension_numbers = #tpu.dot_dimension_numbers<[1], [1], [0], [0], [0, 0, 1, 0], [], []>} : vector<8x16xf32>, vector<8x16xf32>, vector<8x8xf32> -> vector<8x8xf32>
    %cst_17 = arith.constant 2.500000e-01 : f32
    %45 = vector.broadcast %cst_17 : f32 to vector<8x8xf32>
    %46 = arith.mulf %44, %45 : vector<8x8xf32>
    %47 = arith.addf %46, %27 : vector<8x8xf32>
    %48 = math.exp %47 : vector<8x8xf32>
    %cst_18 = arith.constant dense<0.000000e+00> : vector<8xf32>
    %49 = vector.multi_reduction <add>, %48, %cst_18 [1] : vector<8x8xf32> to vector<8xf32>
    %50 = vector.shape_cast %49 : vector<8xf32> to vector<8x1xf32>
    %51 = tpu.reciprocal %50 {approx = true} : vector<8x1xf32> -> vector<8x1xf32>
    %52 = vector.broadcast %51 : vector<8x1xf32> to vector<8x8xf32>
    %53 = arith.mulf %48, %52 : vector<8x8xf32>
    %54 = vector.extract_strided_slice %26 {offsets = [0, 16], sizes = [8, 16], strides = [1, 1]} : vector<8x64xf32> to vector<8x16xf32>
    %cst_19 = arith.constant dense<0.000000e+00> : vector<8x16xf32>
    %55 = tpu.matmul %53, %54, %cst_19 {dimension_numbers = #tpu.dot_dimension_numbers<[1], [0], [0], [1], [0, 0, 1, 1], [], []>} : vector<8x8xf32>, vector<8x16xf32>, vector<8x16xf32> -> vector<8x16xf32>
    %56 = vector.extract_strided_slice %24 {offsets = [0, 32], sizes = [8, 16], strides = [1, 1]} : vector<8x64xf32> to vector<8x16xf32>
    %57 = vector.extract_strided_slice %25 {offsets = [0, 32], sizes = [8, 16], strides = [1, 1]} : vector<8x64xf32> to vector<8x16xf32>
    %cst_20 = arith.constant dense<0.000000e+00> : vector<8x8xf32>
    %58 = tpu.matmul %56, %57, %cst_20 {dimension_numbers = #tpu.dot_dimension_numbers<[1], [1], [0], [0], [0, 0, 1, 0], [], []>} : vector<8x16xf32>, vector<8x16xf32>, vector<8x8xf32> -> vector<8x8xf32>
    %cst_21 = arith.constant 2.500000e-01 : f32
    %59 = vector.broadcast %cst_21 : f32 to vector<8x8xf32>
    %60 = arith.mulf %58, %59 : vector<8x8xf32>
    %61 = arith.addf %60, %27 : vector<8x8xf32>
    %62 = math.exp %61 : vector<8x8xf32>
    %cst_22 = arith.constant dense<0.000000e+00> : vector<8xf32>
    %63 = vector.multi_reduction <add>, %62, %cst_22 [1] : vector<8x8xf32> to vector<8xf32>
    %64 = vector.shape_cast %63 : vector<8xf32> to vector<8x1xf32>
    %65 = tpu.reciprocal %64 {approx = true} : vector<8x1xf32> -> vector<8x1xf32>
    %66 = vector.broadcast %65 : vector<8x1xf32> to vector<8x8xf32>
    %67 = arith.mulf %62, %66 : vector<8x8xf32>
    %68 = vector.extract_strided_slice %26 {offsets = [0, 32], sizes = [8, 16], strides = [1, 1]} : vector<8x64xf32> to vector<8x16xf32>
    %cst_23 = arith.constant dense<0.000000e+00> : vector<8x16xf32>
    %69 = tpu.matmul %67, %68, %cst_23 {dimension_numbers = #tpu.dot_dimension_numbers<[1], [0], [0], [1], [0, 0, 1, 1], [], []>} : vector<8x8xf32>, vector<8x16xf32>, vector<8x16xf32> -> vector<8x16xf32>
    %70 = vector.extract_strided_slice %24 {offsets = [0, 48], sizes = [8, 16], strides = [1, 1]} : vector<8x64xf32> to vector<8x16xf32>
    %71 = vector.extract_strided_slice %25 {offsets = [0, 48], sizes = [8, 16], strides = [1, 1]} : vector<8x64xf32> to vector<8x16xf32>
    %cst_24 = arith.constant dense<0.000000e+00> : vector<8x8xf32>
    %72 = tpu.matmul %70, %71, %cst_24 {dimension_numbers = #tpu.dot_dimension_numbers<[1], [1], [0], [0], [0, 0, 1, 0], [], []>} : vector<8x16xf32>, vector<8x16xf32>, vector<8x8xf32> -> vector<8x8xf32>
    %cst_25 = arith.constant 2.500000e-01 : f32
    %73 = vector.broadcast %cst_25 : f32 to vector<8x8xf32>
    %74 = arith.mulf %72, %73 : vector<8x8xf32>
    %75 = arith.addf %74, %27 : vector<8x8xf32>
    %76 = math.exp %75 : vector<8x8xf32>
    %cst_26 = arith.constant dense<0.000000e+00> : vector<8xf32>
    %77 = vector.multi_reduction <add>, %76, %cst_26 [1] : vector<8x8xf32> to vector<8xf32>
    %78 = vector.shape_cast %77 : vector<8xf32> to vector<8x1xf32>
    %79 = tpu.reciprocal %78 {approx = true} : vector<8x1xf32> -> vector<8x1xf32>
    %80 = vector.broadcast %79 : vector<8x1xf32> to vector<8x8xf32>
    %81 = arith.mulf %76, %80 : vector<8x8xf32>
    %82 = vector.extract_strided_slice %26 {offsets = [0, 48], sizes = [8, 16], strides = [1, 1]} : vector<8x64xf32> to vector<8x16xf32>
    %cst_27 = arith.constant dense<0.000000e+00> : vector<8x16xf32>
    %83 = tpu.matmul %81, %82, %cst_27 {dimension_numbers = #tpu.dot_dimension_numbers<[1], [0], [0], [1], [0, 0, 1, 1], [], []>} : vector<8x8xf32>, vector<8x16xf32>, vector<8x16xf32> -> vector<8x16xf32>
    %84 = tpu.concatenate %41, %55, %69, %83 in 1 : vector<8x16xf32>, vector<8x16xf32>, vector<8x16xf32>, vector<8x16xf32> -> vector<8x64xf32>
    %85 = vector.extract_strided_slice %17 {offsets = [8, 0], sizes = [8, 64], strides = [1, 1]} : vector<16x64xf32> to vector<8x64xf32>
    %86 = vector.extract_strided_slice %20 {offsets = [8, 0], sizes = [8, 64], strides = [1, 1]} : vector<16x64xf32> to vector<8x64xf32>
    %87 = vector.extract_strided_slice %23 {offsets = [8, 0], sizes = [8, 64], strides = [1, 1]} : vector<16x64xf32> to vector<8x64xf32>
    %88 = vector.extract_strided_slice %2 {offsets = [8, 0], sizes = [8, 8], strides = [1, 1]} : vector<16x8xf32> to vector<8x8xf32>
    %89 = vector.extract_strided_slice %85 {offsets = [0, 0], sizes = [8, 16], strides = [1, 1]} : vector<8x64xf32> to vector<8x16xf32>
    %90 = vector.extract_strided_slice %86 {offsets = [0, 0], sizes = [8, 16], strides = [1, 1]} : vector<8x64xf32> to vector<8x16xf32>
    %cst_28 = arith.constant dense<0.000000e+00> : vector<8x8xf32>
    %91 = tpu.matmul %89, %90, %cst_28 {dimension_numbers = #tpu.dot_dimension_numbers<[1], [1], [0], [0], [0, 0, 1, 0], [], []>} : vector<8x16xf32>, vector<8x16xf32>, vector<8x8xf32> -> vector<8x8xf32>
    %cst_29 = arith.constant 2.500000e-01 : f32
    %92 = vector.broadcast %cst_29 : f32 to vector<8x8xf32>
    %93 = arith.mulf %91, %92 : vector<8x8xf32>
    %94 = arith.addf %93, %88 : vector<8x8xf32>
    %95 = math.exp %94 : vector<8x8xf32>
    %cst_30 = arith.constant dense<0.000000e+00> : vector<8xf32>
    %96 = vector.multi_reduction <add>, %95, %cst_30 [1] : vector<8x8xf32> to vector<8xf32>
    %97 = vector.shape_cast %96 : vector<8xf32> to vector<8x1xf32>
    %98 = tpu.reciprocal %97 {approx = true} : vector<8x1xf32> -> vector<8x1xf32>
    %99 = vector.broadcast %98 : vector<8x1xf32> to vector<8x8xf32>
    %100 = arith.mulf %95, %99 : vector<8x8xf32>
    %101 = vector.extract_strided_slice %87 {offsets = [0, 0], sizes = [8, 16], strides = [1, 1]} : vector<8x64xf32> to vector<8x16xf32>
    %cst_31 = arith.constant dense<0.000000e+00> : vector<8x16xf32>
    %102 = tpu.matmul %100, %101, %cst_31 {dimension_numbers = #tpu.dot_dimension_numbers<[1], [0], [0], [1], [0, 0, 1, 1], [], []>} : vector<8x8xf32>, vector<8x16xf32>, vector<8x16xf32> -> vector<8x16xf32>
    %103 = vector.extract_strided_slice %85 {offsets = [0, 16], sizes = [8, 16], strides = [1, 1]} : vector<8x64xf32> to vector<8x16xf32>
    %104 = vector.extract_strided_slice %86 {offsets = [0, 16], sizes = [8, 16], strides = [1, 1]} : vector<8x64xf32> to vector<8x16xf32>
    %cst_32 = arith.constant dense<0.000000e+00> : vector<8x8xf32>
    %105 = tpu.matmul %103, %104, %cst_32 {dimension_numbers = #tpu.dot_dimension_numbers<[1], [1], [0], [0], [0, 0, 1, 0], [], []>} : vector<8x16xf32>, vector<8x16xf32>, vector<8x8xf32> -> vector<8x8xf32>
    %cst_33 = arith.constant 2.500000e-01 : f32
    %106 = vector.broadcast %cst_33 : f32 to vector<8x8xf32>
    %107 = arith.mulf %105, %106 : vector<8x8xf32>
    %108 = arith.addf %107, %88 : vector<8x8xf32>
    %109 = math.exp %108 : vector<8x8xf32>
    %cst_34 = arith.constant dense<0.000000e+00> : vector<8xf32>
    %110 = vector.multi_reduction <add>, %109, %cst_34 [1] : vector<8x8xf32> to vector<8xf32>
    %111 = vector.shape_cast %110 : vector<8xf32> to vector<8x1xf32>
    %112 = tpu.reciprocal %111 {approx = true} : vector<8x1xf32> -> vector<8x1xf32>
    %113 = vector.broadcast %112 : vector<8x1xf32> to vector<8x8xf32>
    %114 = arith.mulf %109, %113 : vector<8x8xf32>
    %115 = vector.extract_strided_slice %87 {offsets = [0, 16], sizes = [8, 16], strides = [1, 1]} : vector<8x64xf32> to vector<8x16xf32>
    %cst_35 = arith.constant dense<0.000000e+00> : vector<8x16xf32>
    %116 = tpu.matmul %114, %115, %cst_35 {dimension_numbers = #tpu.dot_dimension_numbers<[1], [0], [0], [1], [0, 0, 1, 1], [], []>} : vector<8x8xf32>, vector<8x16xf32>, vector<8x16xf32> -> vector<8x16xf32>
    %117 = vector.extract_strided_slice %85 {offsets = [0, 32], sizes = [8, 16], strides = [1, 1]} : vector<8x64xf32> to vector<8x16xf32>
    %118 = vector.extract_strided_slice %86 {offsets = [0, 32], sizes = [8, 16], strides = [1, 1]} : vector<8x64xf32> to vector<8x16xf32>
    %cst_36 = arith.constant dense<0.000000e+00> : vector<8x8xf32>
    %119 = tpu.matmul %117, %118, %cst_36 {dimension_numbers = #tpu.dot_dimension_numbers<[1], [1], [0], [0], [0, 0, 1, 0], [], []>} : vector<8x16xf32>, vector<8x16xf32>, vector<8x8xf32> -> vector<8x8xf32>
    %cst_37 = arith.constant 2.500000e-01 : f32
    %120 = vector.broadcast %cst_37 : f32 to vector<8x8xf32>
    %121 = arith.mulf %119, %120 : vector<8x8xf32>
    %122 = arith.addf %121, %88 : vector<8x8xf32>
    %123 = math.exp %122 : vector<8x8xf32>
    %cst_38 = arith.constant dense<0.000000e+00> : vector<8xf32>
    %124 = vector.multi_reduction <add>, %123, %cst_38 [1] : vector<8x8xf32> to vector<8xf32>
    %125 = vector.shape_cast %124 : vector<8xf32> to vector<8x1xf32>
    %126 = tpu.reciprocal %125 {approx = true} : vector<8x1xf32> -> vector<8x1xf32>
    %127 = vector.broadcast %126 : vector<8x1xf32> to vector<8x8xf32>
    %128 = arith.mulf %123, %127 : vector<8x8xf32>
    %129 = vector.extract_strided_slice %87 {offsets = [0, 32], sizes = [8, 16], strides = [1, 1]} : vector<8x64xf32> to vector<8x16xf32>
    %cst_39 = arith.constant dense<0.000000e+00> : vector<8x16xf32>
    %130 = tpu.matmul %128, %129, %cst_39 {dimension_numbers = #tpu.dot_dimension_numbers<[1], [0], [0], [1], [0, 0, 1, 1], [], []>} : vector<8x8xf32>, vector<8x16xf32>, vector<8x16xf32> -> vector<8x16xf32>
    %131 = vector.extract_strided_slice %85 {offsets = [0, 48], sizes = [8, 16], strides = [1, 1]} : vector<8x64xf32> to vector<8x16xf32>
    %132 = vector.extract_strided_slice %86 {offsets = [0, 48], sizes = [8, 16], strides = [1, 1]} : vector<8x64xf32> to vector<8x16xf32>
    %cst_40 = arith.constant dense<0.000000e+00> : vector<8x8xf32>
    %133 = tpu.matmul %131, %132, %cst_40 {dimension_numbers = #tpu.dot_dimension_numbers<[1], [1], [0], [0], [0, 0, 1, 0], [], []>} : vector<8x16xf32>, vector<8x16xf32>, vector<8x8xf32> -> vector<8x8xf32>
    %cst_41 = arith.constant 2.500000e-01 : f32
    %134 = vector.broadcast %cst_41 : f32 to vector<8x8xf32>
    %135 = arith.mulf %133, %134 : vector<8x8xf32>
    %136 = arith.addf %135, %88 : vector<8x8xf32>
    %137 = math.exp %136 : vector<8x8xf32>
    %cst_42 = arith.constant dense<0.000000e+00> : vector<8xf32>
    %138 = vector.multi_reduction <add>, %137, %cst_42 [1] : vector<8x8xf32> to vector<8xf32>
    %139 = vector.shape_cast %138 : vector<8xf32> to vector<8x1xf32>
    %140 = tpu.reciprocal %139 {approx = true} : vector<8x1xf32> -> vector<8x1xf32>
    %141 = vector.broadcast %140 : vector<8x1xf32> to vector<8x8xf32>
    %142 = arith.mulf %137, %141 : vector<8x8xf32>
    %143 = vector.extract_strided_slice %87 {offsets = [0, 48], sizes = [8, 16], strides = [1, 1]} : vector<8x64xf32> to vector<8x16xf32>
    %cst_43 = arith.constant dense<0.000000e+00> : vector<8x16xf32>
    %144 = tpu.matmul %142, %143, %cst_43 {dimension_numbers = #tpu.dot_dimension_numbers<[1], [0], [0], [1], [0, 0, 1, 1], [], []>} : vector<8x8xf32>, vector<8x16xf32>, vector<8x16xf32> -> vector<8x16xf32>
    %145 = tpu.concatenate %102, %116, %130, %144 in 1 : vector<8x16xf32>, vector<8x16xf32>, vector<8x16xf32>, vector<8x16xf32> -> vector<8x64xf32>
    %146 = tpu.concatenate %84, %145 in 0 : vector<8x64xf32>, vector<8x64xf32> -> vector<16x64xf32>
    %147 = arith.truncf %146 : vector<16x64xf32> to vector<16x64xbf16>
    %148 = vector.extract_strided_slice %11 {offsets = [0, 192], sizes = [64, 64], strides = [1, 1]} : vector<64x256xbf16> to vector<64x64xbf16>
    %cst_44 = arith.constant dense<0.000000e+00> : vector<16x64xf32>
    %149 = tpu.matmul %147, %148, %cst_44 {dimension_numbers = #tpu.dot_dimension_numbers<[1], [0], [0], [1], [0, 0, 1, 1], [], []>} : vector<16x64xbf16>, vector<64x64xbf16>, vector<16x64xf32> -> vector<16x64xf32>
    %150 = vector.broadcast %8 : vector<1x64xf32> to vector<16x64xf32>
    %151 = arith.addf %149, %150 : vector<16x64xf32>
    %152 = vector.extract_strided_slice %151 {offsets = [0, 0], sizes = [8, 64], strides = [1, 1]} : vector<16x64xf32> to vector<8x64xf32>
    %cst_45 = arith.constant dense<0.000000e+00> : vector<64xf32>
    %153 = vector.multi_reduction <add>, %152, %cst_45 [0] : vector<8x64xf32> to vector<64xf32>
    %154 = vector.shape_cast %153 : vector<64xf32> to vector<1x64xf32>
    %cst_46 = arith.constant 8.000000e+00 : f32
    %155 = vector.broadcast %cst_46 : f32 to vector<1x64xf32>
    %156 = arith.divf %154, %155 : vector<1x64xf32>
    %157 = vector.extract_strided_slice %151 {offsets = [8, 0], sizes = [8, 64], strides = [1, 1]} : vector<16x64xf32> to vector<8x64xf32>
    %cst_47 = arith.constant dense<0.000000e+00> : vector<64xf32>
    %158 = vector.multi_reduction <add>, %157, %cst_47 [0] : vector<8x64xf32> to vector<64xf32>
    %159 = vector.shape_cast %158 : vector<64xf32> to vector<1x64xf32>
    %cst_48 = arith.constant 8.000000e+00 : f32
    %160 = vector.broadcast %cst_48 : f32 to vector<1x64xf32>
    %161 = arith.divf %159, %160 : vector<1x64xf32>
    %162 = tpu.concatenate %156, %161 in 0 : vector<1x64xf32>, vector<1x64xf32> -> vector<2x64xf32>
    %163 = arith.truncf %162 : vector<2x64xf32> to vector<2x64xbf16>
    %c0_49 = arith.constant 0 : index
    %c0_50 = arith.constant 0 : index
    %164 = vector.load %arg3[%c0_49, %c0_50] : memref<64x128xbf16, #tpu.memory_space<vmem>>, vector<64x128xbf16>
    %cst_51 = arith.constant dense<0.000000e+00> : vector<2x128xf32>
    %165 = tpu.matmul %163, %164, %cst_51 {dimension_numbers = #tpu.dot_dimension_numbers<[1], [0], [0], [1], [0, 0, 1, 1], [], []>} : vector<2x64xbf16>, vector<64x128xbf16>, vector<2x128xf32> -> vector<2x128xf32>
    %166 = vector.broadcast %9 : vector<1x128xf32> to vector<2x128xf32>
    %167 = arith.addf %165, %166 : vector<2x128xf32>
    %168 = vector.extract_strided_slice %167 {offsets = [0, 0], sizes = [2, 64], strides = [1, 1]} : vector<2x128xf32> to vector<2x64xf32>
    %169 = vector.extract_strided_slice %167 {offsets = [0, 64], sizes = [2, 64], strides = [1, 1]} : vector<2x128xf32> to vector<2x64xf32>
    %170 = arith.truncf %167 : vector<2x128xf32> to vector<2x128xbf16>
    %c0_52 = arith.constant 0 : index
    %c0_53 = arith.constant 0 : index
    %171 = vector.load %arg4[%c0_52, %c0_53] : memref<128x128xbf16, #tpu.memory_space<vmem>>, vector<128x128xbf16>
    %cst_54 = arith.constant dense<0.000000e+00> : vector<2x128xf32>
    %172 = tpu.matmul %170, %171, %cst_54 {dimension_numbers = #tpu.dot_dimension_numbers<[1], [0], [0], [1], [0, 0, 1, 1], [], []>} : vector<2x128xbf16>, vector<128x128xbf16>, vector<2x128xf32> -> vector<2x128xf32>
    %173 = vector.broadcast %10 : vector<1x128xf32> to vector<2x128xf32>
    %174 = arith.addf %172, %173 : vector<2x128xf32>
    %175 = vector.extract_strided_slice %168 {offsets = [0, 0], sizes = [1, 64], strides = [1, 1]} : vector<2x64xf32> to vector<1x64xf32>
    %176 = vector.shape_cast %175 : vector<1x64xf32> to vector<1x64xf32>
    %177 = vector.broadcast %176 : vector<1x64xf32> to vector<8x64xf32>
    %178 = vector.extract_strided_slice %168 {offsets = [1, 0], sizes = [1, 64], strides = [1, 1]} : vector<2x64xf32> to vector<1x64xf32>
    %179 = vector.shape_cast %178 : vector<1x64xf32> to vector<1x64xf32>
    %180 = vector.broadcast %179 : vector<1x64xf32> to vector<8x64xf32>
    %181 = tpu.concatenate %177, %180 in 0 : vector<8x64xf32>, vector<8x64xf32> -> vector<16x64xf32>
    %182 = vector.extract_strided_slice %169 {offsets = [0, 0], sizes = [1, 64], strides = [1, 1]} : vector<2x64xf32> to vector<1x64xf32>
    %183 = vector.shape_cast %182 : vector<1x64xf32> to vector<1x64xf32>
    %184 = vector.broadcast %183 : vector<1x64xf32> to vector<8x64xf32>
    %185 = vector.extract_strided_slice %169 {offsets = [1, 0], sizes = [1, 64], strides = [1, 1]} : vector<2x64xf32> to vector<1x64xf32>
    %186 = vector.shape_cast %185 : vector<1x64xf32> to vector<1x64xf32>
    %187 = vector.broadcast %186 : vector<1x64xf32> to vector<8x64xf32>
    %188 = tpu.concatenate %184, %187 in 0 : vector<8x64xf32>, vector<8x64xf32> -> vector<16x64xf32>
    %189 = arith.subf %181, %0 : vector<16x64xf32>
    %190 = vector.broadcast %3 : vector<16x1xf32> to vector<16x64xf32>
    %191 = arith.mulf %190, %189 : vector<16x64xf32>
    %192 = arith.addf %0, %191 : vector<16x64xf32>
    %193 = arith.subf %188, %192 : vector<16x64xf32>
    %194 = vector.broadcast %4 : vector<16x1xf32> to vector<16x64xf32>
    %195 = arith.mulf %194, %193 : vector<16x64xf32>
    %196 = arith.addf %192, %195 : vector<16x64xf32>
    %197 = arith.subf %188, %0 : vector<16x64xf32>
    %198 = vector.broadcast %4 : vector<16x1xf32> to vector<16x64xf32>
    %199 = arith.mulf %198, %197 : vector<16x64xf32>
    %200 = arith.addf %0, %199 : vector<16x64xf32>
    %201 = arith.subf %181, %200 : vector<16x64xf32>
    %202 = vector.broadcast %3 : vector<16x1xf32> to vector<16x64xf32>
    %203 = arith.mulf %202, %201 : vector<16x64xf32>
    %204 = arith.addf %200, %203 : vector<16x64xf32>
    %c0_55 = arith.constant 0 : index
    %c0_56 = arith.constant 0 : index
    %205 = vector.load %arg5[%c0_55, %c0_56] : memref<64x512xbf16, #tpu.memory_space<vmem>>, vector<64x512xbf16>
    %c0_57 = arith.constant 0 : index
    %c0_58 = arith.constant 0 : index
    %206 = vector.load %arg6[%c0_57, %c0_58] : memref<256x128xbf16, #tpu.memory_space<vmem>>, vector<256x128xbf16>
    %207 = vector.extract_strided_slice %205 {offsets = [0, 0], sizes = [64, 256], strides = [1, 1]} : vector<64x512xbf16> to vector<64x256xbf16>
    %208 = vector.extract_strided_slice %206 {offsets = [0, 0], sizes = [256, 64], strides = [1, 1]} : vector<256x128xbf16> to vector<256x64xbf16>
    %c0_59 = arith.constant 0 : index
    %c512 = arith.constant 512 : index
    %209 = vector.load %arg8[%c0_59, %c512] : memref<1x1536xf32, #tpu.memory_space<vmem>>, vector<1x256xf32>
    %c0_60 = arith.constant 0 : index
    %c768 = arith.constant 768 : index
    %210 = vector.load %arg8[%c0_60, %c768] : memref<1x1536xf32, #tpu.memory_space<vmem>>, vector<1x64xf32>
    %c0_61 = arith.constant 0 : index
    %c832 = arith.constant 832 : index
    %211 = vector.load %arg8[%c0_61, %c832] : memref<1x1536xf32, #tpu.memory_space<vmem>>, vector<1x64xf32>
    %c0_62 = arith.constant 0 : index
    %c896 = arith.constant 896 : index
    %212 = vector.load %arg8[%c0_62, %c896] : memref<1x1536xf32, #tpu.memory_space<vmem>>, vector<1x64xf32>
    %213 = arith.truncf %196 : vector<16x64xf32> to vector<16x64xbf16>
    %cst_63 = arith.constant dense<0.000000e+00> : vector<16x256xf32>
    %214 = tpu.matmul %213, %207, %cst_63 {dimension_numbers = #tpu.dot_dimension_numbers<[1], [0], [0], [1], [0, 0, 1, 1], [], []>} : vector<16x64xbf16>, vector<64x256xbf16>, vector<16x256xf32> -> vector<16x256xf32>
    %215 = vector.broadcast %209 : vector<1x256xf32> to vector<16x256xf32>
    %216 = arith.addf %214, %215 : vector<16x256xf32>
    %cst_64 = arith.constant 5.000000e-01 : f32
    %217 = vector.broadcast %cst_64 : f32 to vector<16x256xf32>
    %218 = arith.mulf %217, %216 : vector<16x256xf32>
    %cst_65 = arith.constant 4.471500e-02 : f32
    %219 = vector.broadcast %cst_65 : f32 to vector<16x256xf32>
    %220 = arith.mulf %219, %216 : vector<16x256xf32>
    %221 = arith.mulf %220, %216 : vector<16x256xf32>
    %222 = arith.mulf %221, %216 : vector<16x256xf32>
    %223 = arith.addf %216, %222 : vector<16x256xf32>
    %cst_66 = arith.constant 0.797884583 : f32
    %224 = vector.broadcast %cst_66 : f32 to vector<16x256xf32>
    %225 = arith.mulf %224, %223 : vector<16x256xf32>
    %226 = math.tanh %225 : vector<16x256xf32>
    %cst_67 = arith.constant 1.000000e+00 : f32
    %227 = vector.broadcast %cst_67 : f32 to vector<16x256xf32>
    %228 = arith.addf %227, %226 : vector<16x256xf32>
    %229 = arith.mulf %218, %228 : vector<16x256xf32>
    %230 = arith.truncf %229 : vector<16x256xf32> to vector<16x256xbf16>
    %cst_68 = arith.constant dense<0.000000e+00> : vector<16x64xf32>
    %231 = tpu.matmul %230, %208, %cst_68 {dimension_numbers = #tpu.dot_dimension_numbers<[1], [0], [0], [1], [0, 0, 1, 1], [], []>} : vector<16x256xbf16>, vector<256x64xbf16>, vector<16x64xf32> -> vector<16x64xf32>
    %232 = vector.broadcast %210 : vector<1x64xf32> to vector<16x64xf32>
    %233 = arith.addf %231, %232 : vector<16x64xf32>
    %234 = arith.addf %233, %196 : vector<16x64xf32>
    %cst_69 = arith.constant dense<0.000000e+00> : vector<16xf32>
    %235 = vector.multi_reduction <add>, %234, %cst_69 [1] : vector<16x64xf32> to vector<16xf32>
    %236 = vector.shape_cast %235 : vector<16xf32> to vector<16x1xf32>
    %cst_70 = arith.constant 6.400000e+01 : f32
    %237 = vector.broadcast %cst_70 : f32 to vector<16x1xf32>
    %238 = arith.divf %236, %237 : vector<16x1xf32>
    %239 = vector.broadcast %238 : vector<16x1xf32> to vector<16x64xf32>
    %240 = arith.subf %234, %239 : vector<16x64xf32>
    %241 = arith.mulf %240, %240 : vector<16x64xf32>
    %cst_71 = arith.constant dense<0.000000e+00> : vector<16xf32>
    %242 = vector.multi_reduction <add>, %241, %cst_71 [1] : vector<16x64xf32> to vector<16xf32>
    %243 = vector.shape_cast %242 : vector<16xf32> to vector<16x1xf32>
    %cst_72 = arith.constant 6.400000e+01 : f32
    %244 = vector.broadcast %cst_72 : f32 to vector<16x1xf32>
    %245 = arith.divf %243, %244 : vector<16x1xf32>
    %246 = vector.broadcast %238 : vector<16x1xf32> to vector<16x64xf32>
    %247 = arith.subf %234, %246 : vector<16x64xf32>
    %cst_73 = arith.constant 9.99999996E-13 : f32
    %248 = vector.broadcast %cst_73 : f32 to vector<16x1xf32>
    %249 = arith.addf %245, %248 : vector<16x1xf32>
    %250 = math.rsqrt %249 : vector<16x1xf32>
    %251 = vector.broadcast %250 : vector<16x1xf32> to vector<16x64xf32>
    %252 = arith.mulf %247, %251 : vector<16x64xf32>
    %253 = vector.broadcast %211 : vector<1x64xf32> to vector<16x64xf32>
    %254 = arith.mulf %252, %253 : vector<16x64xf32>
    %255 = vector.broadcast %212 : vector<1x64xf32> to vector<16x64xf32>
    %256 = arith.addf %254, %255 : vector<16x64xf32>
    %257 = vector.extract_strided_slice %205 {offsets = [0, 256], sizes = [64, 256], strides = [1, 1]} : vector<64x512xbf16> to vector<64x256xbf16>
    %258 = vector.extract_strided_slice %206 {offsets = [0, 64], sizes = [256, 64], strides = [1, 1]} : vector<256x128xbf16> to vector<256x64xbf16>
    %c0_74 = arith.constant 0 : index
    %c960 = arith.constant 960 : index
    %259 = vector.load %arg8[%c0_74, %c960] : memref<1x1536xf32, #tpu.memory_space<vmem>>, vector<1x256xf32>
    %c0_75 = arith.constant 0 : index
    %c1216 = arith.constant 1216 : index
    %260 = vector.load %arg8[%c0_75, %c1216] : memref<1x1536xf32, #tpu.memory_space<vmem>>, vector<1x64xf32>
    %c0_76 = arith.constant 0 : index
    %c1280 = arith.constant 1280 : index
    %261 = vector.load %arg8[%c0_76, %c1280] : memref<1x1536xf32, #tpu.memory_space<vmem>>, vector<1x64xf32>
    %c0_77 = arith.constant 0 : index
    %c1344 = arith.constant 1344 : index
    %262 = vector.load %arg8[%c0_77, %c1344] : memref<1x1536xf32, #tpu.memory_space<vmem>>, vector<1x64xf32>
    %263 = arith.truncf %204 : vector<16x64xf32> to vector<16x64xbf16>
    %cst_78 = arith.constant dense<0.000000e+00> : vector<16x256xf32>
    %264 = tpu.matmul %263, %257, %cst_78 {dimension_numbers = #tpu.dot_dimension_numbers<[1], [0], [0], [1], [0, 0, 1, 1], [], []>} : vector<16x64xbf16>, vector<64x256xbf16>, vector<16x256xf32> -> vector<16x256xf32>
    %265 = vector.broadcast %259 : vector<1x256xf32> to vector<16x256xf32>
    %266 = arith.addf %264, %265 : vector<16x256xf32>
    %cst_79 = arith.constant 5.000000e-01 : f32
    %267 = vector.broadcast %cst_79 : f32 to vector<16x256xf32>
    %268 = arith.mulf %267, %266 : vector<16x256xf32>
    %cst_80 = arith.constant 4.471500e-02 : f32
    %269 = vector.broadcast %cst_80 : f32 to vector<16x256xf32>
    %270 = arith.mulf %269, %266 : vector<16x256xf32>
    %271 = arith.mulf %270, %266 : vector<16x256xf32>
    %272 = arith.mulf %271, %266 : vector<16x256xf32>
    %273 = arith.addf %266, %272 : vector<16x256xf32>
    %cst_81 = arith.constant 0.797884583 : f32
    %274 = vector.broadcast %cst_81 : f32 to vector<16x256xf32>
    %275 = arith.mulf %274, %273 : vector<16x256xf32>
    %276 = math.tanh %275 : vector<16x256xf32>
    %cst_82 = arith.constant 1.000000e+00 : f32
    %277 = vector.broadcast %cst_82 : f32 to vector<16x256xf32>
    %278 = arith.addf %277, %276 : vector<16x256xf32>
    %279 = arith.mulf %268, %278 : vector<16x256xf32>
    %280 = arith.truncf %279 : vector<16x256xf32> to vector<16x256xbf16>
    %cst_83 = arith.constant dense<0.000000e+00> : vector<16x64xf32>
    %281 = tpu.matmul %280, %258, %cst_83 {dimension_numbers = #tpu.dot_dimension_numbers<[1], [0], [0], [1], [0, 0, 1, 1], [], []>} : vector<16x256xbf16>, vector<256x64xbf16>, vector<16x64xf32> -> vector<16x64xf32>
    %282 = vector.broadcast %260 : vector<1x64xf32> to vector<16x64xf32>
    %283 = arith.addf %281, %282 : vector<16x64xf32>
    %284 = arith.addf %283, %204 : vector<16x64xf32>
    %cst_84 = arith.constant dense<0.000000e+00> : vector<16xf32>
    %285 = vector.multi_reduction <add>, %284, %cst_84 [1] : vector<16x64xf32> to vector<16xf32>
    %286 = vector.shape_cast %285 : vector<16xf32> to vector<16x1xf32>
    %cst_85 = arith.constant 6.400000e+01 : f32
    %287 = vector.broadcast %cst_85 : f32 to vector<16x1xf32>
    %288 = arith.divf %286, %287 : vector<16x1xf32>
    %289 = vector.broadcast %288 : vector<16x1xf32> to vector<16x64xf32>
    %290 = arith.subf %284, %289 : vector<16x64xf32>
    %291 = arith.mulf %290, %290 : vector<16x64xf32>
    %cst_86 = arith.constant dense<0.000000e+00> : vector<16xf32>
    %292 = vector.multi_reduction <add>, %291, %cst_86 [1] : vector<16x64xf32> to vector<16xf32>
    %293 = vector.shape_cast %292 : vector<16xf32> to vector<16x1xf32>
    %cst_87 = arith.constant 6.400000e+01 : f32
    %294 = vector.broadcast %cst_87 : f32 to vector<16x1xf32>
    %295 = arith.divf %293, %294 : vector<16x1xf32>
    %296 = vector.broadcast %288 : vector<16x1xf32> to vector<16x64xf32>
    %297 = arith.subf %284, %296 : vector<16x64xf32>
    %cst_88 = arith.constant 9.99999996E-13 : f32
    %298 = vector.broadcast %cst_88 : f32 to vector<16x1xf32>
    %299 = arith.addf %295, %298 : vector<16x1xf32>
    %300 = math.rsqrt %299 : vector<16x1xf32>
    %301 = vector.broadcast %300 : vector<16x1xf32> to vector<16x64xf32>
    %302 = arith.mulf %297, %301 : vector<16x64xf32>
    %303 = vector.broadcast %261 : vector<1x64xf32> to vector<16x64xf32>
    %304 = arith.mulf %302, %303 : vector<16x64xf32>
    %305 = vector.broadcast %262 : vector<1x64xf32> to vector<16x64xf32>
    %306 = arith.addf %304, %305 : vector<16x64xf32>
    %c0_89 = arith.constant 0 : index
    %c1408 = arith.constant 1408 : index
    %307 = vector.load %arg8[%c0_89, %c1408] : memref<1x1536xf32, #tpu.memory_space<vmem>>, vector<1x128xf32>
    %c0_90 = arith.constant 0 : index
    %c0_91 = arith.constant 0 : index
    %308 = vector.load %arg7[%c0_90, %c0_91] : memref<64x128xbf16, #tpu.memory_space<vmem>>, vector<64x128xbf16>
    %309 = arith.truncf %256 : vector<16x64xf32> to vector<16x64xbf16>
    %310 = vector.extract_strided_slice %308 {offsets = [0, 0], sizes = [64, 64], strides = [1, 1]} : vector<64x128xbf16> to vector<64x64xbf16>
    %cst_92 = arith.constant dense<0.000000e+00> : vector<16x64xf32>
    %311 = tpu.matmul %309, %310, %cst_92 {dimension_numbers = #tpu.dot_dimension_numbers<[1], [0], [0], [1], [0, 0, 1, 1], [], []>} : vector<16x64xbf16>, vector<64x64xbf16>, vector<16x64xf32> -> vector<16x64xf32>
    %312 = arith.truncf %306 : vector<16x64xf32> to vector<16x64xbf16>
    %313 = vector.extract_strided_slice %308 {offsets = [0, 64], sizes = [64, 64], strides = [1, 1]} : vector<64x128xbf16> to vector<64x64xbf16>
    %cst_93 = arith.constant dense<0.000000e+00> : vector<16x64xf32>
    %314 = tpu.matmul %312, %313, %cst_93 {dimension_numbers = #tpu.dot_dimension_numbers<[1], [0], [0], [1], [0, 0, 1, 1], [], []>} : vector<16x64xbf16>, vector<64x64xbf16>, vector<16x64xf32> -> vector<16x64xf32>
    %315 = tpu.concatenate %311, %314 in 1 : vector<16x64xf32>, vector<16x64xf32> -> vector<16x128xf32>
    %316 = vector.broadcast %307 : vector<1x128xf32> to vector<16x128xf32>
    %317 = arith.addf %315, %316 : vector<16x128xf32>
    %c0_94 = arith.constant 0 : index
    %c0_95 = arith.constant 0 : index
    %318 = vector.load %arg9[%c0_94, %c0_95] : memref<16x128xf32, #tpu.memory_space<vmem>>, vector<16x128xf32>
    tpu.vector_store %arg9[%c0_94, %c0_95], %317 {strides = array<i32>} : memref<16x128xf32, #tpu.memory_space<vmem>>, vector<16x128xf32>,
    %319 = tpu.concatenate %256, %306 in 1 : vector<16x64xf32>, vector<16x64xf32> -> vector<16x128xf32>
    %c0_96 = arith.constant 0 : index
    %c0_97 = arith.constant 0 : index
    %320 = vector.load %arg10[%c0_96, %c0_97] : memref<16x128xf32, #tpu.memory_space<vmem>>, vector<16x128xf32>
    tpu.vector_store %arg10[%c0_96, %c0_97], %319 {strides = array<i32>} : memref<16x128xf32, #tpu.memory_space<vmem>>, vector<16x128xf32>,
    %321 = tpu.concatenate %167, %174 in 1 : vector<2x128xf32>, vector<2x128xf32> -> vector<2x256xf32>
    %c0_98 = arith.constant 0 : index
    %c0_99 = arith.constant 0 : index
    %322 = vector.load %arg11[%c0_98, %c0_99] : memref<2x256xf32, #tpu.memory_space<vmem>>, vector<2x256xf32>
    tpu.vector_store %arg11[%c0_98, %c0_99], %321 {strides = array<i32>} : memref<2x256xf32, #tpu.memory_space<vmem>>, vector<2x256xf32>,
    return
  }
}

</mosaic_0001>

<llo_original>
// kernel: step_1_forward.1
$region0: #{step_1_forward.1}
  #allocation0 [shape = 'u32[]', space=smem, size = 0x4, offset = 0x4, fixed_abs, tag = 'smem constant byte address 0x4 - core index']
  #allocation1 [shape = 'u32[144,128]{1,0:T(1,128)}', space=vmem, size = 0x12000, scoped, tag = 'internal scratch']
  %s0 = inlined_call_operand.vmem [shape: f32[16,64], index: 0, kind: input, shape index: {}]
  %s1 = inlined_call_operand.vmem [shape: f32[16,16], index: 1, kind: input, shape index: {}]
  %s2 = inlined_call_operand.hbm [shape: bf16[64,256], index: 2, kind: input, shape index: {}]
  %s3 = inlined_call_operand.vmem [shape: bf16[64,128], index: 3, kind: input, shape index: {}]
  %s4 = inlined_call_operand.hbm [shape: bf16[128,128], index: 4, kind: input, shape index: {}]
  %s5 = inlined_call_operand.vmem [shape: bf16[64,512], index: 5, kind: input, shape index: {}]
  %s6 = inlined_call_operand.hbm [shape: bf16[256,128], index: 6, kind: input, shape index: {}]
  %s7 = inlined_call_operand.hbm [shape: bf16[64,128], index: 7, kind: input, shape index: {}]
  %s8 = inlined_call_operand.hbm [shape: f32[1,1536], index: 8, kind: input, shape index: {}]
  %s9 = inlined_call_operand.vmem [shape: f32[16,128], index: 9, kind: output, shape index: {0}]
  %s10 = inlined_call_operand.vmem [shape: f32[16,128], index: 10, kind: output, shape index: {1}]
  %s11 = inlined_call_operand.vmem [shape: f32[2,256], index: 11, kind: output, shape index: {2}]
  %12 = xla_tuple %s9, %s10, %s11
  %s13 = sld [smem:[#allocation0]]
  $region82: #{step_1_forward.1} parent=0
    _
  %s15 = ssub.s32 1, %s13
  %s16 = scalar_select 0, %s15, %s13
  $region1: #{step_1_forward.1} parent=0
    #allocation2 [shape = 'u8[32768]{0}', space=vmem, size = 0x8000, scoped, tag = 'input window, operand 2, single buffered']
    #allocation3 [shape = 's32[1]{0}', space=sflag, size = 0x4, scoped, tag = 'scoped memory for step_1_forward.1']
    #allocation4 [shape = 'u8[32768]{0}', space=vmem, size = 0x8000, scoped, tag = 'input window, operand 4, single buffered']
    #allocation5 [shape = 's32[1]{0}', space=sflag, size = 0x4, scoped, tag = 'scoped memory for step_1_forward.1']
    #allocation6 [shape = 'u8[65536]{0}', space=vmem, size = 0x10000, scoped, tag = 'input window, operand 6, single buffered']
    #allocation7 [shape = 'u8[16384]{0}', space=vmem, size = 0x4000, scoped, tag = 'input window, operand 7, single buffered']
    #allocation8 [shape = 's32[1]{0}', space=sflag, size = 0x4, scoped, tag = 'scoped memory for step_1_forward.1']
    #allocation9 [shape = 'u8[6144]{0}', space=vmem, size = 0x1800, scoped, tag = 'input window, operand 8, single buffered']
    %17 = vsyncpa [#allocation3], 0
    %18 = vsyncpa [#allocation5], 0
    %19 = vsyncpa [#allocation8], 0
    // Predicated region
    $region2: #{step_1_forward.1} parent=1 // pred_check
      _
    $region3: #{step_1_forward.1} parent=1 // pred_check_branch
      %21 = sbr.rel (0) target = $region5
    $region4: #{step_1_forward.1} parent=1 // pred_region
      _
    $region5: #{step_1_forward.1} parent=1 // pred_fallthru
      _
    // Predicated region
    $region6: #{step_1_forward.1} parent=1 // pred_check
      _
    $region7: #{step_1_forward.1} parent=1 // pred_check_branch
      %23 = sbr.rel (0) target = $region9
    $region8: #{step_1_forward.1} parent=1 // pred_region
      _
    $region9: #{step_1_forward.1} parent=1 // pred_fallthru
      _
    // Predicated region
    $region10: #{step_1_forward.1} parent=1 // pred_check
      _
    $region11: #{step_1_forward.1} parent=1 // pred_check_branch
      %25 = sbr.rel (0) target = $region13
    $region12: #{step_1_forward.1} parent=1 // pred_region
      %s27 = ssub.s32 1024, 1024
      %28 = vsyncadd [#allocation3], %s27
      %s29 = sshll.u32 [#allocation2], 4
      %s30 = int_to_ptr.vmem [resolvable:$true] %s29
      %35 = dma.hbm_to_vmem [thread:$0]  %s2, 1024, %s30, [#allocation3], 128, 128, 8
    $region13: #{step_1_forward.1} parent=1 // pred_fallthru
      _
    // Predicated region
    $region14: #{step_1_forward.1} parent=1 // pred_check
      _
    $region15: #{step_1_forward.1} parent=1 // pred_check_branch
      %37 = sbr.rel (0) target = $region17
    $region16: #{step_1_forward.1} parent=1 // pred_region
      _
    $region17: #{step_1_forward.1} parent=1 // pred_fallthru
      _
    // Predicated region
    $region18: #{step_1_forward.1} parent=1 // pred_check
      _
    $region19: #{step_1_forward.1} parent=1 // pred_check_branch
      %39 = sbr.rel (0) target = $region21
    $region20: #{step_1_forward.1} parent=1 // pred_region
      %s41 = ssub.s32 1024, 1024
      %42 = vsyncadd [#allocation5], %s41
      %s43 = sshll.u32 [#allocation4], 4
      %s44 = int_to_ptr.vmem [resolvable:$true] %s43
      %49 = dma.hbm_to_vmem [thread:$0]  %s4, 1024, %s44, [#allocation5], 64, 64, 4
    $region21: #{step_1_forward.1} parent=1 // pred_fallthru
      _
    // Predicated region
    $region22: #{step_1_forward.1} parent=1 // pred_check
      _
    $region23: #{step_1_forward.1} parent=1 // pred_check_branch
      %51 = sbr.rel (0) target = $region25
    $region24: #{step_1_forward.1} parent=1 // pred_region
      _
    $region25: #{step_1_forward.1} parent=1 // pred_fallthru
      _
    // Predicated region
    $region26: #{step_1_forward.1} parent=1 // pred_check
      _
    $region27: #{step_1_forward.1} parent=1 // pred_check_branch
      %53 = sbr.rel (0) target = $region29
    $region28: #{step_1_forward.1} parent=1 // pred_region
      %s55 = ssub.s32 2048, 2048
      %56 = vsyncadd [#allocation5], %s55
      %s57 = sshll.u32 [#allocation6], 4
      %s58 = int_to_ptr.vmem [resolvable:$true] %s57
      %63 = dma.hbm_to_vmem [thread:$0]  %s6, 2048, %s58, [#allocation5], 64, 64, 4
    $region29: #{step_1_forward.1} parent=1 // pred_fallthru
      _
    // Predicated region
    $region30: #{step_1_forward.1} parent=1 // pred_check
      _
    $region31: #{step_1_forward.1} parent=1 // pred_check_branch
      %65 = sbr.rel (0) target = $region33
    $region32: #{step_1_forward.1} parent=1 // pred_region
      %s67 = ssub.s32 512, 512
      %68 = vsyncadd [#allocation8], %s67
      %s69 = sshll.u32 [#allocation7], 4
      %s70 = int_to_ptr.vmem [resolvable:$true] %s69
      %75 = dma.hbm_to_vmem [thread:$0]  %s7, 512, %s70, [#allocation8], 64, 64, 4
    $region33: #{step_1_forward.1} parent=1 // pred_fallthru
      _
    // Predicated region
    $region34: #{step_1_forward.1} parent=1 // pred_check
      _
    $region35: #{step_1_forward.1} parent=1 // pred_check_branch
      %77 = sbr.rel (0) target = $region37
    $region36: #{step_1_forward.1} parent=1 // pred_region
      %s79 = ssub.s32 192, 192
      %80 = vsyncadd [#allocation8], %s79
      %s82 = sshll.u32 [#allocation9], 4
      %s83 = int_to_ptr.vmem [resolvable:$true] %s82
      %85 = dma.hbm_to_vmem [thread:$0]  %s8, 192, %s83, [#allocation8]
    $region37: #{step_1_forward.1} parent=1 // pred_fallthru
      _
    // Predicated region
    $region38: #{step_1_forward.1} parent=1 // pred_check
      _
    $region39: #{step_1_forward.1} parent=1 // pred_check_branch
      %87 = sbr.rel (0) target = $region41
    $region40: #{step_1_forward.1} parent=1 // pred_region
      %88 = dma.done [#allocation3], 1024
    $region41: #{step_1_forward.1} parent=1 // pred_fallthru
      _
    // Predicated region
    $region42: #{step_1_forward.1} parent=1 // pred_check
      _
    $region43: #{step_1_forward.1} parent=1 // pred_check_branch
      %90 = sbr.rel (0) target = $region45
    $region44: #{step_1_forward.1} parent=1 // pred_region
      %91 = dma.done [#allocation5], 1024
    $region45: #{step_1_forward.1} parent=1 // pred_fallthru
      _
    // Predicated region
    $region46: #{step_1_forward.1} parent=1 // pred_check
      _
    $region47: #{step_1_forward.1} parent=1 // pred_check_branch
      %93 = sbr.rel (0) target = $region49
    $region48: #{step_1_forward.1} parent=1 // pred_region
      %94 = dma.done [#allocation5], 2048
    $region49: #{step_1_forward.1} parent=1 // pred_fallthru
      _
    // Predicated region
    $region50: #{step_1_forward.1} parent=1 // pred_check
      _
    $region51: #{step_1_forward.1} parent=1 // pred_check_branch
      %96 = sbr.rel (0) target = $region53
    $region52: #{step_1_forward.1} parent=1 // pred_region
      %97 = dma.done [#allocation8], 512
    $region53: #{step_1_forward.1} parent=1 // pred_fallthru
      _
    // Predicated region
    $region54: #{step_1_forward.1} parent=1 // pred_check
      _
    $region55: #{step_1_forward.1} parent=1 // pred_check_branch
      %99 = sbr.rel (0) target = $region57
    $region56: #{step_1_forward.1} parent=1 // pred_region
      %100 = dma.done [#allocation8], 192
    $region57: #{step_1_forward.1} parent=1 // pred_fallthru
      _
    %v102 = vld [vmem:[%s0] sm:$0xff]
    %v103 = vld [vmem:[%s0 + $0x8] sm:$0xff]
    %v104 = vld [vmem:[%s1] sm:$0xff]
    %v105 = vld [vmem:[%s1 + $0x8] sm:$0xff]
    %v106 = vld [vmem:[#allocation9] sm:$0x1]
    %v107 = vld [vmem:[#allocation9 + $0x1] sm:$0x1]
    %v108 = vld [vmem:[#allocation9 + $0x2] sm:$0x1]
    %v109 = vld [vmem:[#allocation9 + $0x3] sm:$0x1]
    %v110 = vld [vmem:[#allocation2] sm:$0xff]
    %v111 = vld [vmem:[#allocation2 + $0x8] sm:$0xff]
    %v112 = vld [vmem:[#allocation2 + $0x10] sm:$0xff]
    %v113 = vld [vmem:[#allocation2 + $0x18] sm:$0xff]
    %v114 = vld [vmem:[#allocation2 + $0x20] sm:$0xff]
    %v115 = vld [vmem:[#allocation2 + $0x28] sm:$0xff]
    %v116 = vld [vmem:[#allocation2 + $0x30] sm:$0xff]
    %v117 = vld [vmem:[#allocation2 + $0x38] sm:$0xff]
    %v118 = vpack.c.bf16 %v103, %v102
    %v127 = vunpack.c.l.b16 %v110
    %v128 = vunpack.c.h.b16 %v110
    %v129 = vunpack.c.l.b16 %v111
    %v130 = vunpack.c.h.b16 %v111
    %v131 = vunpack.c.l.b16 %v112
    %v132 = vunpack.c.h.b16 %v112
    %v133 = vunpack.c.l.b16 %v113
    %v134 = vunpack.c.h.b16 %v113
    %v135 = vunpack.c.l.b16 %v114
    %v136 = vunpack.c.h.b16 %v114
    %v137 = vunpack.c.l.b16 %v115
    %v138 = vunpack.c.h.b16 %v115
    %v139 = vunpack.c.l.b16 %v116
    %v140 = vunpack.c.h.b16 %v116
    %v141 = vunpack.c.l.b16 %v117
    %v142 = vunpack.c.h.b16 %v117
    %v143 = vpack.c.b16 %v129, %v127
    %v144 = vpack.c.b16 %v130, %v128
    %v145 = vpack.c.b16 %v133, %v131
    %v146 = vpack.c.b16 %v134, %v132
    %v147 = vpack.c.b16 %v137, %v135
    %v148 = vpack.c.b16 %v138, %v136
    %v149 = vpack.c.b16 %v141, %v139
    %v150 = vpack.c.b16 %v142, %v140
    %vm159 = vcmask 523264
    %v161 = vsel %vm159, %v118, 0
    %163 = vmatprep.subr.bf16.mxu0 0
    %164 = vmatpush1.bf16.msra.mxu0 0
    %165 = vmatprep.subr.bf16.mxu0 0
    %166 = vmatpush1.bf16.msra.mxu0 0
    %167 = vmatprep.subr.bf16.mxu0 0
    %168 = vmatpush1.bf16.msra.mxu0 0
    %169 = vmatprep.subr.bf16.mxu0 0
    %170 = vmatpush1.bf16.msra.mxu0 0
    %171 = vmatprep.subr.bf16.mxu0 %v150
    %172 = vmatpush1.bf16.msra.mxu0 %v149
    %173 = vmatprep.subr.bf16.mxu0 %v148
    %174 = vmatpush1.bf16.msra.mxu0 %v147
    %175 = vmatprep.subr.bf16.mxu0 %v146
    %176 = vmatpush1.bf16.msra.mxu0 %v145
    %177 = vmatprep.subr.bf16.mxu0 %v144
    %178 = vmatpush1.bf16.msra.mxu0 %v143
    %179 = vmatprep.subr.bf16.mxu0 0
    %180 = vmatpush2.bf16.msra.mxu0 0
    %181 = vmatprep.subr.bf16.mxu0 0
    %182 = vmatpush2.bf16.msra.mxu0 0
    %183 = vmatprep.subr.bf16.mxu0 0
    %184 = vmatpush2.bf16.msra.mxu0 0
    %185 = vmatprep.subr.bf16.mxu0 0
    %186 = vmatpush2.bf16.msra.mxu0 0
    %187 = vmatprep.subr.bf16.mxu0 0
    %188 = vmatpush2.bf16.msra.mxu0 0
    %189 = vmatprep.subr.bf16.mxu0 0
    %190 = vmatpush2.bf16.msra.mxu0 0
    %191 = vmatprep.subr.bf16.mxu0 0
    %192 = vmatpush2.bf16.msra.mxu0 0
    %193 = vmatprep.subr.bf16.mxu0 0
    %194 = vmatpush2.bf16.msra.mxu0 0
    %195 = vmatprep.mubr.bf16.mxu0 0
    %196 = vmatmul.mubr.bf16.gmra.mxu0 %v161
    %v197 = vpop.f32.mrf.mxu0
    %v198 = vadd.f32 0.0, %v197
    %v199 = vpop.f32.mrf.mxu0
    %v200 = vadd.f32 0.0, %v199
    %v201 = vpop.f32.mrf.mxu0
    %v202 = vadd.f32 0.0, %v201
    %v203 = vpop.f32.mrf.mxu0
    %v204 = vadd.f32 0.0, %v203
    %205 = vdwg.mxu0
    %v207 = vlaneseq
    %v208 = vshrl.u32 %v207, 7
    %v209 = vsub.s32 0, %v208
    %v210 = vrot.slane %v106, %v209
    %v212 = vadd.f32 %v198, %v210
    %v213 = vadd.f32 %v202, %v210
    %v215 = vlaneseq
    %v216 = vshrl.u32 %v215, 7
    %v217 = vsub.s32 0, %v216
    %v218 = vrot.slane %v107, %v217
    %v220 = vadd.f32 %v200, %v218
    %v221 = vadd.f32 %v204, %v218
    %223 = vrot.lane.b32.xlu0 %v212, 64
    %v224 = vpop.permute.xlu0 %223
    %vm225 = vcmask 130048
    %v226 = vsel %vm225, %v212, 0
    %v228 = vsel %vm225, %v224, 0
    %230 = vmatprep.subr.mxu0 0.0
    %231 = vmatpush1.xpose.msra.mxu0 0.0
    %232 = vmatprep.subr.mxu0 0.0
    %233 = vmatpush1.xpose.msra.mxu0 0.0
    %234 = vmatprep.subr.mxu0 0.0
    %235 = vmatpush1.xpose.msra.mxu0 0.0
    %236 = vmatprep.subr.mxu0 0.0
    %237 = vmatpush1.xpose.msra.mxu0 0.0
    %238 = vmatprep.subr.mxu0 0.0
    %239 = vmatpush1.xpose.msra.mxu0 0.0
    %240 = vmatprep.subr.mxu0 0.0
    %241 = vmatpush1.xpose.msra.mxu0 0.0
    %242 = vmatprep.subr.mxu0 0.0
    %243 = vmatpush1.xpose.msra.mxu0 0.0
    %244 = vmatprep.subr.mxu0 0.0
    %245 = vmatpush1.xpose.msra.mxu0 0.0
    %246 = vmatprep.subr.mxu0 0.0
    %247 = vmatpush1.xpose.msra.mxu0 0.0
    %248 = vmatprep.subr.mxu0 0.0
    %249 = vmatpush1.xpose.msra.mxu0 0.0
    %250 = vmatprep.subr.mxu0 0.0
    %251 = vmatpush1.xpose.msra.mxu0 0.0
    %252 = vmatprep.subr.mxu0 0.0
    %253 = vmatpush1.xpose.msra.mxu0 0.0
    %254 = vmatprep.subr.mxu0 0.0
    %255 = vmatpush1.xpose.msra.mxu0 0.0
    %256 = vmatprep.subr.mxu0 0.0
    %257 = vmatpush1.xpose.msra.mxu0 0.0
    %258 = vmatprep.subr.mxu0 0.0
    %259 = vmatpush1.xpose.msra.mxu0 0.0
    %260 = vmatprep.subr.mxu0 0.0
    %261 = vmatpush1.xpose.msra.mxu0 %v228
    %262 = vmatprep.subr.mxu0 0.0
    %263 = vmatpush2.xpose.msra.mxu0 0.0
    %264 = vmatprep.subr.mxu0 0.0
    %265 = vmatpush2.xpose.msra.mxu0 0.0
    %266 = vmatprep.subr.mxu0 0.0
    %267 = vmatpush2.xpose.msra.mxu0 0.0
    %268 = vmatprep.subr.mxu0 0.0
    %269 = vmatpush2.xpose.msra.mxu0 0.0
    %270 = vmatprep.subr.mxu0 0.0
    %271 = vmatpush2.xpose.msra.mxu0 0.0
    %272 = vmatprep.subr.mxu0 0.0
    %273 = vmatpush2.xpose.msra.mxu0 0.0
    %274 = vmatprep.subr.mxu0 0.0
    %275 = vmatpush2.xpose.msra.mxu0 0.0
    %276 = vmatprep.subr.mxu0 0.0
    %277 = vmatpush2.xpose.msra.mxu0 0.0
    %278 = vmatprep.subr.mxu0 0.0
    %279 = vmatpush2.xpose.msra.mxu0 0.0
    %280 = vmatprep.subr.mxu0 0.0
    %281 = vmatpush2.xpose.msra.mxu0 0.0
    %282 = vmatprep.subr.mxu0 0.0
    %283 = vmatpush2.xpose.msra.mxu0 0.0
    %284 = vmatprep.subr.mxu0 0.0
    %285 = vmatpush2.xpose.msra.mxu0 0.0
    %286 = vmatprep.subr.mxu0 0.0
    %287 = vmatpush2.xpose.msra.mxu0 0.0
    %288 = vmatprep.subr.mxu0 0.0
    %289 = vmatpush2.xpose.msra.mxu0 0.0
    %290 = vmatprep.subr.mxu0 0.0
    %291 = vmatpush2.xpose.msra.mxu0 0.0
    %292 = vmatprep.subr.mxu0 0.0
    %293 = vmatpush2.xpose.msra.mxu0 0.0
    %294 = vmatprep.mubr.f32.mxu0 0.0
    %295 = vmatmul.mubr.f32.gmra.mxu0 %v226
    %v296 = vpop.f32.mrf.mxu0
    %v297 = vadd.f32 0.0, %v296
    %v298 = vpop.f32.mrf.mxu0
    %299 = vdwg.mxu0
    %v300 = vmul.f32 %v297, 0.25
    %v301 = vadd.f32 %v300, %v104
    %v302 = vmul.f32 %v301, 1.442695
    %v303 = vpow.pop %v302
    %vm304 = vcmask 64512
    %v305 = vsel %vm304, %v303, 0.0
    %306 = vadd.xlane.f32.xlu0 %v305
    %v307 = vpop.xlane.xlu0 %306
    %v308 = vrcp.pop %v307
    %v309 = vmul.f32 %v303, %v308
    %v311 = vsel %vm304, %v309, 0
    %313 = vmatprep.subr.mxu0 0.0
    %314 = vmatpush1.msra.mxu0 0.0
    %315 = vmatprep.subr.mxu0 0.0
    %316 = vmatpush1.msra.mxu0 0.0
    %317 = vmatprep.subr.mxu0 0.0
    %318 = vmatpush1.msra.mxu0 0.0
    %319 = vmatprep.subr.mxu0 0.0
    %320 = vmatpush1.msra.mxu0 0.0
    %321 = vmatprep.subr.mxu0 0.0
    %322 = vmatpush1.msra.mxu0 0.0
    %323 = vmatprep.subr.mxu0 0.0
    %324 = vmatpush1.msra.mxu0 0.0
    %325 = vmatprep.subr.mxu0 0.0
    %326 = vmatpush1.msra.mxu0 0.0
    %327 = vmatprep.subr.mxu0 0.0
    %328 = vmatpush1.msra.mxu0 0.0
    %329 = vmatprep.subr.mxu0 0.0
    %330 = vmatpush1.msra.mxu0 0.0
    %331 = vmatprep.subr.mxu0 0.0
    %332 = vmatpush1.msra.mxu0 0.0
    %333 = vmatprep.subr.mxu0 0.0
    %334 = vmatpush1.msra.mxu0 0.0
    %335 = vmatprep.subr.mxu0 0.0
    %336 = vmatpush1.msra.mxu0 0.0
    %337 = vmatprep.subr.mxu0 0.0
    %338 = vmatpush1.msra.mxu0 0.0
    %339 = vmatprep.subr.mxu0 0.0
    %340 = vmatpush1.msra.mxu0 0.0
    %341 = vmatprep.subr.mxu0 0.0
    %342 = vmatpush1.msra.mxu0 0.0
    %343 = vmatprep.subr.mxu0 0.0
    %344 = vmatpush1.msra.mxu0 %v220
    %345 = vmatprep.subr.mxu0 0.0
    %346 = vmatpush2.msra.mxu0 0.0
    %347 = vmatprep.subr.mxu0 0.0
    %348 = vmatpush2.msra.mxu0 0.0
    %349 = vmatprep.subr.mxu0 0.0
    %350 = vmatpush2.msra.mxu0 0.0
    %351 = vmatprep.subr.mxu0 0.0
    %352 = vmatpush2.msra.mxu0 0.0
    %353 = vmatprep.subr.mxu0 0.0
    %354 = vmatpush2.msra.mxu0 0.0
    %355 = vmatprep.subr.mxu0 0.0
    %356 = vmatpush2.msra.mxu0 0.0
    %357 = vmatprep.subr.mxu0 0.0
    %358 = vmatpush2.msra.mxu0 0.0
    %359 = vmatprep.subr.mxu0 0.0
    %360 = vmatpush2.msra.mxu0 0.0
    %361 = vmatprep.subr.mxu0 0.0
    %362 = vmatpush2.msra.mxu0 0.0
    %363 = vmatprep.subr.mxu0 0.0
    %364 = vmatpush2.msra.mxu0 0.0
    %365 = vmatprep.subr.mxu0 0.0
    %366 = vmatpush2.msra.mxu0 0.0
    %367 = vmatprep.subr.mxu0 0.0
    %368 = vmatpush2.msra.mxu0 0.0
    %369 = vmatprep.subr.mxu0 0.0
    %370 = vmatpush2.msra.mxu0 0.0
    %371 = vmatprep.subr.mxu0 0.0
    %372 = vmatpush2.msra.mxu0 0.0
    %373 = vmatprep.subr.mxu0 0.0
    %374 = vmatpush2.msra.mxu0 0.0
    %375 = vmatprep.subr.mxu0 0.0
    %376 = vmatpush2.msra.mxu0 0.0
    %377 = vmatprep.mubr.f32.mxu0 0.0
    %378 = vmatmul.mubr.f32.gmra.mxu0 %v311
    %v379 = vpop.f32.mrf.mxu0
    %v380 = vadd.f32 0.0, %v379
    %v381 = vpop.f32.mrf.mxu0
    %382 = vdwg.mxu0
    %383 = vrot.lane.b32.xlu0 %v212, 112
    %v384 = vpop.permute.xlu0 %383
    %385 = vrot.lane.b32.xlu0 %v212, 48
    %v386 = vpop.permute.xlu0 %385
    %v387 = vsel %vm225, %v384, 0
    %v389 = vsel %vm225, %v386, 0
    %391 = vmatprep.subr.mxu0 0.0
    %392 = vmatpush1.xpose.msra.mxu0 0.0
    %393 = vmatprep.subr.mxu0 0.0
    %394 = vmatpush1.xpose.msra.mxu0 0.0
    %395 = vmatprep.subr.mxu0 0.0
    %396 = vmatpush1.xpose.msra.mxu0 0.0
    %397 = vmatprep.subr.mxu0 0.0
    %398 = vmatpush1.xpose.msra.mxu0 0.0
    %399 = vmatprep.subr.mxu0 0.0
    %400 = vmatpush1.xpose.msra.mxu0 0.0
    %401 = vmatprep.subr.mxu0 0.0
    %402 = vmatpush1.xpose.msra.mxu0 0.0
    %403 = vmatprep.subr.mxu0 0.0
    %404 = vmatpush1.xpose.msra.mxu0 0.0
    %405 = vmatprep.subr.mxu0 0.0
    %406 = vmatpush1.xpose.msra.mxu0 0.0
    %407 = vmatprep.subr.mxu0 0.0
    %408 = vmatpush1.xpose.msra.mxu0 0.0
    %409 = vmatprep.subr.mxu0 0.0
    %410 = vmatpush1.xpose.msra.mxu0 0.0
    %411 = vmatprep.subr.mxu0 0.0
    %412 = vmatpush1.xpose.msra.mxu0 0.0
    %413 = vmatprep.subr.mxu0 0.0
    %414 = vmatpush1.xpose.msra.mxu0 0.0
    %415 = vmatprep.subr.mxu0 0.0
    %416 = vmatpush1.xpose.msra.mxu0 0.0
    %417 = vmatprep.subr.mxu0 0.0
    %418 = vmatpush1.xpose.msra.mxu0 0.0
    %419 = vmatprep.subr.mxu0 0.0
    %420 = vmatpush1.xpose.msra.mxu0 0.0
    %421 = vmatprep.subr.mxu0 0.0
    %422 = vmatpush1.xpose.msra.mxu0 %v389
    %423 = vmatprep.subr.mxu0 0.0
    %424 = vmatpush2.xpose.msra.mxu0 0.0
    %425 = vmatprep.subr.mxu0 0.0
    %426 = vmatpush2.xpose.msra.mxu0 0.0
    %427 = vmatprep.subr.mxu0 0.0
    %428 = vmatpush2.xpose.msra.mxu0 0.0
    %429 = vmatprep.subr.mxu0 0.0
    %430 = vmatpush2.xpose.msra.mxu0 0.0
    %431 = vmatprep.subr.mxu0 0.0
    %432 = vmatpush2.xpose.msra.mxu0 0.0
    %433 = vmatprep.subr.mxu0 0.0
    %434 = vmatpush2.xpose.msra.mxu0 0.0
    %435 = vmatprep.subr.mxu0 0.0
    %436 = vmatpush2.xpose.msra.mxu0 0.0
    %437 = vmatprep.subr.mxu0 0.0
    %438 = vmatpush2.xpose.msra.mxu0 0.0
    %439 = vmatprep.subr.mxu0 0.0
    %440 = vmatpush2.xpose.msra.mxu0 0.0
    %441 = vmatprep.subr.mxu0 0.0
    %442 = vmatpush2.xpose.msra.mxu0 0.0
    %443 = vmatprep.subr.mxu0 0.0
    %444 = vmatpush2.xpose.msra.mxu0 0.0
    %445 = vmatprep.subr.mxu0 0.0
    %446 = vmatpush2.xpose.msra.mxu0 0.0
    %447 = vmatprep.subr.mxu0 0.0
    %448 = vmatpush2.xpose.msra.mxu0 0.0
    %449 = vmatprep.subr.mxu0 0.0
    %450 = vmatpush2.xpose.msra.mxu0 0.0
    %451 = vmatprep.subr.mxu0 0.0
    %452 = vmatpush2.xpose.msra.mxu0 0.0
    %453 = vmatprep.subr.mxu0 0.0
    %454 = vmatpush2.xpose.msra.mxu0 0.0
    %455 = vmatprep.mubr.f32.mxu0 0.0
    %456 = vmatmul.mubr.f32.gmra.mxu0 %v387
    %v457 = vpop.f32.mrf.mxu0
    %v458 = vadd.f32 0.0, %v457
    %v459 = vpop.f32.mrf.mxu0
    %460 = vdwg.mxu0
    %v461 = vmul.f32 %v458, 0.25
    %v462 = vadd.f32 %v461, %v104
    %v463 = vmul.f32 %v462, 1.442695
    %v464 = vpow.pop %v463
    %v465 = vsel %vm304, %v464, 0.0
    %466 = vadd.xlane.f32.xlu0 %v465
    %v467 = vpop.xlane.xlu0 %466
    %v468 = vrcp.pop %v467
    %v469 = vmul.f32 %v464, %v468
    %471 = vrot.lane.b32.xlu0 %v220, 112
    %v472 = vpop.permute.xlu0 %471
    %v475 = vsel %vm304, %v469, 0
    %477 = vmatprep.subr.mxu0 0.0
    %478 = vmatpush1.msra.mxu0 0.0
    %479 = vmatprep.subr.mxu0 0.0
    %480 = vmatpush1.msra.mxu0 0.0
    %481 = vmatprep.subr.mxu0 0.0
    %482 = vmatpush1.msra.mxu0 0.0
    %483 = vmatprep.subr.mxu0 0.0
    %484 = vmatpush1.msra.mxu0 0.0
    %485 = vmatprep.subr.mxu0 0.0
    %486 = vmatpush1.msra.mxu0 0.0
    %487 = vmatprep.subr.mxu0 0.0
    %488 = vmatpush1.msra.mxu0 0.0
    %489 = vmatprep.subr.mxu0 0.0
    %490 = vmatpush1.msra.mxu0 0.0
    %491 = vmatprep.subr.mxu0 0.0
    %492 = vmatpush1.msra.mxu0 0.0
    %493 = vmatprep.subr.mxu0 0.0
    %494 = vmatpush1.msra.mxu0 0.0
    %495 = vmatprep.subr.mxu0 0.0
    %496 = vmatpush1.msra.mxu0 0.0
    %497 = vmatprep.subr.mxu0 0.0
    %498 = vmatpush1.msra.mxu0 0.0
    %499 = vmatprep.subr.mxu0 0.0
    %500 = vmatpush1.msra.mxu0 0.0
    %501 = vmatprep.subr.mxu0 0.0
    %502 = vmatpush1.msra.mxu0 0.0
    %503 = vmatprep.subr.mxu0 0.0
    %504 = vmatpush1.msra.mxu0 0.0
    %505 = vmatprep.subr.mxu0 0.0
    %506 = vmatpush1.msra.mxu0 0.0
    %507 = vmatprep.subr.mxu0 0.0
    %508 = vmatpush1.msra.mxu0 %v472
    %509 = vmatprep.subr.mxu0 0.0
    %510 = vmatpush2.msra.mxu0 0.0
    %511 = vmatprep.subr.mxu0 0.0
    %512 = vmatpush2.msra.mxu0 0.0
    %513 = vmatprep.subr.mxu0 0.0
    %514 = vmatpush2.msra.mxu0 0.0
    %515 = vmatprep.subr.mxu0 0.0
    %516 = vmatpush2.msra.mxu0 0.0
    %517 = vmatprep.subr.mxu0 0.0
    %518 = vmatpush2.msra.mxu0 0.0
    %519 = vmatprep.subr.mxu0 0.0
    %520 = vmatpush2.msra.mxu0 0.0
    %521 = vmatprep.subr.mxu0 0.0
    %522 = vmatpush2.msra.mxu0 0.0
    %523 = vmatprep.subr.mxu0 0.0
    %524 = vmatpush2.msra.mxu0 0.0
    %525 = vmatprep.subr.mxu0 0.0
    %526 = vmatpush2.msra.mxu0 0.0
    %527 = vmatprep.subr.mxu0 0.0
    %528 = vmatpush2.msra.mxu0 0.0
    %529 = vmatprep.subr.mxu0 0.0
    %530 = vmatpush2.msra.mxu0 0.0
    %531 = vmatprep.subr.mxu0 0.0
    %532 = vmatpush2.msra.mxu0 0.0
    %533 = vmatprep.subr.mxu0 0.0
    %534 = vmatpush2.msra.mxu0 0.0
    %535 = vmatprep.subr.mxu0 0.0
    %536 = vmatpush2.msra.mxu0 0.0
    %537 = vmatprep.subr.mxu0 0.0
    %538 = vmatpush2.msra.mxu0 0.0
    %539 = vmatprep.subr.mxu0 0.0
    %540 = vmatpush2.msra.mxu0 0.0
    %541 = vmatprep.mubr.f32.mxu0 0.0
    %542 = vmatmul.mubr.f32.gmra.mxu0 %v475
    %v543 = vpop.f32.mrf.mxu0
    %v544 = vadd.f32 0.0, %v543
    %v545 = vpop.f32.mrf.mxu0
    %546 = vdwg.mxu0
    %547 = vrot.lane.b32.xlu0 %v212, 96
    %v548 = vpop.permute.xlu0 %547
    %549 = vrot.lane.b32.xlu0 %v212, 32
    %v550 = vpop.permute.xlu0 %549
    %v551 = vsel %vm225, %v548, 0
    %v553 = vsel %vm225, %v550, 0
    %555 = vmatprep.subr.mxu0 0.0
    %556 = vmatpush1.xpose.msra.mxu0 0.0
    %557 = vmatprep.subr.mxu0 0.0
    %558 = vmatpush1.xpose.msra.mxu0 0.0
    %559 = vmatprep.subr.mxu0 0.0
    %560 = vmatpush1.xpose.msra.mxu0 0.0
    %561 = vmatprep.subr.mxu0 0.0
    %562 = vmatpush1.xpose.msra.mxu0 0.0
    %563 = vmatprep.subr.mxu0 0.0
    %564 = vmatpush1.xpose.msra.mxu0 0.0
    %565 = vmatprep.subr.mxu0 0.0
    %566 = vmatpush1.xpose.msra.mxu0 0.0
    %567 = vmatprep.subr.mxu0 0.0
    %568 = vmatpush1.xpose.msra.mxu0 0.0
    %569 = vmatprep.subr.mxu0 0.0
    %570 = vmatpush1.xpose.msra.mxu0 0.0
    %571 = vmatprep.subr.mxu0 0.0
    %572 = vmatpush1.xpose.msra.mxu0 0.0
    %573 = vmatprep.subr.mxu0 0.0
    %574 = vmatpush1.xpose.msra.mxu0 0.0
    %575 = vmatprep.subr.mxu0 0.0
    %576 = vmatpush1.xpose.msra.mxu0 0.0
    %577 = vmatprep.subr.mxu0 0.0
    %578 = vmatpush1.xpose.msra.mxu0 0.0
    %579 = vmatprep.subr.mxu0 0.0
    %580 = vmatpush1.xpose.msra.mxu0 0.0
    %581 = vmatprep.subr.mxu0 0.0
    %582 = vmatpush1.xpose.msra.mxu0 0.0
    %583 = vmatprep.subr.mxu0 0.0
    %584 = vmatpush1.xpose.msra.mxu0 0.0
    %585 = vmatprep.subr.mxu0 0.0
    %586 = vmatpush1.xpose.msra.mxu0 %v553
    %587 = vmatprep.subr.mxu0 0.0
    %588 = vmatpush2.xpose.msra.mxu0 0.0
    %589 = vmatprep.subr.mxu0 0.0
    %590 = vmatpush2.xpose.msra.mxu0 0.0
    %591 = vmatprep.subr.mxu0 0.0
    %592 = vmatpush2.xpose.msra.mxu0 0.0
    %593 = vmatprep.subr.mxu0 0.0
    %594 = vmatpush2.xpose.msra.mxu0 0.0
    %595 = vmatprep.subr.mxu0 0.0
    %596 = vmatpush2.xpose.msra.mxu0 0.0
    %597 = vmatprep.subr.mxu0 0.0
    %598 = vmatpush2.xpose.msra.mxu0 0.0
    %599 = vmatprep.subr.mxu0 0.0
    %600 = vmatpush2.xpose.msra.mxu0 0.0
    %601 = vmatprep.subr.mxu0 0.0
    %602 = vmatpush2.xpose.msra.mxu0 0.0
    %603 = vmatprep.subr.mxu0 0.0
    %604 = vmatpush2.xpose.msra.mxu0 0.0
    %605 = vmatprep.subr.mxu0 0.0
    %606 = vmatpush2.xpose.msra.mxu0 0.0
    %607 = vmatprep.subr.mxu0 0.0
    %608 = vmatpush2.xpose.msra.mxu0 0.0
    %609 = vmatprep.subr.mxu0 0.0
    %610 = vmatpush2.xpose.msra.mxu0 0.0
    %611 = vmatprep.subr.mxu0 0.0
    %612 = vmatpush2.xpose.msra.mxu0 0.0
    %613 = vmatprep.subr.mxu0 0.0
    %614 = vmatpush2.xpose.msra.mxu0 0.0
    %615 = vmatprep.subr.mxu0 0.0
    %616 = vmatpush2.xpose.msra.mxu0 0.0
    %617 = vmatprep.subr.mxu0 0.0
    %618 = vmatpush2.xpose.msra.mxu0 0.0
    %619 = vmatprep.mubr.f32.mxu0 0.0
    %620 = vmatmul.mubr.f32.gmra.mxu0 %v551
    %v621 = vpop.f32.mrf.mxu0
    %v622 = vadd.f32 0.0, %v621
    %v623 = vpop.f32.mrf.mxu0
    %624 = vdwg.mxu0
    %v625 = vmul.f32 %v622, 0.25
    %v626 = vadd.f32 %v625, %v104
    %v627 = vmul.f32 %v626, 1.442695
    %v628 = vpow.pop %v627
    %v629 = vsel %vm304, %v628, 0.0
    %630 = vadd.xlane.f32.xlu0 %v629
    %v631 = vpop.xlane.xlu0 %630
    %v632 = vrcp.pop %v631
    %v633 = vmul.f32 %v628, %v632
    %634 = vrot.lane.b32.xlu0 %v220, 96
    %v635 = vpop.permute.xlu0 %634
    %v638 = vsel %vm304, %v633, 0
    %640 = vmatprep.subr.mxu0 0.0
    %641 = vmatpush1.msra.mxu0 0.0
    %642 = vmatprep.subr.mxu0 0.0
    %643 = vmatpush1.msra.mxu0 0.0
    %644 = vmatprep.subr.mxu0 0.0
    %645 = vmatpush1.msra.mxu0 0.0
    %646 = vmatprep.subr.mxu0 0.0
    %647 = vmatpush1.msra.mxu0 0.0
    %648 = vmatprep.subr.mxu0 0.0
    %649 = vmatpush1.msra.mxu0 0.0
    %650 = vmatprep.subr.mxu0 0.0
    %651 = vmatpush1.msra.mxu0 0.0
    %652 = vmatprep.subr.mxu0 0.0
    %653 = vmatpush1.msra.mxu0 0.0
    %654 = vmatprep.subr.mxu0 0.0
    %655 = vmatpush1.msra.mxu0 0.0
    %656 = vmatprep.subr.mxu0 0.0
    %657 = vmatpush1.msra.mxu0 0.0
    %658 = vmatprep.subr.mxu0 0.0
    %659 = vmatpush1.msra.mxu0 0.0
    %660 = vmatprep.subr.mxu0 0.0
    %661 = vmatpush1.msra.mxu0 0.0
    %662 = vmatprep.subr.mxu0 0.0
    %663 = vmatpush1.msra.mxu0 0.0
    %664 = vmatprep.subr.mxu0 0.0
    %665 = vmatpush1.msra.mxu0 0.0
    %666 = vmatprep.subr.mxu0 0.0
    %667 = vmatpush1.msra.mxu0 0.0
    %668 = vmatprep.subr.mxu0 0.0
    %669 = vmatpush1.msra.mxu0 0.0
    %670 = vmatprep.subr.mxu0 0.0
    %671 = vmatpush1.msra.mxu0 %v635
    %672 = vmatprep.subr.mxu0 0.0
    %673 = vmatpush2.msra.mxu0 0.0
    %674 = vmatprep.subr.mxu0 0.0
    %675 = vmatpush2.msra.mxu0 0.0
    %676 = vmatprep.subr.mxu0 0.0
    %677 = vmatpush2.msra.mxu0 0.0
    %678 = vmatprep.subr.mxu0 0.0
    %679 = vmatpush2.msra.mxu0 0.0
    %680 = vmatprep.subr.mxu0 0.0
    %681 = vmatpush2.msra.mxu0 0.0
    %682 = vmatprep.subr.mxu0 0.0
    %683 = vmatpush2.msra.mxu0 0.0
    %684 = vmatprep.subr.mxu0 0.0
    %685 = vmatpush2.msra.mxu0 0.0
    %686 = vmatprep.subr.mxu0 0.0
    %687 = vmatpush2.msra.mxu0 0.0
    %688 = vmatprep.subr.mxu0 0.0
    %689 = vmatpush2.msra.mxu0 0.0
    %690 = vmatprep.subr.mxu0 0.0
    %691 = vmatpush2.msra.mxu0 0.0
    %692 = vmatprep.subr.mxu0 0.0
    %693 = vmatpush2.msra.mxu0 0.0
    %694 = vmatprep.subr.mxu0 0.0
    %695 = vmatpush2.msra.mxu0 0.0
    %696 = vmatprep.subr.mxu0 0.0
    %697 = vmatpush2.msra.mxu0 0.0
    %698 = vmatprep.subr.mxu0 0.0
    %699 = vmatpush2.msra.mxu0 0.0
    %700 = vmatprep.subr.mxu0 0.0
    %701 = vmatpush2.msra.mxu0 0.0
    %702 = vmatprep.subr.mxu0 0.0
    %703 = vmatpush2.msra.mxu0 0.0
    %704 = vmatprep.mubr.f32.mxu0 0.0
    %705 = vmatmul.mubr.f32.gmra.mxu0 %v638
    %v706 = vpop.f32.mrf.mxu0
    %v707 = vadd.f32 0.0, %v706
    %v708 = vpop.f32.mrf.mxu0
    %709 = vdwg.mxu0
    %710 = vrot.lane.b32.xlu0 %v212, 80
    %v711 = vpop.permute.xlu0 %710
    %712 = vrot.lane.b32.xlu0 %v212, 16
    %v713 = vpop.permute.xlu0 %712
    %v714 = vsel %vm225, %v711, 0
    %v716 = vsel %vm225, %v713, 0
    %718 = vmatprep.subr.mxu0 0.0
    %719 = vmatpush1.xpose.msra.mxu0 0.0
    %720 = vmatprep.subr.mxu0 0.0
    %721 = vmatpush1.xpose.msra.mxu0 0.0
    %722 = vmatprep.subr.mxu0 0.0
    %723 = vmatpush1.xpose.msra.mxu0 0.0
    %724 = vmatprep.subr.mxu0 0.0
    %725 = vmatpush1.xpose.msra.mxu0 0.0
    %726 = vmatprep.subr.mxu0 0.0
    %727 = vmatpush1.xpose.msra.mxu0 0.0
    %728 = vmatprep.subr.mxu0 0.0
    %729 = vmatpush1.xpose.msra.mxu0 0.0
    %730 = vmatprep.subr.mxu0 0.0
    %731 = vmatpush1.xpose.msra.mxu0 0.0
    %732 = vmatprep.subr.mxu0 0.0
    %733 = vmatpush1.xpose.msra.mxu0 0.0
    %734 = vmatprep.subr.mxu0 0.0
    %735 = vmatpush1.xpose.msra.mxu0 0.0
    %736 = vmatprep.subr.mxu0 0.0
    %737 = vmatpush1.xpose.msra.mxu0 0.0
    %738 = vmatprep.subr.mxu0 0.0
    %739 = vmatpush1.xpose.msra.mxu0 0.0
    %740 = vmatprep.subr.mxu0 0.0
    %741 = vmatpush1.xpose.msra.mxu0 0.0
    %742 = vmatprep.subr.mxu0 0.0
    %743 = vmatpush1.xpose.msra.mxu0 0.0
    %744 = vmatprep.subr.mxu0 0.0
    %745 = vmatpush1.xpose.msra.mxu0 0.0
    %746 = vmatprep.subr.mxu0 0.0
    %747 = vmatpush1.xpose.msra.mxu0 0.0
    %748 = vmatprep.subr.mxu0 0.0
    %749 = vmatpush1.xpose.msra.mxu0 %v716
    %750 = vmatprep.subr.mxu0 0.0
    %751 = vmatpush2.xpose.msra.mxu0 0.0
    %752 = vmatprep.subr.mxu0 0.0
    %753 = vmatpush2.xpose.msra.mxu0 0.0
    %754 = vmatprep.subr.mxu0 0.0
    %755 = vmatpush2.xpose.msra.mxu0 0.0
    %756 = vmatprep.subr.mxu0 0.0
    %757 = vmatpush2.xpose.msra.mxu0 0.0
    %758 = vmatprep.subr.mxu0 0.0
    %759 = vmatpush2.xpose.msra.mxu0 0.0
    %760 = vmatprep.subr.mxu0 0.0
    %761 = vmatpush2.xpose.msra.mxu0 0.0
    %762 = vmatprep.subr.mxu0 0.0
    %763 = vmatpush2.xpose.msra.mxu0 0.0
    %764 = vmatprep.subr.mxu0 0.0
    %765 = vmatpush2.xpose.msra.mxu0 0.0
    %766 = vmatprep.subr.mxu0 0.0
    %767 = vmatpush2.xpose.msra.mxu0 0.0
    %768 = vmatprep.subr.mxu0 0.0
    %769 = vmatpush2.xpose.msra.mxu0 0.0
    %770 = vmatprep.subr.mxu0 0.0
    %771 = vmatpush2.xpose.msra.mxu0 0.0
    %772 = vmatprep.subr.mxu0 0.0
    %773 = vmatpush2.xpose.msra.mxu0 0.0
    %774 = vmatprep.subr.mxu0 0.0
    %775 = vmatpush2.xpose.msra.mxu0 0.0
    %776 = vmatprep.subr.mxu0 0.0
    %777 = vmatpush2.xpose.msra.mxu0 0.0
    %778 = vmatprep.subr.mxu0 0.0
    %779 = vmatpush2.xpose.msra.mxu0 0.0
    %780 = vmatprep.subr.mxu0 0.0
    %781 = vmatpush2.xpose.msra.mxu0 0.0
    %782 = vmatprep.mubr.f32.mxu0 0.0
    %783 = vmatmul.mubr.f32.gmra.mxu0 %v714
    %v784 = vpop.f32.mrf.mxu0
    %v785 = vadd.f32 0.0, %v784
    %v786 = vpop.f32.mrf.mxu0
    %787 = vdwg.mxu0
    %v788 = vmul.f32 %v785, 0.25
    %v789 = vadd.f32 %v788, %v104
    %v790 = vmul.f32 %v789, 1.442695
    %v791 = vpow.pop %v790
    %v792 = vsel %vm304, %v791, 0.0
    %793 = vadd.xlane.f32.xlu0 %v792
    %v794 = vpop.xlane.xlu0 %793
    %v795 = vrcp.pop %v794
    %v796 = vmul.f32 %v791, %v795
    %797 = vrot.lane.b32.xlu0 %v220, 80
    %v798 = vpop.permute.xlu0 %797
    %v801 = vsel %vm304, %v796, 0
    %803 = vmatprep.subr.mxu0 0.0
    %804 = vmatpush1.msra.mxu0 0.0
    %805 = vmatprep.subr.mxu0 0.0
    %806 = vmatpush1.msra.mxu0 0.0
    %807 = vmatprep.subr.mxu0 0.0
    %808 = vmatpush1.msra.mxu0 0.0
    %809 = vmatprep.subr.mxu0 0.0
    %810 = vmatpush1.msra.mxu0 0.0
    %811 = vmatprep.subr.mxu0 0.0
    %812 = vmatpush1.msra.mxu0 0.0
    %813 = vmatprep.subr.mxu0 0.0
    %814 = vmatpush1.msra.mxu0 0.0
    %815 = vmatprep.subr.mxu0 0.0
    %816 = vmatpush1.msra.mxu0 0.0
    %817 = vmatprep.subr.mxu0 0.0
    %818 = vmatpush1.msra.mxu0 0.0
    %819 = vmatprep.subr.mxu0 0.0
    %820 = vmatpush1.msra.mxu0 0.0
    %821 = vmatprep.subr.mxu0 0.0
    %822 = vmatpush1.msra.mxu0 0.0
    %823 = vmatprep.subr.mxu0 0.0
    %824 = vmatpush1.msra.mxu0 0.0
    %825 = vmatprep.subr.mxu0 0.0
    %826 = vmatpush1.msra.mxu0 0.0
    %827 = vmatprep.subr.mxu0 0.0
    %828 = vmatpush1.msra.mxu0 0.0
    %829 = vmatprep.subr.mxu0 0.0
    %830 = vmatpush1.msra.mxu0 0.0
    %831 = vmatprep.subr.mxu0 0.0
    %832 = vmatpush1.msra.mxu0 0.0
    %833 = vmatprep.subr.mxu0 0.0
    %834 = vmatpush1.msra.mxu0 %v798
    %835 = vmatprep.subr.mxu0 0.0
    %836 = vmatpush2.msra.mxu0 0.0
    %837 = vmatprep.subr.mxu0 0.0
    %838 = vmatpush2.msra.mxu0 0.0
    %839 = vmatprep.subr.mxu0 0.0
    %840 = vmatpush2.msra.mxu0 0.0
    %841 = vmatprep.subr.mxu0 0.0
    %842 = vmatpush2.msra.mxu0 0.0
    %843 = vmatprep.subr.mxu0 0.0
    %844 = vmatpush2.msra.mxu0 0.0
    %845 = vmatprep.subr.mxu0 0.0
    %846 = vmatpush2.msra.mxu0 0.0
    %847 = vmatprep.subr.mxu0 0.0
    %848 = vmatpush2.msra.mxu0 0.0
    %849 = vmatprep.subr.mxu0 0.0
    %850 = vmatpush2.msra.mxu0 0.0
    %851 = vmatprep.subr.mxu0 0.0
    %852 = vmatpush2.msra.mxu0 0.0
    %853 = vmatprep.subr.mxu0 0.0
    %854 = vmatpush2.msra.mxu0 0.0
    %855 = vmatprep.subr.mxu0 0.0
    %856 = vmatpush2.msra.mxu0 0.0
    %857 = vmatprep.subr.mxu0 0.0
    %858 = vmatpush2.msra.mxu0 0.0
    %859 = vmatprep.subr.mxu0 0.0
    %860 = vmatpush2.msra.mxu0 0.0
    %861 = vmatprep.subr.mxu0 0.0
    %862 = vmatpush2.msra.mxu0 0.0
    %863 = vmatprep.subr.mxu0 0.0
    %864 = vmatpush2.msra.mxu0 0.0
    %865 = vmatprep.subr.mxu0 0.0
    %866 = vmatpush2.msra.mxu0 0.0
    %867 = vmatprep.mubr.f32.mxu0 0.0
    %868 = vmatmul.mubr.f32.gmra.mxu0 %v801
    %v869 = vpop.f32.mrf.mxu0
    %v870 = vadd.f32 0.0, %v869
    %v871 = vpop.f32.mrf.mxu0
    %872 = vdwg.mxu0
    %874 = vrot.lane.b32.xlu0 %v544, 16
    %v875 = vpop.permute.xlu0 %874
    %878 = vrot.lane.b32.xlu0 %v707, 32
    %v879 = vpop.permute.xlu0 %878
    %882 = vrot.lane.b32.xlu0 %v870, 48
    %v883 = vpop.permute.xlu0 %882
    %v885 = vsel %vm225, %v380, %v875
    %vm886 = vcmask 261120
    %v887 = vsel %vm886, %v885, %v879
    %vm888 = vcmask 392192
    %v889 = vsel %vm888, %v887, %v883
    %891 = vrot.lane.b32.xlu0 %v213, 64
    %v892 = vpop.permute.xlu0 %891
    %v893 = vsel %vm225, %v213, 0
    %v895 = vsel %vm225, %v892, 0
    %897 = vmatprep.subr.mxu0 0.0
    %898 = vmatpush1.xpose.msra.mxu0 0.0
    %899 = vmatprep.subr.mxu0 0.0
    %900 = vmatpush1.xpose.msra.mxu0 0.0
    %901 = vmatprep.subr.mxu0 0.0
    %902 = vmatpush1.xpose.msra.mxu0 0.0
    %903 = vmatprep.subr.mxu0 0.0
    %904 = vmatpush1.xpose.msra.mxu0 0.0
    %905 = vmatprep.subr.mxu0 0.0
    %906 = vmatpush1.xpose.msra.mxu0 0.0
    %907 = vmatprep.subr.mxu0 0.0
    %908 = vmatpush1.xpose.msra.mxu0 0.0
    %909 = vmatprep.subr.mxu0 0.0
    %910 = vmatpush1.xpose.msra.mxu0 0.0
    %911 = vmatprep.subr.mxu0 0.0
    %912 = vmatpush1.xpose.msra.mxu0 0.0
    %913 = vmatprep.subr.mxu0 0.0
    %914 = vmatpush1.xpose.msra.mxu0 0.0
    %915 = vmatprep.subr.mxu0 0.0
    %916 = vmatpush1.xpose.msra.mxu0 0.0
    %917 = vmatprep.subr.mxu0 0.0
    %918 = vmatpush1.xpose.msra.mxu0 0.0
    %919 = vmatprep.subr.mxu0 0.0
    %920 = vmatpush1.xpose.msra.mxu0 0.0
    %921 = vmatprep.subr.mxu0 0.0
    %922 = vmatpush1.xpose.msra.mxu0 0.0
    %923 = vmatprep.subr.mxu0 0.0
    %924 = vmatpush1.xpose.msra.mxu0 0.0
    %925 = vmatprep.subr.mxu0 0.0
    %926 = vmatpush1.xpose.msra.mxu0 0.0
    %927 = vmatprep.subr.mxu0 0.0
    %928 = vmatpush1.xpose.msra.mxu0 %v895
    %929 = vmatprep.subr.mxu0 0.0
    %930 = vmatpush2.xpose.msra.mxu0 0.0
    %931 = vmatprep.subr.mxu0 0.0
    %932 = vmatpush2.xpose.msra.mxu0 0.0
    %933 = vmatprep.subr.mxu0 0.0
    %934 = vmatpush2.xpose.msra.mxu0 0.0
    %935 = vmatprep.subr.mxu0 0.0
    %936 = vmatpush2.xpose.msra.mxu0 0.0
    %937 = vmatprep.subr.mxu0 0.0
    %938 = vmatpush2.xpose.msra.mxu0 0.0
    %939 = vmatprep.subr.mxu0 0.0
    %940 = vmatpush2.xpose.msra.mxu0 0.0
    %941 = vmatprep.subr.mxu0 0.0
    %942 = vmatpush2.xpose.msra.mxu0 0.0
    %943 = vmatprep.subr.mxu0 0.0
    %944 = vmatpush2.xpose.msra.mxu0 0.0
    %945 = vmatprep.subr.mxu0 0.0
    %946 = vmatpush2.xpose.msra.mxu0 0.0
    %947 = vmatprep.subr.mxu0 0.0
    %948 = vmatpush2.xpose.msra.mxu0 0.0
    %949 = vmatprep.subr.mxu0 0.0
    %950 = vmatpush2.xpose.msra.mxu0 0.0
    %951 = vmatprep.subr.mxu0 0.0
    %952 = vmatpush2.xpose.msra.mxu0 0.0
    %953 = vmatprep.subr.mxu0 0.0
    %954 = vmatpush2.xpose.msra.mxu0 0.0
    %955 = vmatprep.subr.mxu0 0.0
    %956 = vmatpush2.xpose.msra.mxu0 0.0
    %957 = vmatprep.subr.mxu0 0.0
    %958 = vmatpush2.xpose.msra.mxu0 0.0
    %959 = vmatprep.subr.mxu0 0.0
    %960 = vmatpush2.xpose.msra.mxu0 0.0
    %961 = vmatprep.mubr.f32.mxu0 0.0
    %962 = vmatmul.mubr.f32.gmra.mxu0 %v893
    %v963 = vpop.f32.mrf.mxu0
    %v964 = vadd.f32 0.0, %v963
    %v965 = vpop.f32.mrf.mxu0
    %966 = vdwg.mxu0
    %v967 = vmul.f32 %v964, 0.25
    %v968 = vadd.f32 %v967, %v105
    %v969 = vmul.f32 %v968, 1.442695
    %v970 = vpow.pop %v969
    %v971 = vsel %vm304, %v970, 0.0
    %972 = vadd.xlane.f32.xlu0 %v971
    %v973 = vpop.xlane.xlu0 %972
    %v974 = vrcp.pop %v973
    %v975 = vmul.f32 %v970, %v974
    %v977 = vsel %vm304, %v975, 0
    %979 = vmatprep.subr.mxu0 0.0
    %980 = vmatpush1.msra.mxu0 0.0
    %981 = vmatprep.subr.mxu0 0.0
    %982 = vmatpush1.msra.mxu0 0.0
    %983 = vmatprep.subr.mxu0 0.0
    %984 = vmatpush1.msra.mxu0 0.0
    %985 = vmatprep.subr.mxu0 0.0
    %986 = vmatpush1.msra.mxu0 0.0
    %987 = vmatprep.subr.mxu0 0.0
    %988 = vmatpush1.msra.mxu0 0.0
    %989 = vmatprep.subr.mxu0 0.0
    %990 = vmatpush1.msra.mxu0 0.0
    %991 = vmatprep.subr.mxu0 0.0
    %992 = vmatpush1.msra.mxu0 0.0
    %993 = vmatprep.subr.mxu0 0.0
    %994 = vmatpush1.msra.mxu0 0.0
    %995 = vmatprep.subr.mxu0 0.0
    %996 = vmatpush1.msra.mxu0 0.0
    %997 = vmatprep.subr.mxu0 0.0
    %998 = vmatpush1.msra.mxu0 0.0
    %999 = vmatprep.subr.mxu0 0.0
    %1000 = vmatpush1.msra.mxu0 0.0
    %1001 = vmatprep.subr.mxu0 0.0
    %1002 = vmatpush1.msra.mxu0 0.0
    %1003 = vmatprep.subr.mxu0 0.0
    %1004 = vmatpush1.msra.mxu0 0.0
    %1005 = vmatprep.subr.mxu0 0.0
    %1006 = vmatpush1.msra.mxu0 0.0
    %1007 = vmatprep.subr.mxu0 0.0
    %1008 = vmatpush1.msra.mxu0 0.0
    %1009 = vmatprep.subr.mxu0 0.0
    %1010 = vmatpush1.msra.mxu0 %v221
    %1011 = vmatprep.subr.mxu0 0.0
    %1012 = vmatpush2.msra.mxu0 0.0
    %1013 = vmatprep.subr.mxu0 0.0
    %1014 = vmatpush2.msra.mxu0 0.0
    %1015 = vmatprep.subr.mxu0 0.0
    %1016 = vmatpush2.msra.mxu0 0.0
    %1017 = vmatprep.subr.mxu0 0.0
    %1018 = vmatpush2.msra.mxu0 0.0
    %1019 = vmatprep.subr.mxu0 0.0
    %1020 = vmatpush2.msra.mxu0 0.0
    %1021 = vmatprep.subr.mxu0 0.0
    %1022 = vmatpush2.msra.mxu0 0.0
    %1023 = vmatprep.subr.mxu0 0.0
    %1024 = vmatpush2.msra.mxu0 0.0
    %1025 = vmatprep.subr.mxu0 0.0
    %1026 = vmatpush2.msra.mxu0 0.0
    %1027 = vmatprep.subr.mxu0 0.0
    %1028 = vmatpush2.msra.mxu0 0.0
    %1029 = vmatprep.subr.mxu0 0.0
    %1030 = vmatpush2.msra.mxu0 0.0
    %1031 = vmatprep.subr.mxu0 0.0
    %1032 = vmatpush2.msra.mxu0 0.0
    %1033 = vmatprep.subr.mxu0 0.0
    %1034 = vmatpush2.msra.mxu0 0.0
    %1035 = vmatprep.subr.mxu0 0.0
    %1036 = vmatpush2.msra.mxu0 0.0
    %1037 = vmatprep.subr.mxu0 0.0
    %1038 = vmatpush2.msra.mxu0 0.0
    %1039 = vmatprep.subr.mxu0 0.0
    %1040 = vmatpush2.msra.mxu0 0.0
    %1041 = vmatprep.subr.mxu0 0.0
    %1042 = vmatpush2.msra.mxu0 0.0
    %1043 = vmatprep.mubr.f32.mxu0 0.0
    %1044 = vmatmul.mubr.f32.gmra.mxu0 %v977
    %v1045 = vpop.f32.mrf.mxu0
    %v1046 = vadd.f32 0.0, %v1045
    %v1047 = vpop.f32.mrf.mxu0
    %1048 = vdwg.mxu0
    %1049 = vrot.lane.b32.xlu0 %v213, 112
    %v1050 = vpop.permute.xlu0 %1049
    %1051 = vrot.lane.b32.xlu0 %v213, 48
    %v1052 = vpop.permute.xlu0 %1051
    %v1053 = vsel %vm225, %v1050, 0
    %v1055 = vsel %vm225, %v1052, 0
    %1057 = vmatprep.subr.mxu0 0.0
    %1058 = vmatpush1.xpose.msra.mxu0 0.0
    %1059 = vmatprep.subr.mxu0 0.0
    %1060 = vmatpush1.xpose.msra.mxu0 0.0
    %1061 = vmatprep.subr.mxu0 0.0
    %1062 = vmatpush1.xpose.msra.mxu0 0.0
    %1063 = vmatprep.subr.mxu0 0.0
    %1064 = vmatpush1.xpose.msra.mxu0 0.0
    %1065 = vmatprep.subr.mxu0 0.0
    %1066 = vmatpush1.xpose.msra.mxu0 0.0
    %1067 = vmatprep.subr.mxu0 0.0
    %1068 = vmatpush1.xpose.msra.mxu0 0.0
    %1069 = vmatprep.subr.mxu0 0.0
    %1070 = vmatpush1.xpose.msra.mxu0 0.0
    %1071 = vmatprep.subr.mxu0 0.0
    %1072 = vmatpush1.xpose.msra.mxu0 0.0
    %1073 = vmatprep.subr.mxu0 0.0
    %1074 = vmatpush1.xpose.msra.mxu0 0.0
    %1075 = vmatprep.subr.mxu0 0.0
    %1076 = vmatpush1.xpose.msra.mxu0 0.0
    %1077 = vmatprep.subr.mxu0 0.0
    %1078 = vmatpush1.xpose.msra.mxu0 0.0
    %1079 = vmatprep.subr.mxu0 0.0
    %1080 = vmatpush1.xpose.msra.mxu0 0.0
    %1081 = vmatprep.subr.mxu0 0.0
    %1082 = vmatpush1.xpose.msra.mxu0 0.0
    %1083 = vmatprep.subr.mxu0 0.0
    %1084 = vmatpush1.xpose.msra.mxu0 0.0
    %1085 = vmatprep.subr.mxu0 0.0
    %1086 = vmatpush1.xpose.msra.mxu0 0.0
    %1087 = vmatprep.subr.mxu0 0.0
    %1088 = vmatpush1.xpose.msra.mxu0 %v1055
    %1089 = vmatprep.subr.mxu0 0.0
    %1090 = vmatpush2.xpose.msra.mxu0 0.0
    %1091 = vmatprep.subr.mxu0 0.0
    %1092 = vmatpush2.xpose.msra.mxu0 0.0
    %1093 = vmatprep.subr.mxu0 0.0
    %1094 = vmatpush2.xpose.msra.mxu0 0.0
    %1095 = vmatprep.subr.mxu0 0.0
    %1096 = vmatpush2.xpose.msra.mxu0 0.0
    %1097 = vmatprep.subr.mxu0 0.0
    %1098 = vmatpush2.xpose.msra.mxu0 0.0
    %1099 = vmatprep.subr.mxu0 0.0
    %1100 = vmatpush2.xpose.msra.mxu0 0.0
    %1101 = vmatprep.subr.mxu0 0.0
    %1102 = vmatpush2.xpose.msra.mxu0 0.0
    %1103 = vmatprep.subr.mxu0 0.0
    %1104 = vmatpush2.xpose.msra.mxu0 0.0
    %1105 = vmatprep.subr.mxu0 0.0
    %1106 = vmatpush2.xpose.msra.mxu0 0.0
    %1107 = vmatprep.subr.mxu0 0.0
    %1108 = vmatpush2.xpose.msra.mxu0 0.0
    %1109 = vmatprep.subr.mxu0 0.0
    %1110 = vmatpush2.xpose.msra.mxu0 0.0
    %1111 = vmatprep.subr.mxu0 0.0
    %1112 = vmatpush2.xpose.msra.mxu0 0.0
    %1113 = vmatprep.subr.mxu0 0.0
    %1114 = vmatpush2.xpose.msra.mxu0 0.0
    %1115 = vmatprep.subr.mxu0 0.0
    %1116 = vmatpush2.xpose.msra.mxu0 0.0
    %1117 = vmatprep.subr.mxu0 0.0
    %1118 = vmatpush2.xpose.msra.mxu0 0.0
    %1119 = vmatprep.subr.mxu0 0.0
    %1120 = vmatpush2.xpose.msra.mxu0 0.0
    %1121 = vmatprep.mubr.f32.mxu0 0.0
    %1122 = vmatmul.mubr.f32.gmra.mxu0 %v1053
    %v1123 = vpop.f32.mrf.mxu0
    %v1124 = vadd.f32 0.0, %v1123
    %v1125 = vpop.f32.mrf.mxu0
    %1126 = vdwg.mxu0
    %v1127 = vmul.f32 %v1124, 0.25
    %v1128 = vadd.f32 %v1127, %v105
    %v1129 = vmul.f32 %v1128, 1.442695
    %v1130 = vpow.pop %v1129
    %v1131 = vsel %vm304, %v1130, 0.0
    %1132 = vadd.xlane.f32.xlu0 %v1131
    %v1133 = vpop.xlane.xlu0 %1132
    %v1134 = vrcp.pop %v1133
    %v1135 = vmul.f32 %v1130, %v1134
    %1137 = vrot.lane.b32.xlu0 %v221, 112
    %v1138 = vpop.permute.xlu0 %1137
    %v1141 = vsel %vm304, %v1135, 0
    %1143 = vmatprep.subr.mxu0 0.0
    %1144 = vmatpush1.msra.mxu0 0.0
    %1145 = vmatprep.subr.mxu0 0.0
    %1146 = vmatpush1.msra.mxu0 0.0
    %1147 = vmatprep.subr.mxu0 0.0
    %1148 = vmatpush1.msra.mxu0 0.0
    %1149 = vmatprep.subr.mxu0 0.0
    %1150 = vmatpush1.msra.mxu0 0.0
    %1151 = vmatprep.subr.mxu0 0.0
    %1152 = vmatpush1.msra.mxu0 0.0
    %1153 = vmatprep.subr.mxu0 0.0
    %1154 = vmatpush1.msra.mxu0 0.0
    %1155 = vmatprep.subr.mxu0 0.0
    %1156 = vmatpush1.msra.mxu0 0.0
    %1157 = vmatprep.subr.mxu0 0.0
    %1158 = vmatpush1.msra.mxu0 0.0
    %1159 = vmatprep.subr.mxu0 0.0
    %1160 = vmatpush1.msra.mxu0 0.0
    %1161 = vmatprep.subr.mxu0 0.0
    %1162 = vmatpush1.msra.mxu0 0.0
    %1163 = vmatprep.subr.mxu0 0.0
    %1164 = vmatpush1.msra.mxu0 0.0
    %1165 = vmatprep.subr.mxu0 0.0
    %1166 = vmatpush1.msra.mxu0 0.0
    %1167 = vmatprep.subr.mxu0 0.0
    %1168 = vmatpush1.msra.mxu0 0.0
    %1169 = vmatprep.subr.mxu0 0.0
    %1170 = vmatpush1.msra.mxu0 0.0
    %1171 = vmatprep.subr.mxu0 0.0
    %1172 = vmatpush1.msra.mxu0 0.0
    %1173 = vmatprep.subr.mxu0 0.0
    %1174 = vmatpush1.msra.mxu0 %v1138
    %1175 = vmatprep.subr.mxu0 0.0
    %1176 = vmatpush2.msra.mxu0 0.0
    %1177 = vmatprep.subr.mxu0 0.0
    %1178 = vmatpush2.msra.mxu0 0.0
    %1179 = vmatprep.subr.mxu0 0.0
    %1180 = vmatpush2.msra.mxu0 0.0
    %1181 = vmatprep.subr.mxu0 0.0
    %1182 = vmatpush2.msra.mxu0 0.0
    %1183 = vmatprep.subr.mxu0 0.0
    %1184 = vmatpush2.msra.mxu0 0.0
    %1185 = vmatprep.subr.mxu0 0.0
    %1186 = vmatpush2.msra.mxu0 0.0
    %1187 = vmatprep.subr.mxu0 0.0
    %1188 = vmatpush2.msra.mxu0 0.0
    %1189 = vmatprep.subr.mxu0 0.0
    %1190 = vmatpush2.msra.mxu0 0.0
    %1191 = vmatprep.subr.mxu0 0.0
    %1192 = vmatpush2.msra.mxu0 0.0
    %1193 = vmatprep.subr.mxu0 0.0
    %1194 = vmatpush2.msra.mxu0 0.0
    %1195 = vmatprep.subr.mxu0 0.0
    %1196 = vmatpush2.msra.mxu0 0.0
    %1197 = vmatprep.subr.mxu0 0.0
    %1198 = vmatpush2.msra.mxu0 0.0
    %1199 = vmatprep.subr.mxu0 0.0
    %1200 = vmatpush2.msra.mxu0 0.0
    %1201 = vmatprep.subr.mxu0 0.0
    %1202 = vmatpush2.msra.mxu0 0.0
    %1203 = vmatprep.subr.mxu0 0.0
    %1204 = vmatpush2.msra.mxu0 0.0
    %1205 = vmatprep.subr.mxu0 0.0
    %1206 = vmatpush2.msra.mxu0 0.0
    %1207 = vmatprep.mubr.f32.mxu0 0.0
    %1208 = vmatmul.mubr.f32.gmra.mxu0 %v1141
    %v1209 = vpop.f32.mrf.mxu0
    %v1210 = vadd.f32 0.0, %v1209
    %v1211 = vpop.f32.mrf.mxu0
    %1212 = vdwg.mxu0
    %1213 = vrot.lane.b32.xlu0 %v213, 96
    %v1214 = vpop.permute.xlu0 %1213
    %1215 = vrot.lane.b32.xlu0 %v213, 32
    %v1216 = vpop.permute.xlu0 %1215
    %v1217 = vsel %vm225, %v1214, 0
    %v1219 = vsel %vm225, %v1216, 0
    %1221 = vmatprep.subr.mxu0 0.0
    %1222 = vmatpush1.xpose.msra.mxu0 0.0
    %1223 = vmatprep.subr.mxu0 0.0
    %1224 = vmatpush1.xpose.msra.mxu0 0.0
    %1225 = vmatprep.subr.mxu0 0.0
    %1226 = vmatpush1.xpose.msra.mxu0 0.0
    %1227 = vmatprep.subr.mxu0 0.0
    %1228 = vmatpush1.xpose.msra.mxu0 0.0
    %1229 = vmatprep.subr.mxu0 0.0
    %1230 = vmatpush1.xpose.msra.mxu0 0.0
    %1231 = vmatprep.subr.mxu0 0.0
    %1232 = vmatpush1.xpose.msra.mxu0 0.0
    %1233 = vmatprep.subr.mxu0 0.0
    %1234 = vmatpush1.xpose.msra.mxu0 0.0
    %1235 = vmatprep.subr.mxu0 0.0
    %1236 = vmatpush1.xpose.msra.mxu0 0.0
    %1237 = vmatprep.subr.mxu0 0.0
    %1238 = vmatpush1.xpose.msra.mxu0 0.0
    %1239 = vmatprep.subr.mxu0 0.0
    %1240 = vmatpush1.xpose.msra.mxu0 0.0
    %1241 = vmatprep.subr.mxu0 0.0
    %1242 = vmatpush1.xpose.msra.mxu0 0.0
    %1243 = vmatprep.subr.mxu0 0.0
    %1244 = vmatpush1.xpose.msra.mxu0 0.0
    %1245 = vmatprep.subr.mxu0 0.0
    %1246 = vmatpush1.xpose.msra.mxu0 0.0
    %1247 = vmatprep.subr.mxu0 0.0
    %1248 = vmatpush1.xpose.msra.mxu0 0.0
    %1249 = vmatprep.subr.mxu0 0.0
    %1250 = vmatpush1.xpose.msra.mxu0 0.0
    %1251 = vmatprep.subr.mxu0 0.0
    %1252 = vmatpush1.xpose.msra.mxu0 %v1219
    %1253 = vmatprep.subr.mxu0 0.0
    %1254 = vmatpush2.xpose.msra.mxu0 0.0
    %1255 = vmatprep.subr.mxu0 0.0
    %1256 = vmatpush2.xpose.msra.mxu0 0.0
    %1257 = vmatprep.subr.mxu0 0.0
    %1258 = vmatpush2.xpose.msra.mxu0 0.0
    %1259 = vmatprep.subr.mxu0 0.0
    %1260 = vmatpush2.xpose.msra.mxu0 0.0
    %1261 = vmatprep.subr.mxu0 0.0
    %1262 = vmatpush2.xpose.msra.mxu0 0.0
    %1263 = vmatprep.subr.mxu0 0.0
    %1264 = vmatpush2.xpose.msra.mxu0 0.0
    %1265 = vmatprep.subr.mxu0 0.0
    %1266 = vmatpush2.xpose.msra.mxu0 0.0
    %1267 = vmatprep.subr.mxu0 0.0
    %1268 = vmatpush2.xpose.msra.mxu0 0.0
    %1269 = vmatprep.subr.mxu0 0.0
    %1270 = vmatpush2.xpose.msra.mxu0 0.0
    %1271 = vmatprep.subr.mxu0 0.0
    %1272 = vmatpush2.xpose.msra.mxu0 0.0
    %1273 = vmatprep.subr.mxu0 0.0
    %1274 = vmatpush2.xpose.msra.mxu0 0.0
    %1275 = vmatprep.subr.mxu0 0.0
    %1276 = vmatpush2.xpose.msra.mxu0 0.0
    %1277 = vmatprep.subr.mxu0 0.0
    %1278 = vmatpush2.xpose.msra.mxu0 0.0
    %1279 = vmatprep.subr.mxu0 0.0
    %1280 = vmatpush2.xpose.msra.mxu0 0.0
    %1281 = vmatprep.subr.mxu0 0.0
    %1282 = vmatpush2.xpose.msra.mxu0 0.0
    %1283 = vmatprep.subr.mxu0 0.0
    %1284 = vmatpush2.xpose.msra.mxu0 0.0
    %1285 = vmatprep.mubr.f32.mxu0 0.0
    %1286 = vmatmul.mubr.f32.gmra.mxu0 %v1217
    %v1287 = vpop.f32.mrf.mxu0
    %v1288 = vadd.f32 0.0, %v1287
    %v1289 = vpop.f32.mrf.mxu0
    %1290 = vdwg.mxu0
    %v1291 = vmul.f32 %v1288, 0.25
    %v1292 = vadd.f32 %v1291, %v105
    %v1293 = vmul.f32 %v1292, 1.442695
    %v1294 = vpow.pop %v1293
    %v1295 = vsel %vm304, %v1294, 0.0
    %1296 = vadd.xlane.f32.xlu0 %v1295
    %v1297 = vpop.xlane.xlu0 %1296
    %v1298 = vrcp.pop %v1297
    %v1299 = vmul.f32 %v1294, %v1298
    %1300 = vrot.lane.b32.xlu0 %v221, 96
    %v1301 = vpop.permute.xlu0 %1300
    %v1304 = vsel %vm304, %v1299, 0
    %1306 = vmatprep.subr.mxu0 0.0
    %1307 = vmatpush1.msra.mxu0 0.0
    %1308 = vmatprep.subr.mxu0 0.0
    %1309 = vmatpush1.msra.mxu0 0.0
    %1310 = vmatprep.subr.mxu0 0.0
    %1311 = vmatpush1.msra.mxu0 0.0
    %1312 = vmatprep.subr.mxu0 0.0
    %1313 = vmatpush1.msra.mxu0 0.0
    %1314 = vmatprep.subr.mxu0 0.0
    %1315 = vmatpush1.msra.mxu0 0.0
    %1316 = vmatprep.subr.mxu0 0.0
    %1317 = vmatpush1.msra.mxu0 0.0
    %1318 = vmatprep.subr.mxu0 0.0
    %1319 = vmatpush1.msra.mxu0 0.0
    %1320 = vmatprep.subr.mxu0 0.0
    %1321 = vmatpush1.msra.mxu0 0.0
    %1322 = vmatprep.subr.mxu0 0.0
    %1323 = vmatpush1.msra.mxu0 0.0
    %1324 = vmatprep.subr.mxu0 0.0
    %1325 = vmatpush1.msra.mxu0 0.0
    %1326 = vmatprep.subr.mxu0 0.0
    %1327 = vmatpush1.msra.mxu0 0.0
    %1328 = vmatprep.subr.mxu0 0.0
    %1329 = vmatpush1.msra.mxu0 0.0
    %1330 = vmatprep.subr.mxu0 0.0
    %1331 = vmatpush1.msra.mxu0 0.0
    %1332 = vmatprep.subr.mxu0 0.0
    %1333 = vmatpush1.msra.mxu0 0.0
    %1334 = vmatprep.subr.mxu0 0.0
    %1335 = vmatpush1.msra.mxu0 0.0
    %1336 = vmatprep.subr.mxu0 0.0
    %1337 = vmatpush1.msra.mxu0 %v1301
    %1338 = vmatprep.subr.mxu0 0.0
    %1339 = vmatpush2.msra.mxu0 0.0
    %1340 = vmatprep.subr.mxu0 0.0
    %1341 = vmatpush2.msra.mxu0 0.0
    %1342 = vmatprep.subr.mxu0 0.0
    %1343 = vmatpush2.msra.mxu0 0.0
    %1344 = vmatprep.subr.mxu0 0.0
    %1345 = vmatpush2.msra.mxu0 0.0
    %1346 = vmatprep.subr.mxu0 0.0
    %1347 = vmatpush2.msra.mxu0 0.0
    %1348 = vmatprep.subr.mxu0 0.0
    %1349 = vmatpush2.msra.mxu0 0.0
    %1350 = vmatprep.subr.mxu0 0.0
    %1351 = vmatpush2.msra.mxu0 0.0
    %1352 = vmatprep.subr.mxu0 0.0
    %1353 = vmatpush2.msra.mxu0 0.0
    %1354 = vmatprep.subr.mxu0 0.0
    %1355 = vmatpush2.msra.mxu0 0.0
    %1356 = vmatprep.subr.mxu0 0.0
    %1357 = vmatpush2.msra.mxu0 0.0
    %1358 = vmatprep.subr.mxu0 0.0
    %1359 = vmatpush2.msra.mxu0 0.0
    %1360 = vmatprep.subr.mxu0 0.0
    %1361 = vmatpush2.msra.mxu0 0.0
    %1362 = vmatprep.subr.mxu0 0.0
    %1363 = vmatpush2.msra.mxu0 0.0
    %1364 = vmatprep.subr.mxu0 0.0
    %1365 = vmatpush2.msra.mxu0 0.0
    %1366 = vmatprep.subr.mxu0 0.0
    %1367 = vmatpush2.msra.mxu0 0.0
    %1368 = vmatprep.subr.mxu0 0.0
    %1369 = vmatpush2.msra.mxu0 0.0
    %1370 = vmatprep.mubr.f32.mxu0 0.0
    %1371 = vmatmul.mubr.f32.gmra.mxu0 %v1304
    %v1372 = vpop.f32.mrf.mxu0
    %v1373 = vadd.f32 0.0, %v1372
    %v1374 = vpop.f32.mrf.mxu0
    %1375 = vdwg.mxu0
    %1376 = vrot.lane.b32.xlu0 %v213, 80
    %v1377 = vpop.permute.xlu0 %1376
    %1378 = vrot.lane.b32.xlu0 %v213, 16
    %v1379 = vpop.permute.xlu0 %1378
    %v1380 = vsel %vm225, %v1377, 0
    %v1382 = vsel %vm225, %v1379, 0
    %1384 = vmatprep.subr.mxu0 0.0
    %1385 = vmatpush1.xpose.msra.mxu0 0.0
    %1386 = vmatprep.subr.mxu0 0.0
    %1387 = vmatpush1.xpose.msra.mxu0 0.0
    %1388 = vmatprep.subr.mxu0 0.0
    %1389 = vmatpush1.xpose.msra.mxu0 0.0
    %1390 = vmatprep.subr.mxu0 0.0
    %1391 = vmatpush1.xpose.msra.mxu0 0.0
    %1392 = vmatprep.subr.mxu0 0.0
    %1393 = vmatpush1.xpose.msra.mxu0 0.0
    %1394 = vmatprep.subr.mxu0 0.0
    %1395 = vmatpush1.xpose.msra.mxu0 0.0
    %1396 = vmatprep.subr.mxu0 0.0
    %1397 = vmatpush1.xpose.msra.mxu0 0.0
    %1398 = vmatprep.subr.mxu0 0.0
    %1399 = vmatpush1.xpose.msra.mxu0 0.0
    %1400 = vmatprep.subr.mxu0 0.0
    %1401 = vmatpush1.xpose.msra.mxu0 0.0
    %1402 = vmatprep.subr.mxu0 0.0
    %1403 = vmatpush1.xpose.msra.mxu0 0.0
    %1404 = vmatprep.subr.mxu0 0.0
    %1405 = vmatpush1.xpose.msra.mxu0 0.0
    %1406 = vmatprep.subr.mxu0 0.0
    %1407 = vmatpush1.xpose.msra.mxu0 0.0
    %1408 = vmatprep.subr.mxu0 0.0
    %1409 = vmatpush1.xpose.msra.mxu0 0.0
    %1410 = vmatprep.subr.mxu0 0.0
    %1411 = vmatpush1.xpose.msra.mxu0 0.0
    %1412 = vmatprep.subr.mxu0 0.0
    %1413 = vmatpush1.xpose.msra.mxu0 0.0
    %1414 = vmatprep.subr.mxu0 0.0
    %1415 = vmatpush1.xpose.msra.mxu0 %v1382
    %1416 = vmatprep.subr.mxu0 0.0
    %1417 = vmatpush2.xpose.msra.mxu0 0.0
    %1418 = vmatprep.subr.mxu0 0.0
    %1419 = vmatpush2.xpose.msra.mxu0 0.0
    %1420 = vmatprep.subr.mxu0 0.0
    %1421 = vmatpush2.xpose.msra.mxu0 0.0
    %1422 = vmatprep.subr.mxu0 0.0
    %1423 = vmatpush2.xpose.msra.mxu0 0.0
    %1424 = vmatprep.subr.mxu0 0.0
    %1425 = vmatpush2.xpose.msra.mxu0 0.0
    %1426 = vmatprep.subr.mxu0 0.0
    %1427 = vmatpush2.xpose.msra.mxu0 0.0
    %1428 = vmatprep.subr.mxu0 0.0
    %1429 = vmatpush2.xpose.msra.mxu0 0.0
    %1430 = vmatprep.subr.mxu0 0.0
    %1431 = vmatpush2.xpose.msra.mxu0 0.0
    %1432 = vmatprep.subr.mxu0 0.0
    %1433 = vmatpush2.xpose.msra.mxu0 0.0
    %1434 = vmatprep.subr.mxu0 0.0
    %1435 = vmatpush2.xpose.msra.mxu0 0.0
    %1436 = vmatprep.subr.mxu0 0.0
    %1437 = vmatpush2.xpose.msra.mxu0 0.0
    %1438 = vmatprep.subr.mxu0 0.0
    %1439 = vmatpush2.xpose.msra.mxu0 0.0
    %1440 = vmatprep.subr.mxu0 0.0
    %1441 = vmatpush2.xpose.msra.mxu0 0.0
    %1442 = vmatprep.subr.mxu0 0.0
    %1443 = vmatpush2.xpose.msra.mxu0 0.0
    %1444 = vmatprep.subr.mxu0 0.0
    %1445 = vmatpush2.xpose.msra.mxu0 0.0
    %1446 = vmatprep.subr.mxu0 0.0
    %1447 = vmatpush2.xpose.msra.mxu0 0.0
    %1448 = vmatprep.mubr.f32.mxu0 0.0
    %1449 = vmatmul.mubr.f32.gmra.mxu0 %v1380
    %v1450 = vpop.f32.mrf.mxu0
    %v1451 = vadd.f32 0.0, %v1450
    %v1452 = vpop.f32.mrf.mxu0
    %1453 = vdwg.mxu0
    %v1454 = vmul.f32 %v1451, 0.25
    %v1455 = vadd.f32 %v1454, %v105
    %v1456 = vmul.f32 %v1455, 1.442695
    %v1457 = vpow.pop %v1456
    %v1458 = vsel %vm304, %v1457, 0.0
    %1459 = vadd.xlane.f32.xlu0 %v1458
    %v1460 = vpop.xlane.xlu0 %1459
    %v1461 = vrcp.pop %v1460
    %v1462 = vmul.f32 %v1457, %v1461
    %1463 = vrot.lane.b32.xlu0 %v221, 80
    %v1464 = vpop.permute.xlu0 %1463
    %v1467 = vsel %vm304, %v1462, 0
    %1469 = vmatprep.subr.mxu0 0.0
    %1470 = vmatpush1.msra.mxu0 0.0
    %1471 = vmatprep.subr.mxu0 0.0
    %1472 = vmatpush1.msra.mxu0 0.0
    %1473 = vmatprep.subr.mxu0 0.0
    %1474 = vmatpush1.msra.mxu0 0.0
    %1475 = vmatprep.subr.mxu0 0.0
    %1476 = vmatpush1.msra.mxu0 0.0
    %1477 = vmatprep.subr.mxu0 0.0
    %1478 = vmatpush1.msra.mxu0 0.0
    %1479 = vmatprep.subr.mxu0 0.0
    %1480 = vmatpush1.msra.mxu0 0.0
    %1481 = vmatprep.subr.mxu0 0.0
    %1482 = vmatpush1.msra.mxu0 0.0
    %1483 = vmatprep.subr.mxu0 0.0
    %1484 = vmatpush1.msra.mxu0 0.0
    %1485 = vmatprep.subr.mxu0 0.0
    %1486 = vmatpush1.msra.mxu0 0.0
    %1487 = vmatprep.subr.mxu0 0.0
    %1488 = vmatpush1.msra.mxu0 0.0
    %1489 = vmatprep.subr.mxu0 0.0
    %1490 = vmatpush1.msra.mxu0 0.0
    %1491 = vmatprep.subr.mxu0 0.0
    %1492 = vmatpush1.msra.mxu0 0.0
    %1493 = vmatprep.subr.mxu0 0.0
    %1494 = vmatpush1.msra.mxu0 0.0
    %1495 = vmatprep.subr.mxu0 0.0
    %1496 = vmatpush1.msra.mxu0 0.0
    %1497 = vmatprep.subr.mxu0 0.0
    %1498 = vmatpush1.msra.mxu0 0.0
    %1499 = vmatprep.subr.mxu0 0.0
    %1500 = vmatpush1.msra.mxu0 %v1464
    %1501 = vmatprep.subr.mxu0 0.0
    %1502 = vmatpush2.msra.mxu0 0.0
    %1503 = vmatprep.subr.mxu0 0.0
    %1504 = vmatpush2.msra.mxu0 0.0
    %1505 = vmatprep.subr.mxu0 0.0
    %1506 = vmatpush2.msra.mxu0 0.0
    %1507 = vmatprep.subr.mxu0 0.0
    %1508 = vmatpush2.msra.mxu0 0.0
    %1509 = vmatprep.subr.mxu0 0.0
    %1510 = vmatpush2.msra.mxu0 0.0
    %1511 = vmatprep.subr.mxu0 0.0
    %1512 = vmatpush2.msra.mxu0 0.0
    %1513 = vmatprep.subr.mxu0 0.0
    %1514 = vmatpush2.msra.mxu0 0.0
    %1515 = vmatprep.subr.mxu0 0.0
    %1516 = vmatpush2.msra.mxu0 0.0
    %1517 = vmatprep.subr.mxu0 0.0
    %1518 = vmatpush2.msra.mxu0 0.0
    %1519 = vmatprep.subr.mxu0 0.0
    %1520 = vmatpush2.msra.mxu0 0.0
    %1521 = vmatprep.subr.mxu0 0.0
    %1522 = vmatpush2.msra.mxu0 0.0
    %1523 = vmatprep.subr.mxu0 0.0
    %1524 = vmatpush2.msra.mxu0 0.0
    %1525 = vmatprep.subr.mxu0 0.0
    %1526 = vmatpush2.msra.mxu0 0.0
    %1527 = vmatprep.subr.mxu0 0.0
    %1528 = vmatpush2.msra.mxu0 0.0
    %1529 = vmatprep.subr.mxu0 0.0
    %1530 = vmatpush2.msra.mxu0 0.0
    %1531 = vmatprep.subr.mxu0 0.0
    %1532 = vmatpush2.msra.mxu0 0.0
    %1533 = vmatprep.mubr.f32.mxu0 0.0
    %1534 = vmatmul.mubr.f32.gmra.mxu0 %v1467
    %v1535 = vpop.f32.mrf.mxu0
    %v1536 = vadd.f32 0.0, %v1535
    %v1537 = vpop.f32.mrf.mxu0
    %1538 = vdwg.mxu0
    %1540 = vrot.lane.b32.xlu0 %v1210, 16
    %v1541 = vpop.permute.xlu0 %1540
    %1544 = vrot.lane.b32.xlu0 %v1373, 32
    %v1545 = vpop.permute.xlu0 %1544
    %1548 = vrot.lane.b32.xlu0 %v1536, 48
    %v1549 = vpop.permute.xlu0 %1548
    %v1551 = vsel %vm225, %v1046, %v1541
    %v1552 = vsel %vm886, %v1551, %v1545
    %v1553 = vsel %vm888, %v1552, %v1549
    %v1554 = vpack.c.bf16 %v1553, %v889
    %1555 = vrot.lane.b32.xlu0 %v144, 64
    %v1556 = vpop.permute.xlu0 %1555
    %1557 = vrot.lane.b32.xlu0 %v146, 64
    %v1558 = vpop.permute.xlu0 %1557
    %1559 = vrot.lane.b32.xlu0 %v148, 64
    %v1560 = vpop.permute.xlu0 %1559
    %1561 = vrot.lane.b32.xlu0 %v150, 64
    %v1562 = vpop.permute.xlu0 %1561
    %1567 = vrot.lane.b32.xlu0 %v218, 64
    %v1568 = vpop.permute.xlu0 %1567
    %v1571 = vsel %vm159, %v1554, 0
    %1573 = vmatprep.subr.bf16.mxu0 0
    %1574 = vmatpush1.bf16.msra.mxu0 0
    %1575 = vmatprep.subr.bf16.mxu0 0
    %1576 = vmatpush1.bf16.msra.mxu0 0
    %1577 = vmatprep.subr.bf16.mxu0 0
    %1578 = vmatpush1.bf16.msra.mxu0 0
    %1579 = vmatprep.subr.bf16.mxu0 0
    %1580 = vmatpush1.bf16.msra.mxu0 0
    %1581 = vmatprep.subr.bf16.mxu0 0
    %1582 = vmatpush1.bf16.msra.mxu0 %v1562
    %1583 = vmatprep.subr.bf16.mxu0 0
    %1584 = vmatpush1.bf16.msra.mxu0 %v1560
    %1585 = vmatprep.subr.bf16.mxu0 0
    %1586 = vmatpush1.bf16.msra.mxu0 %v1558
    %1587 = vmatprep.subr.bf16.mxu0 0
    %1588 = vmatpush1.bf16.msra.mxu0 %v1556
    %1589 = vmatprep.subr.bf16.mxu0 0
    %1590 = vmatpush2.bf16.msra.mxu0 0
    %1591 = vmatprep.subr.bf16.mxu0 0
    %1592 = vmatpush2.bf16.msra.mxu0 0
    %1593 = vmatprep.subr.bf16.mxu0 0
    %1594 = vmatpush2.bf16.msra.mxu0 0
    %1595 = vmatprep.subr.bf16.mxu0 0
    %1596 = vmatpush2.bf16.msra.mxu0 0
    %1597 = vmatprep.subr.bf16.mxu0 0
    %1598 = vmatpush2.bf16.msra.mxu0 0
    %1599 = vmatprep.subr.bf16.mxu0 0
    %1600 = vmatpush2.bf16.msra.mxu0 0
    %1601 = vmatprep.subr.bf16.mxu0 0
    %1602 = vmatpush2.bf16.msra.mxu0 0
    %1603 = vmatprep.subr.bf16.mxu0 0
    %1604 = vmatpush2.bf16.msra.mxu0 0
    %1605 = vmatprep.mubr.bf16.mxu0 0
    %1606 = vmatmul.mubr.bf16.gmra.mxu0 %v1571
    %v1607 = vpop.f32.mrf.mxu0
    %v1608 = vadd.f32 %v1568, %v1607
    %v1609 = vpop.f32.mrf.mxu0
    %v1610 = vpop.f32.mrf.mxu0
    %v1611 = vadd.f32 %v1568, %v1610
    %v1612 = vpop.f32.mrf.mxu0
    %1613 = vdwg.mxu0
    %v1614 = vsel %vm159, %v1608, 0.0
    %v1615 = vrot.slane %v1614, 4
    %v1616 = vadd.f32 %v1614, %v1615
    %v1617 = vrot.slane %v1616, 2
    %v1618 = vadd.f32 %v1616, %v1617
    %v1619 = vrot.slane %v1618, 1
    %v1620 = vadd.f32 %v1618, %v1619
    %v1621 = vrcp.pop 8.0
    %v1622 = vmul.f32 %v1620, %v1621
    %v1623 = vsel %vm159, %v1611, 0.0
    %v1624 = vrot.slane %v1623, 4
    %v1625 = vadd.f32 %v1623, %v1624
    %v1626 = vrot.slane %v1625, 2
    %v1627 = vadd.f32 %v1625, %v1626
    %v1628 = vrot.slane %v1627, 1
    %v1629 = vadd.f32 %v1627, %v1628
    %v1630 = vmul.f32 %v1629, %v1621
    %vm1631 = vcmask 1040384
    %v1632 = vsel %vm1631, %v1622, %v1630
    %v1633 = vpack.c.bf16 %v1632, %v1632
    %v1634 = vld [vmem:[%s3] sm:$0xf]
    %v1635 = vld [vmem:[%s3 + $0x4] sm:$0xf]
    %v1636 = vld [vmem:[%s3 + $0x8] sm:$0xf]
    %v1637 = vld [vmem:[%s3 + $0xc] sm:$0xf]
    %v1638 = vld [vmem:[%s3 + $0x10] sm:$0xf]
    %v1639 = vld [vmem:[%s3 + $0x14] sm:$0xf]
    %v1640 = vld [vmem:[%s3 + $0x18] sm:$0xf]
    %v1641 = vld [vmem:[%s3 + $0x1c] sm:$0xf]
    %v1643 = vlaneseq
    %v1644 = vshrl.u32 %v1643, 7
    %v1645 = vsub.s32 0, %v1644
    %v1646 = vrot.slane %v108, %v1645
    %v1656 = vunpack.c.l.b16 %v1634
    %v1657 = vunpack.c.l.b16 %v1635
    %v1658 = vunpack.c.l.b16 %v1636
    %v1659 = vunpack.c.l.b16 %v1637
    %v1660 = vunpack.c.l.b16 %v1638
    %v1661 = vunpack.c.l.b16 %v1639
    %v1662 = vunpack.c.l.b16 %v1640
    %v1663 = vunpack.c.l.b16 %v1641
    %v1664 = vpack.c.b16 %v1657, %v1656
    %v1665 = vpack.c.b16 %v1659, %v1658
    %v1666 = vpack.c.b16 %v1661, %v1660
    %v1667 = vpack.c.b16 %v1663, %v1662
    %v1673 = vsel %vm159, %v1633, 0
    %1675 = vmatprep.subr.bf16.mxu0 0
    %1676 = vmatpush1.bf16.msra.mxu0 0
    %1677 = vmatprep.subr.bf16.mxu0 0
    %1678 = vmatpush1.bf16.msra.mxu0 0
    %1679 = vmatprep.subr.bf16.mxu0 0
    %1680 = vmatpush1.bf16.msra.mxu0 0
    %1681 = vmatprep.subr.bf16.mxu0 0
    %1682 = vmatpush1.bf16.msra.mxu0 0
    %1683 = vmatprep.subr.bf16.mxu0 0
    %1684 = vmatpush1.bf16.msra.mxu0 %v1667
    %1685 = vmatprep.subr.bf16.mxu0 0
    %1686 = vmatpush1.bf16.msra.mxu0 %v1666
    %1687 = vmatprep.subr.bf16.mxu0 0
    %1688 = vmatpush1.bf16.msra.mxu0 %v1665
    %1689 = vmatprep.subr.bf16.mxu0 0
    %1690 = vmatpush1.bf16.msra.mxu0 %v1664
    %1691 = vmatprep.subr.bf16.mxu0 0
    %1692 = vmatpush2.bf16.msra.mxu0 0
    %1693 = vmatprep.subr.bf16.mxu0 0
    %1694 = vmatpush2.bf16.msra.mxu0 0
    %1695 = vmatprep.subr.bf16.mxu0 0
    %1696 = vmatpush2.bf16.msra.mxu0 0
    %1697 = vmatprep.subr.bf16.mxu0 0
    %1698 = vmatpush2.bf16.msra.mxu0 0
    %1699 = vmatprep.subr.bf16.mxu0 0
    %1700 = vmatpush2.bf16.msra.mxu0 0
    %1701 = vmatprep.subr.bf16.mxu0 0
    %1702 = vmatpush2.bf16.msra.mxu0 0
    %1703 = vmatprep.subr.bf16.mxu0 0
    %1704 = vmatpush2.bf16.msra.mxu0 0
    %1705 = vmatprep.subr.bf16.mxu0 0
    %1706 = vmatpush2.bf16.msra.mxu0 0
    %1707 = vmatprep.mubr.bf16.mxu0 0
    %1708 = vmatmul.mubr.bf16.gmra.mxu0 %v1673
    %v1709 = vpop.f32.mrf.mxu0
    %v1710 = vadd.f32 %v1646, %v1709
    %v1711 = vpop.f32.mrf.mxu0
    %v1712 = vpop.f32.mrf.mxu0
    %v1713 = vpop.f32.mrf.mxu0
    %1714 = vdwg.mxu0
    %v1715 = vpack.c.bf16 %v1710, %v1710
    %v1716 = vld [vmem:[#allocation4] sm:$0xf]
    %v1717 = vld [vmem:[#allocation4 + $0x4] sm:$0xf]
    %v1718 = vld [vmem:[#allocation4 + $0x8] sm:$0xf]
    %v1719 = vld [vmem:[#allocation4 + $0xc] sm:$0xf]
    %v1720 = vld [vmem:[#allocation4 + $0x10] sm:$0xf]
    %v1721 = vld [vmem:[#allocation4 + $0x14] sm:$0xf]
    %v1722 = vld [vmem:[#allocation4 + $0x18] sm:$0xf]
    %v1723 = vld [vmem:[#allocation4 + $0x1c] sm:$0xf]
    %v1724 = vld [vmem:[#allocation4 + $0x20] sm:$0xf]
    %v1725 = vld [vmem:[#allocation4 + $0x24] sm:$0xf]
    %v1726 = vld [vmem:[#allocation4 + $0x28] sm:$0xf]
    %v1727 = vld [vmem:[#allocation4 + $0x2c] sm:$0xf]
    %v1728 = vld [vmem:[#allocation4 + $0x30] sm:$0xf]
    %v1729 = vld [vmem:[#allocation4 + $0x34] sm:$0xf]
    %v1730 = vld [vmem:[#allocation4 + $0x38] sm:$0xf]
    %v1731 = vld [vmem:[#allocation4 + $0x3c] sm:$0xf]
    %v1733 = vlaneseq
    %v1734 = vshrl.u32 %v1733, 7
    %v1735 = vsub.s32 0, %v1734
    %v1736 = vrot.slane %v109, %v1735
    %v1754 = vunpack.c.l.b16 %v1716
    %v1755 = vunpack.c.l.b16 %v1717
    %v1756 = vunpack.c.l.b16 %v1718
    %v1757 = vunpack.c.l.b16 %v1719
    %v1758 = vunpack.c.l.b16 %v1720
    %v1759 = vunpack.c.l.b16 %v1721
    %v1760 = vunpack.c.l.b16 %v1722
    %v1761 = vunpack.c.l.b16 %v1723
    %v1762 = vunpack.c.l.b16 %v1724
    %v1763 = vunpack.c.l.b16 %v1725
    %v1764 = vunpack.c.l.b16 %v1726
    %v1765 = vunpack.c.l.b16 %v1727
    %v1766 = vunpack.c.l.b16 %v1728
    %v1767 = vunpack.c.l.b16 %v1729
    %v1768 = vunpack.c.l.b16 %v1730
    %v1769 = vunpack.c.l.b16 %v1731
    %v1770 = vpack.c.b16 %v1755, %v1754
    %v1771 = vpack.c.b16 %v1757, %v1756
    %v1772 = vpack.c.b16 %v1759, %v1758
    %v1773 = vpack.c.b16 %v1761, %v1760
    %v1774 = vpack.c.b16 %v1763, %v1762
    %v1775 = vpack.c.b16 %v1765, %v1764
    %v1776 = vpack.c.b16 %v1767, %v1766
    %v1777 = vpack.c.b16 %v1769, %v1768
    %1786 = vmatprep.subr.bf16.mxu0 0
    %1787 = vmatpush1.bf16.msra.mxu0 %v1777
    %1788 = vmatprep.subr.bf16.mxu0 0
    %1789 = vmatpush1.bf16.msra.mxu0 %v1776
    %1790 = vmatprep.subr.bf16.mxu0 0
    %1791 = vmatpush1.bf16.msra.mxu0 %v1775
    %1792 = vmatprep.subr.bf16.mxu0 0
    %1793 = vmatpush1.bf16.msra.mxu0 %v1774
    %1794 = vmatprep.subr.bf16.mxu0 0
    %1795 = vmatpush1.bf16.msra.mxu0 %v1773
    %1796 = vmatprep.subr.bf16.mxu0 0
    %1797 = vmatpush1.bf16.msra.mxu0 %v1772
    %1798 = vmatprep.subr.bf16.mxu0 0
    %1799 = vmatpush1.bf16.msra.mxu0 %v1771
    %1800 = vmatprep.subr.bf16.mxu0 0
    %1801 = vmatpush1.bf16.msra.mxu0 %v1770
    %1802 = vmatprep.subr.bf16.mxu0 0
    %1803 = vmatpush2.bf16.msra.mxu0 0
    %1804 = vmatprep.subr.bf16.mxu0 0
    %1805 = vmatpush2.bf16.msra.mxu0 0
    %1806 = vmatprep.subr.bf16.mxu0 0
    %1807 = vmatpush2.bf16.msra.mxu0 0
    %1808 = vmatprep.subr.bf16.mxu0 0
    %1809 = vmatpush2.bf16.msra.mxu0 0
    %1810 = vmatprep.subr.bf16.mxu0 0
    %1811 = vmatpush2.bf16.msra.mxu0 0
    %1812 = vmatprep.subr.bf16.mxu0 0
    %1813 = vmatpush2.bf16.msra.mxu0 0
    %1814 = vmatprep.subr.bf16.mxu0 0
    %1815 = vmatpush2.bf16.msra.mxu0 0
    %1816 = vmatprep.subr.bf16.mxu0 0
    %1817 = vmatpush2.bf16.msra.mxu0 0
    %1818 = vmatprep.mubr.bf16.mxu0 0
    %1819 = vmatmul.mubr.bf16.gmra.mxu0 %v1715
    %v1820 = vpop.f32.mrf.mxu0
    %v1821 = vadd.f32 %v1736, %v1820
    %v1822 = vpop.f32.mrf.mxu0
    %v1823 = vpop.f32.mrf.mxu0
    %v1824 = vpop.f32.mrf.mxu0
    %1825 = vdwg.mxu0
    %v1826 = vlaneseq
    %v1827 = vshrl.u32 %v1826, 7
    %v1828 = vsub.s32 0, %v1827
    %v1829 = vrot.slane %v1710, %v1828
    %v1830 = vlaneseq
    %v1831 = vshrl.u32 %v1830, 7
    %v1832 = vsub.s32 1, %v1831
    %v1833 = vrot.slane %v1710, %v1832
    %v1834 = vsub.f32 %v1829, %v102
    %v1835 = vsub.f32 %v1833, %v103
    %1837 = vset.pattern.permute.xlu0 8
    %1838 = vperm.xlu0 %1837, %v104
    %v1839 = vpop.permute.xlu0 %1838
    %1842 = vset.pattern.permute.xlu0 8
    %1843 = vperm.xlu0 %1842, %v105
    %v1844 = vpop.permute.xlu0 %1843
    %v1846 = vmul.f32 %v1839, %v1834
    %v1847 = vmul.f32 %v1844, %v1835
    %v1848 = vadd.f32 %v102, %v1846
    %v1849 = vadd.f32 %v103, %v1847
    %1852 = vrot.lane.b32.xlu0 %v1848, 64
    %v1853 = vpop.permute.xlu0 %1852
    %1854 = vrot.lane.b32.xlu0 %v1849, 64
    %v1855 = vpop.permute.xlu0 %1854
    %v1858 = vsub.f32 %v1829, %v1853
    %v1859 = vsub.f32 %v1833, %v1855
    %1860 = vset.pattern.permute.xlu0 9
    %1861 = vperm.xlu0 %1860, %v104
    %v1862 = vpop.permute.xlu0 %1861
    %1864 = vset.pattern.permute.xlu0 9
    %1865 = vperm.xlu0 %1864, %v105
    %v1866 = vpop.permute.xlu0 %1865
    %v1868 = vmul.f32 %v1862, %v1858
    %v1869 = vmul.f32 %v1866, %v1859
    %1872 = vrot.lane.b32.xlu0 %v1868, 64
    %v1873 = vpop.permute.xlu0 %1872
    %1874 = vrot.lane.b32.xlu0 %v1869, 64
    %v1875 = vpop.permute.xlu0 %1874
    %v1878 = vadd.f32 %v1848, %v1873
    %v1879 = vadd.f32 %v1849, %v1875
    %1882 = vrot.lane.b32.xlu0 %v102, 64
    %v1883 = vpop.permute.xlu0 %1882
    %1884 = vrot.lane.b32.xlu0 %v103, 64
    %v1885 = vpop.permute.xlu0 %1884
    %v1888 = vsub.f32 %v1829, %v1883
    %v1889 = vsub.f32 %v1833, %v1885
    %v1890 = vmul.f32 %v1862, %v1888
    %v1891 = vmul.f32 %v1866, %v1889
    %1894 = vrot.lane.b32.xlu0 %v1890, 64
    %v1895 = vpop.permute.xlu0 %1894
    %1896 = vrot.lane.b32.xlu0 %v1891, 64
    %v1897 = vpop.permute.xlu0 %1896
    %v1900 = vadd.f32 %v102, %v1895
    %v1901 = vadd.f32 %v103, %v1897
    %v1902 = vsub.f32 %v1829, %v1900
    %v1903 = vsub.f32 %v1833, %v1901
    %v1904 = vmul.f32 %v1839, %v1902
    %v1905 = vmul.f32 %v1844, %v1903
    %v1906 = vadd.f32 %v1900, %v1904
    %v1907 = vadd.f32 %v1901, %v1905
    %v1908 = vld [vmem:[%s5] sm:$0xff]
    %v1909 = vld [vmem:[%s5 + $0x8] sm:$0xff]
    %v1910 = vld [vmem:[%s5 + $0x10] sm:$0xff]
    %v1911 = vld [vmem:[%s5 + $0x18] sm:$0xff]
    %v1912 = vld [vmem:[%s5 + $0x20] sm:$0xff]
    %v1913 = vld [vmem:[%s5 + $0x28] sm:$0xff]
    %v1914 = vld [vmem:[%s5 + $0x30] sm:$0xff]
    %v1915 = vld [vmem:[%s5 + $0x38] sm:$0xff]
    %v1916 = vld [vmem:[%s5 + $0x40] sm:$0xff]
    %v1917 = vld [vmem:[%s5 + $0x48] sm:$0xff]
    %v1918 = vld [vmem:[%s5 + $0x50] sm:$0xff]
    %v1919 = vld [vmem:[%s5 + $0x58] sm:$0xff]
    %v1920 = vld [vmem:[%s5 + $0x60] sm:$0xff]
    %v1921 = vld [vmem:[%s5 + $0x68] sm:$0xff]
    %v1922 = vld [vmem:[%s5 + $0x70] sm:$0xff]
    %v1923 = vld [vmem:[%s5 + $0x78] sm:$0xff]
    %v1924 = vld [vmem:[#allocation6] sm:$0xf]
    %v1925 = vld [vmem:[#allocation6 + $0x4] sm:$0xf]
    %v1926 = vld [vmem:[#allocation6 + $0x8] sm:$0xf]
    %v1927 = vld [vmem:[#allocation6 + $0xc] sm:$0xf]
    %v1928 = vld [vmem:[#allocation6 + $0x10] sm:$0xf]
    %v1929 = vld [vmem:[#allocation6 + $0x14] sm:$0xf]
    %v1930 = vld [vmem:[#allocation6 + $0x18] sm:$0xf]
    %v1931 = vld [vmem:[#allocation6 + $0x1c] sm:$0xf]
    %v1932 = vld [vmem:[#allocation6 + $0x20] sm:$0xf]
    %v1933 = vld [vmem:[#allocation6 + $0x24] sm:$0xf]
    %v1934 = vld [vmem:[#allocation6 + $0x28] sm:$0xf]
    %v1935 = vld [vmem:[#allocation6 + $0x2c] sm:$0xf]
    %v1936 = vld [vmem:[#allocation6 + $0x30] sm:$0xf]
    %v1937 = vld [vmem:[#allocation6 + $0x34] sm:$0xf]
    %v1938 = vld [vmem:[#allocation6 + $0x38] sm:$0xf]
    %v1939 = vld [vmem:[#allocation6 + $0x3c] sm:$0xf]
    %v1940 = vld [vmem:[#allocation6 + $0x40] sm:$0xf]
    %v1941 = vld [vmem:[#allocation6 + $0x44] sm:$0xf]
    %v1942 = vld [vmem:[#allocation6 + $0x48] sm:$0xf]
    %v1943 = vld [vmem:[#allocation6 + $0x4c] sm:$0xf]
    %v1944 = vld [vmem:[#allocation6 + $0x50] sm:$0xf]
    %v1945 = vld [vmem:[#allocation6 + $0x54] sm:$0xf]
    %v1946 = vld [vmem:[#allocation6 + $0x58] sm:$0xf]
    %v1947 = vld [vmem:[#allocation6 + $0x5c] sm:$0xf]
    %v1948 = vld [vmem:[#allocation6 + $0x60] sm:$0xf]
    %v1949 = vld [vmem:[#allocation6 + $0x64] sm:$0xf]
    %v1950 = vld [vmem:[#allocation6 + $0x68] sm:$0xf]
    %v1951 = vld [vmem:[#allocation6 + $0x6c] sm:$0xf]
    %v1952 = vld [vmem:[#allocation6 + $0x70] sm:$0xf]
    %v1953 = vld [vmem:[#allocation6 + $0x74] sm:$0xf]
    %v1954 = vld [vmem:[#allocation6 + $0x78] sm:$0xf]
    %v1955 = vld [vmem:[#allocation6 + $0x7c] sm:$0xf]
    %v1956 = vld [vmem:[#allocation9 + $0x4] sm:$0x3]
    %v1957 = vld [vmem:[#allocation9 + $0x6] sm:$0x1]
    %v1958 = vld [vmem:[#allocation9 + $0x7] sm:$0x1]
    %v1959 = vpack.c.bf16 %v1879, %v1878
    %v1961 = vlaneseq
    %v1962 = vshrl.u32 %v1961, 7
    %v1963 = vsub.s32 0, %v1962
    %v1964 = vrot.slane %v1956, %v1963
    %v1965 = vlaneseq
    %v1966 = vshrl.u32 %v1965, 7
    %v1967 = vsub.s32 1, %v1966
    %v1968 = vrot.slane %v1956, %v1967
    %v1979 = vunpack.c.l.b16 %v1908
    %v1980 = vunpack.c.h.b16 %v1908
    %v1981 = vunpack.c.l.b16 %v1910
    %v1982 = vunpack.c.h.b16 %v1910
    %v1983 = vunpack.c.l.b16 %v1912
    %v1984 = vunpack.c.h.b16 %v1912
    %v1985 = vunpack.c.l.b16 %v1914
    %v1986 = vunpack.c.h.b16 %v1914
    %v1987 = vunpack.c.l.b16 %v1916
    %v1988 = vunpack.c.h.b16 %v1916
    %v1989 = vunpack.c.l.b16 %v1918
    %v1990 = vunpack.c.h.b16 %v1918
    %v1991 = vunpack.c.l.b16 %v1920
    %v1992 = vunpack.c.h.b16 %v1920
    %v1993 = vunpack.c.l.b16 %v1922
    %v1994 = vunpack.c.h.b16 %v1922
    %v1995 = vpack.c.b16 %v1981, %v1979
    %v1996 = vpack.c.b16 %v1982, %v1980
    %v1997 = vpack.c.b16 %v1985, %v1983
    %v1998 = vpack.c.b16 %v1986, %v1984
    %v1999 = vpack.c.b16 %v1989, %v1987
    %v2000 = vpack.c.b16 %v1990, %v1988
    %v2001 = vpack.c.b16 %v1993, %v1991
    %v2002 = vpack.c.b16 %v1994, %v1992
    %v2012 = vsel %vm159, %v1959, 0
    %2014 = vmatprep.subr.bf16.mxu0 0
    %2015 = vmatpush1.bf16.msra.mxu0 0
    %2016 = vmatprep.subr.bf16.mxu0 0
    %2017 = vmatpush1.bf16.msra.mxu0 0
    %2018 = vmatprep.subr.bf16.mxu0 0
    %2019 = vmatpush1.bf16.msra.mxu0 0
    %2020 = vmatprep.subr.bf16.mxu0 0
    %2021 = vmatpush1.bf16.msra.mxu0 0
    %2022 = vmatprep.subr.bf16.mxu0 %v2002
    %2023 = vmatpush1.bf16.msra.mxu0 %v2001
    %2024 = vmatprep.subr.bf16.mxu0 %v2000
    %2025 = vmatpush1.bf16.msra.mxu0 %v1999
    %2026 = vmatprep.subr.bf16.mxu0 %v1998
    %2027 = vmatpush1.bf16.msra.mxu0 %v1997
    %2028 = vmatprep.subr.bf16.mxu0 %v1996
    %2029 = vmatpush1.bf16.msra.mxu0 %v1995
    %2030 = vmatprep.subr.bf16.mxu0 0
    %2031 = vmatpush2.bf16.msra.mxu0 0
    %2032 = vmatprep.subr.bf16.mxu0 0
    %2033 = vmatpush2.bf16.msra.mxu0 0
    %2034 = vmatprep.subr.bf16.mxu0 0
    %2035 = vmatpush2.bf16.msra.mxu0 0
    %2036 = vmatprep.subr.bf16.mxu0 0
    %2037 = vmatpush2.bf16.msra.mxu0 0
    %2038 = vmatprep.subr.bf16.mxu0 0
    %2039 = vmatpush2.bf16.msra.mxu0 0
    %2040 = vmatprep.subr.bf16.mxu0 0
    %2041 = vmatpush2.bf16.msra.mxu0 0
    %2042 = vmatprep.subr.bf16.mxu0 0
    %2043 = vmatpush2.bf16.msra.mxu0 0
    %2044 = vmatprep.subr.bf16.mxu0 0
    %2045 = vmatpush2.bf16.msra.mxu0 0
    %2046 = vmatprep.mubr.bf16.mxu0 0
    %2047 = vmatmul.mubr.bf16.gmra.mxu0 %v2012
    %v2048 = vpop.f32.mrf.mxu0
    %v2049 = vadd.f32 %v1964, %v2048
    %v2050 = vpop.f32.mrf.mxu0
    %v2051 = vadd.f32 %v1968, %v2050
    %v2052 = vpop.f32.mrf.mxu0
    %v2053 = vadd.f32 %v1964, %v2052
    %v2054 = vpop.f32.mrf.mxu0
    %v2055 = vadd.f32 %v1968, %v2054
    %2056 = vdwg.mxu0
    %v2057 = vmul.f32 %v2049, 0.5
    %v2058 = vmul.f32 %v2051, 0.5
    %v2059 = vmul.f32 %v2053, 0.5
    %v2060 = vmul.f32 %v2055, 0.5
    %v2061 = vmul.f32 %v2049, 0.044715
    %v2062 = vmul.f32 %v2051, 0.044715
    %v2063 = vmul.f32 %v2053, 0.044715
    %v2064 = vmul.f32 %v2055, 0.044715
    %v2065 = vmul.f32 %v2061, %v2049
    %v2066 = vmul.f32 %v2062, %v2051
    %v2067 = vmul.f32 %v2063, %v2053
    %v2068 = vmul.f32 %v2064, %v2055
    %v2069 = vmul.f32 %v2065, %v2049
    %v2070 = vmul.f32 %v2066, %v2051
    %v2071 = vmul.f32 %v2067, %v2053
    %v2072 = vmul.f32 %v2068, %v2055
    %v2073 = vadd.f32 %v2049, %v2069
    %v2074 = vadd.f32 %v2051, %v2070
    %v2075 = vadd.f32 %v2053, %v2071
    %v2076 = vadd.f32 %v2055, %v2072
    %v2077 = vmul.f32 %v2073, 0.7978846
    %v2078 = vmul.f32 %v2074, 0.7978846
    %v2079 = vmul.f32 %v2075, 0.7978846
    %v2080 = vmul.f32 %v2076, 0.7978846
    %v2081 = vtanh.pop %v2077
    %v2082 = vtanh.pop %v2078
    %v2083 = vtanh.pop %v2079
    %v2084 = vtanh.pop %v2080
    %v2085 = vadd.f32 %v2081, 1.0
    %v2086 = vadd.f32 %v2082, 1.0
    %v2087 = vadd.f32 %v2083, 1.0
    %v2088 = vadd.f32 %v2084, 1.0
    %v2089 = vmul.f32 %v2057, %v2085
    %v2090 = vmul.f32 %v2058, %v2086
    %v2091 = vmul.f32 %v2059, %v2087
    %v2092 = vmul.f32 %v2060, %v2088
    %v2093 = vpack.c.bf16 %v2091, %v2089
    %v2094 = vpack.c.bf16 %v2092, %v2090
    %v2096 = vlaneseq
    %v2097 = vshrl.u32 %v2096, 7
    %v2098 = vsub.s32 0, %v2097
    %v2099 = vrot.slane %v1957, %v2098
    %v2133 = vunpack.c.l.b16 %v1924
    %v2134 = vunpack.c.l.b16 %v1925
    %v2135 = vunpack.c.l.b16 %v1926
    %v2136 = vunpack.c.l.b16 %v1927
    %v2137 = vunpack.c.l.b16 %v1928
    %v2138 = vunpack.c.l.b16 %v1929
    %v2139 = vunpack.c.l.b16 %v1930
    %v2140 = vunpack.c.l.b16 %v1931
    %v2141 = vunpack.c.l.b16 %v1932
    %v2142 = vunpack.c.l.b16 %v1933
    %v2143 = vunpack.c.l.b16 %v1934
    %v2144 = vunpack.c.l.b16 %v1935
    %v2145 = vunpack.c.l.b16 %v1936
    %v2146 = vunpack.c.l.b16 %v1937
    %v2147 = vunpack.c.l.b16 %v1938
    %v2148 = vunpack.c.l.b16 %v1939
    %v2149 = vunpack.c.l.b16 %v1940
    %v2150 = vunpack.c.l.b16 %v1941
    %v2151 = vunpack.c.l.b16 %v1942
    %v2152 = vunpack.c.l.b16 %v1943
    %v2153 = vunpack.c.l.b16 %v1944
    %v2154 = vunpack.c.l.b16 %v1945
    %v2155 = vunpack.c.l.b16 %v1946
    %v2156 = vunpack.c.l.b16 %v1947
    %v2157 = vunpack.c.l.b16 %v1948
    %v2158 = vunpack.c.l.b16 %v1949
    %v2159 = vunpack.c.l.b16 %v1950
    %v2160 = vunpack.c.l.b16 %v1951
    %v2161 = vunpack.c.l.b16 %v1952
    %v2162 = vunpack.c.l.b16 %v1953
    %v2163 = vunpack.c.l.b16 %v1954
    %v2164 = vunpack.c.l.b16 %v1955
    %v2165 = vpack.c.b16 %v2134, %v2133
    %v2166 = vpack.c.b16 %v2136, %v2135
    %v2167 = vpack.c.b16 %v2138, %v2137
    %v2168 = vpack.c.b16 %v2140, %v2139
    %v2169 = vpack.c.b16 %v2142, %v2141
    %v2170 = vpack.c.b16 %v2144, %v2143
    %v2171 = vpack.c.b16 %v2146, %v2145
    %v2172 = vpack.c.b16 %v2148, %v2147
    %v2173 = vpack.c.b16 %v2150, %v2149
    %v2174 = vpack.c.b16 %v2152, %v2151
    %v2175 = vpack.c.b16 %v2154, %v2153
    %v2176 = vpack.c.b16 %v2156, %v2155
    %v2177 = vpack.c.b16 %v2158, %v2157
    %v2178 = vpack.c.b16 %v2160, %v2159
    %v2179 = vpack.c.b16 %v2162, %v2161
    %v2180 = vpack.c.b16 %v2164, %v2163
    %2197 = vmatprep.subr.bf16.mxu0 0
    %2198 = vmatpush1.bf16.msra.mxu0 %v2172
    %2199 = vmatprep.subr.bf16.mxu0 0
    %2200 = vmatpush1.bf16.msra.mxu0 %v2171
    %2201 = vmatprep.subr.bf16.mxu0 0
    %2202 = vmatpush1.bf16.msra.mxu0 %v2170
    %2203 = vmatprep.subr.bf16.mxu0 0
    %2204 = vmatpush1.bf16.msra.mxu0 %v2169
    %2205 = vmatprep.subr.bf16.mxu0 0
    %2206 = vmatpush1.bf16.msra.mxu0 %v2168
    %2207 = vmatprep.subr.bf16.mxu0 0
    %2208 = vmatpush1.bf16.msra.mxu0 %v2167
    %2209 = vmatprep.subr.bf16.mxu0 0
    %2210 = vmatpush1.bf16.msra.mxu0 %v2166
    %2211 = vmatprep.subr.bf16.mxu0 0
    %2212 = vmatpush1.bf16.msra.mxu0 %v2165
    %2213 = vmatprep.subr.bf16.mxu0 0
    %2214 = vmatpush2.bf16.msra.mxu0 %v2180
    %2215 = vmatprep.subr.bf16.mxu0 0
    %2216 = vmatpush2.bf16.msra.mxu0 %v2179
    %2217 = vmatprep.subr.bf16.mxu0 0
    %2218 = vmatpush2.bf16.msra.mxu0 %v2178
    %2219 = vmatprep.subr.bf16.mxu0 0
    %2220 = vmatpush2.bf16.msra.mxu0 %v2177
    %2221 = vmatprep.subr.bf16.mxu0 0
    %2222 = vmatpush2.bf16.msra.mxu0 %v2176
    %2223 = vmatprep.subr.bf16.mxu0 0
    %2224 = vmatpush2.bf16.msra.mxu0 %v2175
    %2225 = vmatprep.subr.bf16.mxu0 0
    %2226 = vmatpush2.bf16.msra.mxu0 %v2174
    %2227 = vmatprep.subr.bf16.mxu0 0
    %2228 = vmatpush2.bf16.msra.mxu0 %v2173
    %2229 = vmatprep.mubr.bf16.mxu0 %v2094
    %2230 = vmatmul.mubr.bf16.gmra.mxu0 %v2093
    %v2231 = vpop.f32.mrf.mxu0
    %v2232 = vadd.f32 %v2099, %v2231
    %v2233 = vpop.f32.mrf.mxu0
    %v2234 = vpop.f32.mrf.mxu0
    %v2235 = vadd.f32 %v2099, %v2234
    %v2236 = vpop.f32.mrf.mxu0
    %2237 = vdwg.mxu0
    %v2238 = vadd.f32 %v2232, %v1878
    %v2239 = vadd.f32 %v2235, %v1879
    %v2240 = vsel %vm159, %v2238, 0.0
    %2241 = vadd.xlane.f32.xlu0 %v2240
    %v2242 = vpop.xlane.xlu0 %2241
    %v2243 = vsel %vm159, %v2239, 0.0
    %2244 = vadd.xlane.f32.xlu0 %v2243
    %v2245 = vpop.xlane.xlu0 %2244
    %v2246 = vrcp.pop 64.0
    %v2247 = vmul.f32 %v2242, %v2246
    %v2248 = vmul.f32 %v2245, %v2246
    %v2249 = vsub.f32 %v2238, %v2247
    %v2250 = vsub.f32 %v2239, %v2248
    %v2251 = vmul.f32 %v2249, %v2249
    %v2252 = vmul.f32 %v2250, %v2250
    %v2253 = vsel %vm159, %v2251, 0.0
    %2254 = vadd.xlane.f32.xlu0 %v2253
    %v2255 = vpop.xlane.xlu0 %2254
    %v2256 = vsel %vm159, %v2252, 0.0
    %2257 = vadd.xlane.f32.xlu0 %v2256
    %v2258 = vpop.xlane.xlu0 %2257
    %v2259 = vmul.f32 %v2255, %v2246
    %v2260 = vmul.f32 %v2258, %v2246
    %v2261 = vadd.f32 %v2259, 1e-12
    %v2262 = vadd.f32 %v2260, 1e-12
    %v2263 = vrsqrt.pop %v2261
    %v2264 = vrsqrt.pop %v2262
    %v2265 = vmul.f32 %v2249, %v2263
    %v2266 = vmul.f32 %v2250, %v2264
    %2267 = vrot.lane.b32.xlu0 %v2099, 64
    %v2268 = vpop.permute.xlu0 %2267
    %v2270 = vmul.f32 %v2265, %v2268
    %v2271 = vmul.f32 %v2266, %v2268
    %v2273 = vlaneseq
    %v2274 = vshrl.u32 %v2273, 7
    %v2275 = vsub.s32 0, %v2274
    %v2276 = vrot.slane %v1958, %v2275
    %v2278 = vadd.f32 %v2270, %v2276
    %v2279 = vadd.f32 %v2271, %v2276
    %v2280 = vld [vmem:[#allocation9 + $0x7] sm:$0x7]
    %v2281 = vld [vmem:[#allocation9 + $0x9] sm:$0x1]
    %v2282 = vld [vmem:[#allocation9 + $0xa] sm:$0x1]
    %v2283 = vpack.c.bf16 %v1907, %v1906
    %v2285 = vlaneseq
    %v2286 = vshrl.u32 %v2285, 7
    %v2287 = vsub.s32 0, %v2286
    %v2288 = vrot.slane %v2280, %v2287
    %v2289 = vlaneseq
    %v2290 = vshrl.u32 %v2289, 7
    %v2291 = vsub.s32 1, %v2290
    %v2292 = vrot.slane %v2280, %v2291
    %v2293 = vlaneseq
    %v2294 = vshrl.u32 %v2293, 7
    %v2295 = vsub.s32 2, %v2294
    %v2296 = vrot.slane %v2280, %v2295
    %v2305 = vunpack.c.l.b16 %v1909
    %v2306 = vunpack.c.h.b16 %v1909
    %v2307 = vunpack.c.l.b16 %v1911
    %v2308 = vunpack.c.h.b16 %v1911
    %v2309 = vunpack.c.l.b16 %v1913
    %v2310 = vunpack.c.h.b16 %v1913
    %v2311 = vunpack.c.l.b16 %v1915
    %v2312 = vunpack.c.h.b16 %v1915
    %v2313 = vunpack.c.l.b16 %v1917
    %v2314 = vunpack.c.h.b16 %v1917
    %v2315 = vunpack.c.l.b16 %v1919
    %v2316 = vunpack.c.h.b16 %v1919
    %v2317 = vunpack.c.l.b16 %v1921
    %v2318 = vunpack.c.h.b16 %v1921
    %v2319 = vunpack.c.l.b16 %v1923
    %v2320 = vunpack.c.h.b16 %v1923
    %v2321 = vpack.c.b16 %v2307, %v2305
    %v2322 = vpack.c.b16 %v2308, %v2306
    %v2323 = vpack.c.b16 %v2311, %v2309
    %v2324 = vpack.c.b16 %v2312, %v2310
    %v2325 = vpack.c.b16 %v2315, %v2313
    %v2326 = vpack.c.b16 %v2316, %v2314
    %v2327 = vpack.c.b16 %v2319, %v2317
    %v2328 = vpack.c.b16 %v2320, %v2318
    %2337 = vrot.lane.b32.xlu0 %v2288, 64
    %v2338 = vpop.permute.xlu0 %2337
    %2339 = vrot.lane.b32.xlu0 %v2292, 64
    %v2340 = vpop.permute.xlu0 %2339
    %2341 = vrot.lane.b32.xlu0 %v2296, 64
    %v2342 = vpop.permute.xlu0 %2341
    %v2343 = vsel %vm159, %v2338, %v2340
    %v2344 = vsel %vm159, %v2340, %v2342
    %v2348 = vsel %vm159, %v2283, 0
    %2350 = vmatprep.subr.bf16.mxu0 0
    %2351 = vmatpush1.bf16.msra.mxu0 0
    %2352 = vmatprep.subr.bf16.mxu0 0
    %2353 = vmatpush1.bf16.msra.mxu0 0
    %2354 = vmatprep.subr.bf16.mxu0 0
    %2355 = vmatpush1.bf16.msra.mxu0 0
    %2356 = vmatprep.subr.bf16.mxu0 0
    %2357 = vmatpush1.bf16.msra.mxu0 0
    %2358 = vmatprep.subr.bf16.mxu0 %v2328
    %2359 = vmatpush1.bf16.msra.mxu0 %v2327
    %2360 = vmatprep.subr.bf16.mxu0 %v2326
    %2361 = vmatpush1.bf16.msra.mxu0 %v2325
    %2362 = vmatprep.subr.bf16.mxu0 %v2324
    %2363 = vmatpush1.bf16.msra.mxu0 %v2323
    %2364 = vmatprep.subr.bf16.mxu0 %v2322
    %2365 = vmatpush1.bf16.msra.mxu0 %v2321
    %2366 = vmatprep.subr.bf16.mxu0 0
    %2367 = vmatpush2.bf16.msra.mxu0 0
    %2368 = vmatprep.subr.bf16.mxu0 0
    %2369 = vmatpush2.bf16.msra.mxu0 0
    %2370 = vmatprep.subr.bf16.mxu0 0
    %2371 = vmatpush2.bf16.msra.mxu0 0
    %2372 = vmatprep.subr.bf16.mxu0 0
    %2373 = vmatpush2.bf16.msra.mxu0 0
    %2374 = vmatprep.subr.bf16.mxu0 0
    %2375 = vmatpush2.bf16.msra.mxu0 0
    %2376 = vmatprep.subr.bf16.mxu0 0
    %2377 = vmatpush2.bf16.msra.mxu0 0
    %2378 = vmatprep.subr.bf16.mxu0 0
    %2379 = vmatpush2.bf16.msra.mxu0 0
    %2380 = vmatprep.subr.bf16.mxu0 0
    %2381 = vmatpush2.bf16.msra.mxu0 0
    %2382 = vmatprep.mubr.bf16.mxu0 0
    %2383 = vmatmul.mubr.bf16.gmra.mxu0 %v2348
    %v2384 = vpop.f32.mrf.mxu0
    %v2385 = vadd.f32 %v2343, %v2384
    %v2386 = vpop.f32.mrf.mxu0
    %v2387 = vadd.f32 %v2344, %v2386
    %v2388 = vpop.f32.mrf.mxu0
    %v2389 = vadd.f32 %v2343, %v2388
    %v2390 = vpop.f32.mrf.mxu0
    %v2391 = vadd.f32 %v2344, %v2390
    %2392 = vdwg.mxu0
    %v2393 = vmul.f32 %v2385, 0.5
    %v2394 = vmul.f32 %v2387, 0.5
    %v2395 = vmul.f32 %v2389, 0.5
    %v2396 = vmul.f32 %v2391, 0.5
    %v2397 = vmul.f32 %v2385, 0.044715
    %v2398 = vmul.f32 %v2387, 0.044715
    %v2399 = vmul.f32 %v2389, 0.044715
    %v2400 = vmul.f32 %v2391, 0.044715
    %v2401 = vmul.f32 %v2397, %v2385
    %v2402 = vmul.f32 %v2398, %v2387
    %v2403 = vmul.f32 %v2399, %v2389
    %v2404 = vmul.f32 %v2400, %v2391
    %v2405 = vmul.f32 %v2401, %v2385
    %v2406 = vmul.f32 %v2402, %v2387
    %v2407 = vmul.f32 %v2403, %v2389
    %v2408 = vmul.f32 %v2404, %v2391
    %v2409 = vadd.f32 %v2385, %v2405
    %v2410 = vadd.f32 %v2387, %v2406
    %v2411 = vadd.f32 %v2389, %v2407
    %v2412 = vadd.f32 %v2391, %v2408
    %v2413 = vmul.f32 %v2409, 0.7978846
    %v2414 = vmul.f32 %v2410, 0.7978846
    %v2415 = vmul.f32 %v2411, 0.7978846
    %v2416 = vmul.f32 %v2412, 0.7978846
    %v2417 = vtanh.pop %v2413
    %v2418 = vtanh.pop %v2414
    %v2419 = vtanh.pop %v2415
    %v2420 = vtanh.pop %v2416
    %v2421 = vadd.f32 %v2417, 1.0
    %v2422 = vadd.f32 %v2418, 1.0
    %v2423 = vadd.f32 %v2419, 1.0
    %v2424 = vadd.f32 %v2420, 1.0
    %v2425 = vmul.f32 %v2393, %v2421
    %v2426 = vmul.f32 %v2394, %v2422
    %v2427 = vmul.f32 %v2395, %v2423
    %v2428 = vmul.f32 %v2396, %v2424
    %v2429 = vpack.c.bf16 %v2427, %v2425
    %v2430 = vpack.c.bf16 %v2428, %v2426
    %v2432 = vlaneseq
    %v2433 = vshrl.u32 %v2432, 7
    %v2434 = vsub.s32 0, %v2433
    %v2435 = vrot.slane %v2281, %v2434
    %2436 = vrot.lane.b32.xlu0 %v2165, 64
    %v2437 = vpop.permute.xlu0 %2436
    %2438 = vrot.lane.b32.xlu0 %v2166, 64
    %v2439 = vpop.permute.xlu0 %2438
    %2440 = vrot.lane.b32.xlu0 %v2167, 64
    %v2441 = vpop.permute.xlu0 %2440
    %2442 = vrot.lane.b32.xlu0 %v2168, 64
    %v2443 = vpop.permute.xlu0 %2442
    %2444 = vrot.lane.b32.xlu0 %v2169, 64
    %v2445 = vpop.permute.xlu0 %2444
    %2446 = vrot.lane.b32.xlu0 %v2170, 64
    %v2447 = vpop.permute.xlu0 %2446
    %2448 = vrot.lane.b32.xlu0 %v2171, 64
    %v2449 = vpop.permute.xlu0 %2448
    %2450 = vrot.lane.b32.xlu0 %v2172, 64
    %v2451 = vpop.permute.xlu0 %2450
    %2452 = vrot.lane.b32.xlu0 %v2173, 64
    %v2453 = vpop.permute.xlu0 %2452
    %2454 = vrot.lane.b32.xlu0 %v2174, 64
    %v2455 = vpop.permute.xlu0 %2454
    %2456 = vrot.lane.b32.xlu0 %v2175, 64
    %v2457 = vpop.permute.xlu0 %2456
    %2458 = vrot.lane.b32.xlu0 %v2176, 64
    %v2459 = vpop.permute.xlu0 %2458
    %2460 = vrot.lane.b32.xlu0 %v2177, 64
    %v2461 = vpop.permute.xlu0 %2460
    %2462 = vrot.lane.b32.xlu0 %v2178, 64
    %v2463 = vpop.permute.xlu0 %2462
    %2464 = vrot.lane.b32.xlu0 %v2179, 64
    %v2465 = vpop.permute.xlu0 %2464
    %2466 = vrot.lane.b32.xlu0 %v2180, 64
    %v2467 = vpop.permute.xlu0 %2466
    %2484 = vrot.lane.b32.xlu0 %v2435, 64
    %v2485 = vpop.permute.xlu0 %2484
    %2487 = vmatprep.subr.bf16.mxu0 0
    %2488 = vmatpush1.bf16.msra.mxu0 %v2451
    %2489 = vmatprep.subr.bf16.mxu0 0
    %2490 = vmatpush1.bf16.msra.mxu0 %v2449
    %2491 = vmatprep.subr.bf16.mxu0 0
    %2492 = vmatpush1.bf16.msra.mxu0 %v2447
    %2493 = vmatprep.subr.bf16.mxu0 0
    %2494 = vmatpush1.bf16.msra.mxu0 %v2445
    %2495 = vmatprep.subr.bf16.mxu0 0
    %2496 = vmatpush1.bf16.msra.mxu0 %v2443
    %2497 = vmatprep.subr.bf16.mxu0 0
    %2498 = vmatpush1.bf16.msra.mxu0 %v2441
    %2499 = vmatprep.subr.bf16.mxu0 0
    %2500 = vmatpush1.bf16.msra.mxu0 %v2439
    %2501 = vmatprep.subr.bf16.mxu0 0
    %2502 = vmatpush1.bf16.msra.mxu0 %v2437
    %2503 = vmatprep.subr.bf16.mxu0 0
    %2504 = vmatpush2.bf16.msra.mxu0 %v2467
    %2505 = vmatprep.subr.bf16.mxu0 0
    %2506 = vmatpush2.bf16.msra.mxu0 %v2465
    %2507 = vmatprep.subr.bf16.mxu0 0
    %2508 = vmatpush2.bf16.msra.mxu0 %v2463
    %2509 = vmatprep.subr.bf16.mxu0 0
    %2510 = vmatpush2.bf16.msra.mxu0 %v2461
    %2511 = vmatprep.subr.bf16.mxu0 0
    %2512 = vmatpush2.bf16.msra.mxu0 %v2459
    %2513 = vmatprep.subr.bf16.mxu0 0
    %2514 = vmatpush2.bf16.msra.mxu0 %v2457
    %2515 = vmatprep.subr.bf16.mxu0 0
    %2516 = vmatpush2.bf16.msra.mxu0 %v2455
    %2517 = vmatprep.subr.bf16.mxu0 0
    %2518 = vmatpush2.bf16.msra.mxu0 %v2453
    %2519 = vmatprep.mubr.bf16.mxu0 %v2430
    %2520 = vmatmul.mubr.bf16.gmra.mxu0 %v2429
    %v2521 = vpop.f32.mrf.mxu0
    %v2522 = vadd.f32 %v2485, %v2521
    %v2523 = vpop.f32.mrf.mxu0
    %v2524 = vpop.f32.mrf.mxu0
    %v2525 = vadd.f32 %v2485, %v2524
    %v2526 = vpop.f32.mrf.mxu0
    %2527 = vdwg.mxu0
    %v2528 = vadd.f32 %v2522, %v1906
    %v2529 = vadd.f32 %v2525, %v1907
    %v2530 = vsel %vm159, %v2528, 0.0
    %2531 = vadd.xlane.f32.xlu0 %v2530
    %v2532 = vpop.xlane.xlu0 %2531
    %v2533 = vsel %vm159, %v2529, 0.0
    %2534 = vadd.xlane.f32.xlu0 %v2533
    %v2535 = vpop.xlane.xlu0 %2534
    %v2536 = vmul.f32 %v2532, %v2246
    %v2537 = vmul.f32 %v2535, %v2246
    %v2538 = vsub.f32 %v2528, %v2536
    %v2539 = vsub.f32 %v2529, %v2537
    %v2540 = vmul.f32 %v2538, %v2538
    %v2541 = vmul.f32 %v2539, %v2539
    %v2542 = vsel %vm159, %v2540, 0.0
    %2543 = vadd.xlane.f32.xlu0 %v2542
    %v2544 = vpop.xlane.xlu0 %2543
    %v2545 = vsel %vm159, %v2541, 0.0
    %2546 = vadd.xlane.f32.xlu0 %v2545
    %v2547 = vpop.xlane.xlu0 %2546
    %v2548 = vmul.f32 %v2544, %v2246
    %v2549 = vmul.f32 %v2547, %v2246
    %v2550 = vadd.f32 %v2548, 1e-12
    %v2551 = vadd.f32 %v2549, 1e-12
    %v2552 = vrsqrt.pop %v2550
    %v2553 = vrsqrt.pop %v2551
    %v2554 = vmul.f32 %v2538, %v2552
    %v2555 = vmul.f32 %v2539, %v2553
    %v2557 = vlaneseq
    %v2558 = vshrl.u32 %v2557, 7
    %v2559 = vsub.s32 0, %v2558
    %v2560 = vrot.slane %v2282, %v2559
    %v2562 = vmul.f32 %v2554, %v2560
    %v2563 = vmul.f32 %v2555, %v2560
    %2564 = vrot.lane.b32.xlu0 %v2560, 64
    %v2565 = vpop.permute.xlu0 %2564
    %v2567 = vadd.f32 %v2562, %v2565
    %v2568 = vadd.f32 %v2563, %v2565
    %v2569 = vld [vmem:[#allocation9 + $0xb] sm:$0x1]
    %v2570 = vld [vmem:[#allocation7] sm:$0xf]
    %v2571 = vld [vmem:[#allocation7 + $0x4] sm:$0xf]
    %v2572 = vld [vmem:[#allocation7 + $0x8] sm:$0xf]
    %v2573 = vld [vmem:[#allocation7 + $0xc] sm:$0xf]
    %v2574 = vld [vmem:[#allocation7 + $0x10] sm:$0xf]
    %v2575 = vld [vmem:[#allocation7 + $0x14] sm:$0xf]
    %v2576 = vld [vmem:[#allocation7 + $0x18] sm:$0xf]
    %v2577 = vld [vmem:[#allocation7 + $0x1c] sm:$0xf]
    %v2578 = vpack.c.bf16 %v2279, %v2278
    %v2587 = vunpack.c.l.b16 %v2570
    %v2588 = vunpack.c.l.b16 %v2571
    %v2589 = vunpack.c.l.b16 %v2572
    %v2590 = vunpack.c.l.b16 %v2573
    %v2591 = vunpack.c.l.b16 %v2574
    %v2592 = vunpack.c.l.b16 %v2575
    %v2593 = vunpack.c.l.b16 %v2576
    %v2594 = vunpack.c.l.b16 %v2577
    %v2595 = vpack.c.b16 %v2588, %v2587
    %v2596 = vpack.c.b16 %v2590, %v2589
    %v2597 = vpack.c.b16 %v2592, %v2591
    %v2598 = vpack.c.b16 %v2594, %v2593
    %v2604 = vsel %vm159, %v2578, 0
    %2606 = vmatprep.subr.bf16.mxu0 0
    %2607 = vmatpush1.bf16.msra.mxu0 0
    %2608 = vmatprep.subr.bf16.mxu0 0
    %2609 = vmatpush1.bf16.msra.mxu0 0
    %2610 = vmatprep.subr.bf16.mxu0 0
    %2611 = vmatpush1.bf16.msra.mxu0 0
    %2612 = vmatprep.subr.bf16.mxu0 0
    %2613 = vmatpush1.bf16.msra.mxu0 0
    %2614 = vmatprep.subr.bf16.mxu0 0
    %2615 = vmatpush1.bf16.msra.mxu0 %v2598
    %2616 = vmatprep.subr.bf16.mxu0 0
    %2617 = vmatpush1.bf16.msra.mxu0 %v2597
    %2618 = vmatprep.subr.bf16.mxu0 0
    %2619 = vmatpush1.bf16.msra.mxu0 %v2596
    %2620 = vmatprep.subr.bf16.mxu0 0
    %2621 = vmatpush1.bf16.msra.mxu0 %v2595
    %2622 = vmatprep.subr.bf16.mxu0 0
    %2623 = vmatpush2.bf16.msra.mxu0 0
    %2624 = vmatprep.subr.bf16.mxu0 0
    %2625 = vmatpush2.bf16.msra.mxu0 0
    %2626 = vmatprep.subr.bf16.mxu0 0
    %2627 = vmatpush2.bf16.msra.mxu0 0
    %2628 = vmatprep.subr.bf16.mxu0 0
    %2629 = vmatpush2.bf16.msra.mxu0 0
    %2630 = vmatprep.subr.bf16.mxu0 0
    %2631 = vmatpush2.bf16.msra.mxu0 0
    %2632 = vmatprep.subr.bf16.mxu0 0
    %2633 = vmatpush2.bf16.msra.mxu0 0
    %2634 = vmatprep.subr.bf16.mxu0 0
    %2635 = vmatpush2.bf16.msra.mxu0 0
    %2636 = vmatprep.subr.bf16.mxu0 0
    %2637 = vmatpush2.bf16.msra.mxu0 0
    %2638 = vmatprep.mubr.bf16.mxu0 0
    %2639 = vmatmul.mubr.bf16.gmra.mxu0 %v2604
    %v2640 = vpop.f32.mrf.mxu0
    %v2641 = vadd.f32 0.0, %v2640
    %v2642 = vpop.f32.mrf.mxu0
    %v2643 = vpop.f32.mrf.mxu0
    %v2644 = vadd.f32 0.0, %v2643
    %v2645 = vpop.f32.mrf.mxu0
    %2646 = vdwg.mxu0
    %v2647 = vpack.c.bf16 %v2568, %v2567
    %2648 = vrot.lane.b32.xlu0 %v2595, 64
    %v2649 = vpop.permute.xlu0 %2648
    %2650 = vrot.lane.b32.xlu0 %v2596, 64
    %v2651 = vpop.permute.xlu0 %2650
    %2652 = vrot.lane.b32.xlu0 %v2597, 64
    %v2653 = vpop.permute.xlu0 %2652
    %2654 = vrot.lane.b32.xlu0 %v2598, 64
    %v2655 = vpop.permute.xlu0 %2654
    %v2661 = vsel %vm159, %v2647, 0
    %2663 = vmatprep.subr.bf16.mxu0 0
    %2664 = vmatpush1.bf16.msra.mxu0 0
    %2665 = vmatprep.subr.bf16.mxu0 0
    %2666 = vmatpush1.bf16.msra.mxu0 0
    %2667 = vmatprep.subr.bf16.mxu0 0
    %2668 = vmatpush1.bf16.msra.mxu0 0
    %2669 = vmatprep.subr.bf16.mxu0 0
    %2670 = vmatpush1.bf16.msra.mxu0 0
    %2671 = vmatprep.subr.bf16.mxu0 0
    %2672 = vmatpush1.bf16.msra.mxu0 %v2655
    %2673 = vmatprep.subr.bf16.mxu0 0
    %2674 = vmatpush1.bf16.msra.mxu0 %v2653
    %2675 = vmatprep.subr.bf16.mxu0 0
    %2676 = vmatpush1.bf16.msra.mxu0 %v2651
    %2677 = vmatprep.subr.bf16.mxu0 0
    %2678 = vmatpush1.bf16.msra.mxu0 %v2649
    %2679 = vmatprep.subr.bf16.mxu0 0
    %2680 = vmatpush2.bf16.msra.mxu0 0
    %2681 = vmatprep.subr.bf16.mxu0 0
    %2682 = vmatpush2.bf16.msra.mxu0 0
    %2683 = vmatprep.subr.bf16.mxu0 0
    %2684 = vmatpush2.bf16.msra.mxu0 0
    %2685 = vmatprep.subr.bf16.mxu0 0
    %2686 = vmatpush2.bf16.msra.mxu0 0
    %2687 = vmatprep.subr.bf16.mxu0 0
    %2688 = vmatpush2.bf16.msra.mxu0 0
    %2689 = vmatprep.subr.bf16.mxu0 0
    %2690 = vmatpush2.bf16.msra.mxu0 0
    %2691 = vmatprep.subr.bf16.mxu0 0
    %2692 = vmatpush2.bf16.msra.mxu0 0
    %2693 = vmatprep.subr.bf16.mxu0 0
    %2694 = vmatpush2.bf16.msra.mxu0 0
    %2695 = vmatprep.mubr.bf16.mxu0 0
    %2696 = vmatmul.mubr.bf16.gmra.mxu0 %v2661
    %v2697 = vpop.f32.mrf.mxu0
    %v2698 = vadd.f32 0.0, %v2697
    %v2699 = vpop.f32.mrf.mxu0
    %v2700 = vpop.f32.mrf.mxu0
    %v2701 = vadd.f32 0.0, %v2700
    %v2702 = vpop.f32.mrf.mxu0
    %2703 = vdwg.mxu0
    %2706 = vrot.lane.b32.xlu0 %v2698, 64
    %v2707 = vpop.permute.xlu0 %2706
    %2708 = vrot.lane.b32.xlu0 %v2701, 64
    %v2709 = vpop.permute.xlu0 %2708
    %v2712 = vsel %vm159, %v2641, %v2707
    %v2713 = vsel %vm159, %v2644, %v2709
    %v2715 = vlaneseq
    %v2716 = vshrl.u32 %v2715, 7
    %v2717 = vsub.s32 0, %v2716
    %v2718 = vrot.slane %v2569, %v2717
    %v2720 = vadd.f32 %v2712, %v2718
    %v2721 = vadd.f32 %v2713, %v2718
    %2722 = vst [vmem:[%s9] sm:$0xff] %v2720
    %2723 = vst [vmem:[%s9 + $0x8] sm:$0xff] %v2721
    %2726 = vrot.lane.b32.xlu0 %v2567, 64
    %v2727 = vpop.permute.xlu0 %2726
    %2728 = vrot.lane.b32.xlu0 %v2568, 64
    %v2729 = vpop.permute.xlu0 %2728
    %v2732 = vsel %vm159, %v2278, %v2727
    %v2733 = vsel %vm159, %v2279, %v2729
    %2734 = vst [vmem:[%s10] sm:$0xff] %v2732
    %2735 = vst [vmem:[%s10 + $0x8] sm:$0xff] %v2733
    %v2738 = vcombine.low %v1710, %v1821
    %v2740 = vunpack.c.l.s4 1983009808
    %v2741 = vunpack.c.0.s8 %v2740
    %v2742 = vlaneseq
    %v2743 = vshrl.u32 %v2742, 7
    %v2744 = vsub.s32 %v2741, %v2743
    %v2745 = vrot.slane %v2738, %v2744
    %2747 = vst [vmem:[%s11] sm:$0xf] %v2745
    // Predicated region
    $region58: #{step_1_forward.1} parent=1 // pred_check
      _
    $region59: #{step_1_forward.1} parent=1 // pred_check_branch
      %2749 = sbr.rel (0) target = $region61
    $region60: #{step_1_forward.1} parent=1 // pred_region
      _
    $region61: #{step_1_forward.1} parent=1 // pred_fallthru
      _
    // Predicated region
    $region62: #{step_1_forward.1} parent=1 // pred_check
      _
    $region63: #{step_1_forward.1} parent=1 // pred_check_branch
      %2751 = sbr.rel (0) target = $region65
    $region64: #{step_1_forward.1} parent=1 // pred_region
      _
    $region65: #{step_1_forward.1} parent=1 // pred_fallthru
      _
    // Predicated region
    $region66: #{step_1_forward.1} parent=1 // pred_check
      _
    $region67: #{step_1_forward.1} parent=1 // pred_check_branch
      %2753 = sbr.rel (0) target = $region69
    $region68: #{step_1_forward.1} parent=1 // pred_region
      _
    $region69: #{step_1_forward.1} parent=1 // pred_fallthru
      _
    // Predicated region
    $region70: #{step_1_forward.1} parent=1 // pred_check
      _
    $region71: #{step_1_forward.1} parent=1 // pred_check_branch
      %2755 = sbr.rel (0) target = $region73
    $region72: #{step_1_forward.1} parent=1 // pred_region
      _
    $region73: #{step_1_forward.1} parent=1 // pred_fallthru
      _
    // Predicated region
    $region74: #{step_1_forward.1} parent=1 // pred_check
      _
    $region75: #{step_1_forward.1} parent=1 // pred_check_branch
      %2757 = sbr.rel (0) target = $region77
    $region76: #{step_1_forward.1} parent=1 // pred_region
      _
    $region77: #{step_1_forward.1} parent=1 // pred_fallthru
      _
    // Predicated region
    $region78: #{step_1_forward.1} parent=1 // pred_check
      _
    $region79: #{step_1_forward.1} parent=1 // pred_check_branch
      %2759 = sbr.rel (0) target = $region81
    $region80: #{step_1_forward.1} parent=1 // pred_region
      _
    $region81: #{step_1_forward.1} parent=1 // pred_fallthru
      _
    %2760 = vsyncpa [#allocation3], 1
    %2761 = vsyncpa [#allocation5], 1
    %2762 = vsyncpa [#allocation8], 1

</llo_original>
